<compile_context>
chip_gen: v5e
topology: v5e:2x2
jax: 0.10.0
libtpu: 0.0.40
codegen_flags: <defaults>
</compile_context>

<pallas_src>
import jax
import jax.numpy as jnp
from jax.experimental import pallas as pl
from jax.experimental.pallas import tpu as pltpu

D_MODEL = 128
SEQ = 32
NHEAD = 4
HEAD_DIM = D_MODEL // NHEAD
VOCAB = 256
FFN = 4 * D_MODEL
EPS = 1e-5  # PyTorch LayerNorm default


def _layernorm(x, gamma, beta):
    mean = jnp.mean(x, axis=-1, keepdims=True)
    var = jnp.mean((x - mean) ** 2, axis=-1, keepdims=True)
    inv = jax.lax.rsqrt(var + EPS)
    return (x - mean) * inv * gamma + beta


def transformer_kernel(tok_ref, emb_ref, pos_ref,
                       wqkv_ref, bqkv_ref,
                       wo_ref, bo_ref,
                       g1_ref, be1_ref,
                       w1_ref, b1_ref, w2_ref, b2_ref,
                       g2_ref, be2_ref,
                       wfc_ref, bfc_ref,
                       out_ref):
    BB, S, _ = tok_ref.shape                  # batch-block x seq
    D = D_MODEL
    Dh = HEAD_DIM
    M = BB * S                                # rows fed to every matmul
    bf16 = jnp.bfloat16

    # ---- embedding gather as a one-hot MXU matmul, plus positional add ----
    tok = tok_ref[...]                                                  # (BB,S,1) i32
    iota = jax.lax.broadcasted_iota(jnp.int32, (BB, S, VOCAB), 2)
    onehot = (iota == tok).astype(bf16)                                 # (BB,S,V)
    emb = jnp.dot(onehot.reshape(M, VOCAB), emb_ref[...],
                  preferred_element_type=jnp.float32)                   # (M,D) f32
    x = emb.reshape(BB, S, D) + pos_ref[...]                            # (BB,S,D) f32
    x2d = x.reshape(M, D)
    xb = x2d.astype(bf16)

    # ---- fused Q/K/V projection: one (M,128)@(128,384) matmul ----
    # 1/sqrt(head_dim) is already folded into the Q columns (wrapper).
    qkv = jnp.dot(xb, wqkv_ref[...],
                  preferred_element_type=jnp.float32) + bqkv_ref[...]   # (M,3D) f32
    qkv_b = qkv.astype(bf16)

    # ---- multi-head self-attention core (static head unroll) ----
    # TODO(synk): flattening (batch, head) into one einsum batch dim needs an
    # in-kernel 4-D transpose; kept per-head for robust lowering (NHEAD=4).
    head_outs = []
    for h in range(NHEAD):
        q3 = qkv_b[:, h * Dh:(h + 1) * Dh].reshape(BB, S, Dh)
        k3 = qkv_b[:, D + h * Dh:D + (h + 1) * Dh].reshape(BB, S, Dh)
        v3 = qkv_b[:, 2 * D + h * Dh:2 * D + (h + 1) * Dh].reshape(BB, S, Dh)

        s = jnp.einsum('bqd,bkd->bqk', q3, k3,
                       preferred_element_type=jnp.float32)              # (BB,S,S)
        s = s - jnp.max(s, axis=-1, keepdims=True)
        p = jnp.exp(s)
        p = p * pl.reciprocal(jnp.sum(p, axis=-1, keepdims=True), approx=True)

        head_outs.append(jnp.einsum('bqk,bkd->bqd', p.astype(bf16), v3,
                                    preferred_element_type=jnp.float32))  # (BB,S,Dh)

    # lane-dense concat of head outputs -> single full-K W_o matmul
    o = jnp.concatenate(head_outs, axis=-1).reshape(M, D)               # (M,128) f32
    attn = jnp.dot(o.astype(bf16), wo_ref[...],
                   preferred_element_type=jnp.float32) + bo_ref[...]    # (M,D)

    # ---- residual + LayerNorm 1 (f32) ----
    x1 = _layernorm(x2d + attn, g1_ref[...], be1_ref[...])

    # ---- FFN: Linear(D, 4D) -> ReLU -> Linear(4D, D) ----
    h1 = jnp.dot(x1.astype(bf16), w1_ref[...],
                 preferred_element_type=jnp.float32) + b1_ref[...]
    h1 = jnp.maximum(h1, 0.0)
    ffn = jnp.dot(h1.astype(bf16), w2_ref[...],
                  preferred_element_type=jnp.float32) + b2_ref[...]

    # ---- residual + LayerNorm 2 (f32) ----
    x2 = _layernorm(x1 + ffn, g2_ref[...], be2_ref[...])

    # ---- final vocab projection (lane-dense output, VOCAB = 256) ----
    logits = jnp.dot(x2.astype(bf16), wfc_ref[...],
                     preferred_element_type=jnp.float32) + bfc_ref[...]
    out_ref[...] = logits.reshape(BB, S, VOCAB)


def init_params(key):
    ks = jax.random.split(key, 9)
    s = 0.02
    return {
        "emb":  jax.random.normal(ks[0], (VOCAB, D_MODEL), jnp.float32) * s,
        "pos":  jax.random.normal(ks[1], (1, SEQ, D_MODEL), jnp.float32) * s,
        # attention: (in, out) orientation
        "wq":   jax.random.normal(ks[2], (D_MODEL, D_MODEL), jnp.float32) * s,
        "wk":   jax.random.normal(ks[3], (D_MODEL, D_MODEL), jnp.float32) * s,
        "wv":   jax.random.normal(ks[4], (D_MODEL, D_MODEL), jnp.float32) * s,
        "bq":   jnp.zeros((1, D_MODEL), jnp.float32),
        "bk":   jnp.zeros((1, D_MODEL), jnp.float32),
        "bv":   jnp.zeros((1, D_MODEL), jnp.float32),
        "wo":   jax.random.normal(ks[5], (D_MODEL, D_MODEL), jnp.float32) * s,
        "bo":   jnp.zeros((1, D_MODEL), jnp.float32),
        "g1":   jnp.ones((1, D_MODEL), jnp.float32),
        "be1":  jnp.zeros((1, D_MODEL), jnp.float32),
        "w1":   jax.random.normal(ks[6], (D_MODEL, FFN), jnp.float32) * s,
        "b1":   jnp.zeros((1, FFN), jnp.float32),
        "w2":   jax.random.normal(ks[7], (FFN, D_MODEL), jnp.float32) * s,
        "b2":   jnp.zeros((1, D_MODEL), jnp.float32),
        "g2":   jnp.ones((1, D_MODEL), jnp.float32),
        "be2":  jnp.zeros((1, D_MODEL), jnp.float32),
        "wfc":  jax.random.normal(ks[8], (D_MODEL, VOCAB), jnp.float32) * s,
        "bfc":  jnp.zeros((1, VOCAB), jnp.float32),
    }


def _full_spec(shape):
    nd = len(shape)
    return pl.BlockSpec(shape, lambda b, _nd=nd: (0,) * _nd)


def _pick_block_batch(B, seq=SEQ, target_m=256, max_m=1024):
    """Size the batch block from an MXU-row / VMEM budget.

    - Prefer exactly 2 grid steps only when each half still yields
      M = BB*seq >= target_m (keeps both v7x TensorCores busy via
      dimension_semantics=("parallel",) without starving the MXU).
    - Otherwise one block as big as the budget allows (single-TC chips:
      grid steps are a serial loop, so fewer/larger is strictly better).
    max_m = 1024 keeps per-block f32 intermediates (h1, logits, qkv, one-hot)
    to a few MB, well under every generation's default scoped VMEM.
    """
    if B % 2 == 0:
        half = B // 2
        if half * seq >= target_m and half * seq <= max_m:
            return half
    best = 1
    for bb in range(1, B + 1):
        if B % bb == 0 and bb * seq <= max_m:
            best = bb
    return best


@jax.jit
def tiny_transformer(tokens, params):
    B, S = tokens.shape
    BB = _pick_block_batch(B)
    bf16 = jnp.bfloat16

    tok3 = tokens.astype(jnp.int32).reshape(B, S, 1)

    # Fuse Q/K/V weights (and biases) along the output dim; fold the
    # 1/sqrt(head_dim) attention scale into the Q columns (weights, once).
    scale = 1.0 / (HEAD_DIM ** 0.5)
    wqkv = jnp.concatenate(
        [params["wq"] * scale, params["wk"], params["wv"]], axis=1).astype(bf16)  # (D, 3D)
    bqkv = jnp.concatenate(
        [params["bq"] * scale, params["bk"], params["bv"]], axis=1)               # (1, 3D)

    weights = [
        params["emb"].astype(bf16),
        params["pos"],
        wqkv, bqkv,
        params["wo"].astype(bf16), params["bo"],
        params["g1"], params["be1"],
        params["w1"].astype(bf16), params["b1"],
        params["w2"].astype(bf16), params["b2"],
        params["g2"], params["be2"],
        params["wfc"].astype(bf16), params["bfc"],
    ]

    in_specs = [pl.BlockSpec((BB, S, 1), lambda b: (b, 0, 0))] \
        + [_full_spec(w.shape) for w in weights]
    out_spec = pl.BlockSpec((BB, S, VOCAB), lambda b: (b, 0, 0))

    return pl.pallas_call(
        transformer_kernel,
        out_shape=jax.ShapeDtypeStruct((B, S, VOCAB), jnp.float32),
        grid_spec=pltpu.PrefetchScalarGridSpec(
            num_scalar_prefetch=0,
            grid=(B // BB,),
            in_specs=in_specs,
            out_specs=out_spec,
        ),
        compiler_params=pltpu.CompilerParams(
            dimension_semantics=("parallel",),
        ),
    )(tok3, *weights)


def reference_forward(tokens, p):
    """Pure-JAX f32 reference mirroring the PyTorch module."""
    x = jnp.take(p["emb"], tokens, axis=0) + p["pos"]                   # (B,S,D)
    B, S, D = x.shape
    q = x @ p["wq"] + p["bq"]
    k = x @ p["wk"] + p["bk"]
    v = x @ p["wv"] + p["bv"]

    def split(t):
        return t.reshape(B, S, NHEAD, HEAD_DIM).transpose(0, 2, 1, 3)   # (B,H,S,Dh)

    qh, kh, vh = split(q), split(k), split(v)
    s = jnp.einsum('bhqd,bhkd->bhqk', qh, kh) / (HEAD_DIM ** 0.5)
    pr = jax.nn.softmax(s, axis=-1)
    o = jnp.einsum('bhqk,bhkd->bhqd', pr, vh)
    o = o.transpose(0, 2, 1, 3).reshape(B, S, D)
    attn = o @ p["wo"] + p["bo"]

    x1 = _layernorm(x + attn, p["g1"], p["be1"])
    h1 = jnp.maximum(x1 @ p["w1"] + p["b1"], 0.0)
    x2 = _layernorm(x1 + h1 @ p["w2"] + p["b2"], p["g2"], p["be2"])
    return x2 @ p["wfc"] + p["bfc"]


if __name__ == "__main__":
    key = jax.random.PRNGKey(0)
    pkey, tkey = jax.random.split(key)
    params = init_params(pkey)
    tokens = jax.random.randint(tkey, (2, SEQ), 0, VOCAB, dtype=jnp.int32)  # (B=2, S=32)

    logits = tiny_transformer(tokens, params)
    jax.block_until_ready(logits)

    assert logits.shape == (2, SEQ, VOCAB), logits.shape
    assert bool(jnp.all(jnp.isfinite(logits)))

    # loose tolerance: kernel uses bf16 matmul inputs (f32 accumulation)
    ref = reference_forward(tokens, params)
    max_err = float(jnp.max(jnp.abs(logits - ref)))
    assert max_err < 5e-2, f"max abs err vs reference: {max_err}"

    print("KERNEL_OK")
</pallas_src>

<mosaic_0001>
module attributes {stable_mosaic.version = 11 : i64} {
  func.func @transformer_kernel(%arg0: i32, %arg1: memref<2x32x1xi32, #tpu.memory_space<vmem>>, %arg2: memref<256x128xbf16, #tpu.memory_space<vmem>>, %arg3: memref<1x32x128xf32, #tpu.memory_space<vmem>>, %arg4: memref<128x384xbf16, #tpu.memory_space<vmem>>, %arg5: memref<1x384xf32, #tpu.memory_space<vmem>>, %arg6: memref<128x128xbf16, #tpu.memory_space<vmem>>, %arg7: memref<1x128xf32, #tpu.memory_space<vmem>>, %arg8: memref<1x128xf32, #tpu.memory_space<vmem>>, %arg9: memref<1x128xf32, #tpu.memory_space<vmem>>, %arg10: memref<128x512xbf16, #tpu.memory_space<vmem>>, %arg11: memref<1x512xf32, #tpu.memory_space<vmem>>, %arg12: memref<512x128xbf16, #tpu.memory_space<vmem>>, %arg13: memref<1x128xf32, #tpu.memory_space<vmem>>, %arg14: memref<1x128xf32, #tpu.memory_space<vmem>>, %arg15: memref<1x128xf32, #tpu.memory_space<vmem>>, %arg16: memref<128x256xbf16, #tpu.memory_space<vmem>>, %arg17: memref<1x256xf32, #tpu.memory_space<vmem>>, %arg18: memref<2x32x256xf32, #tpu.memory_space<vmem>>) attributes {dimension_semantics = [#tpu.dimension_semantics<parallel>], iteration_bounds = array<i64: 1>, scalar_prefetch = 0 : i64, scratch_operands = 0 : i64, tpu.core_type = #tpu.core_type<tc>, window_params = [{transform_indices = @transform_0, window_bounds = array<i64: 2, 32, 1>}, {pipeline_mode = #tpu.pipeline_mode<synchronous>, transform_indices = @transform_1, window_bounds = array<i64: 256, 128>}, {pipeline_mode = #tpu.pipeline_mode<synchronous>, transform_indices = @transform_2, window_bounds = array<i64: 1, 32, 128>}, {pipeline_mode = #tpu.pipeline_mode<synchronous>, transform_indices = @transform_3, window_bounds = array<i64: 128, 384>}, {pipeline_mode = #tpu.pipeline_mode<synchronous>, transform_indices = @transform_4, window_bounds = array<i64: 1, 384>}, {pipeline_mode = #tpu.pipeline_mode<synchronous>, transform_indices = @transform_5, window_bounds = array<i64: 128, 128>}, {pipeline_mode = #tpu.pipeline_mode<synchronous>, transform_indices = @transform_6, window_bounds = array<i64: 1, 128>}, {pipeline_mode = #tpu.pipeline_mode<synchronous>, transform_indices = @transform_7, window_bounds = array<i64: 1, 128>}, {pipeline_mode = #tpu.pipeline_mode<synchronous>, transform_indices = @transform_8, window_bounds = array<i64: 1, 128>}, {pipeline_mode = #tpu.pipeline_mode<synchronous>, transform_indices = @transform_9, window_bounds = array<i64: 128, 512>}, {pipeline_mode = #tpu.pipeline_mode<synchronous>, transform_indices = @transform_10, window_bounds = array<i64: 1, 512>}, {pipeline_mode = #tpu.pipeline_mode<synchronous>, transform_indices = @transform_11, window_bounds = array<i64: 512, 128>}, {pipeline_mode = #tpu.pipeline_mode<synchronous>, transform_indices = @transform_12, window_bounds = array<i64: 1, 128>}, {pipeline_mode = #tpu.pipeline_mode<synchronous>, transform_indices = @transform_13, window_bounds = array<i64: 1, 128>}, {pipeline_mode = #tpu.pipeline_mode<synchronous>, transform_indices = @transform_14, window_bounds = array<i64: 1, 128>}, {pipeline_mode = #tpu.pipeline_mode<synchronous>, transform_indices = @transform_15, window_bounds = array<i64: 128, 256>}, {pipeline_mode = #tpu.pipeline_mode<synchronous>, transform_indices = @transform_16, window_bounds = array<i64: 1, 256>}, {transform_indices = @transform_17, window_bounds = array<i64: 2, 32, 256>}]} {
    %c0 = arith.constant 0 : index
    %c0_0 = arith.constant 0 : index
    %c0_1 = arith.constant 0 : index
    %0 = vector.load %arg1[%c0, %c0_0, %c0_1] : memref<2x32x1xi32, #tpu.memory_space<vmem>>, vector<2x32x1xi32>
    %1 = tpu.iota {dimensions = array<i32: 2>} : vector<2x32x256xi32>
    %2 = vector.broadcast %0 : vector<2x32x1xi32> to vector<2x32x256xi32>
    %3 = arith.cmpi eq, %1, %2 : vector<2x32x256xi32>
    %4 = arith.extui %3 : vector<2x32x256xi1> to vector<2x32x256xi32>
    %5 = arith.sitofp %4 : vector<2x32x256xi32> to vector<2x32x256xf32>
    %6 = arith.truncf %5 : vector<2x32x256xf32> to vector<2x32x256xbf16>
    %7 = vector.shape_cast %6 : vector<2x32x256xbf16> to vector<64x256xbf16>
    %c0_2 = arith.constant 0 : index
    %c0_3 = arith.constant 0 : index
    %8 = vector.load %arg2[%c0_2, %c0_3] : memref<256x128xbf16, #tpu.memory_space<vmem>>, vector<256x128xbf16>
    %cst = arith.constant dense<0.000000e+00> : vector<64x128xf32>
    %9 = tpu.matmul %7, %8, %cst {dimension_numbers = #tpu.dot_dimension_numbers<[1], [0], [0], [1], [0, 0, 1, 1], [], []>} : vector<64x256xbf16>, vector<256x128xbf16>, vector<64x128xf32> -> vector<64x128xf32>
    %10 = vector.shape_cast %9 : vector<64x128xf32> to vector<2x32x128xf32>
    %c0_4 = arith.constant 0 : index
    %c0_5 = arith.constant 0 : index
    %c0_6 = arith.constant 0 : index
    %11 = vector.load %arg3[%c0_4, %c0_5, %c0_6] : memref<1x32x128xf32, #tpu.memory_space<vmem>>, vector<1x32x128xf32>
    %12 = vector.broadcast %11 : vector<1x32x128xf32> to vector<2x32x128xf32>
    %13 = arith.addf %10, %12 : vector<2x32x128xf32>
    %14 = vector.shape_cast %13 : vector<2x32x128xf32> to vector<64x128xf32>
    %15 = arith.truncf %14 : vector<64x128xf32> to vector<64x128xbf16>
    %c0_7 = arith.constant 0 : index
    %c0_8 = arith.constant 0 : index
    %16 = vector.load %arg4[%c0_7, %c0_8] : memref<128x384xbf16, #tpu.memory_space<vmem>>, vector<128x384xbf16>
    %cst_9 = arith.constant dense<0.000000e+00> : vector<64x384xf32>
    %17 = tpu.matmul %15, %16, %cst_9 {dimension_numbers = #tpu.dot_dimension_numbers<[1], [0], [0], [1], [0, 0, 1, 1], [], []>} : vector<64x128xbf16>, vector<128x384xbf16>, vector<64x384xf32> -> vector<64x384xf32>
    %c0_10 = arith.constant 0 : index
    %c0_11 = arith.constant 0 : index
    %18 = vector.load %arg5[%c0_10, %c0_11] : memref<1x384xf32, #tpu.memory_space<vmem>>, vector<1x384xf32>
    %19 = vector.broadcast %18 : vector<1x384xf32> to vector<64x384xf32>
    %20 = arith.addf %17, %19 : vector<64x384xf32>
    %21 = arith.truncf %20 : vector<64x384xf32> to vector<64x384xbf16>
    %22 = vector.extract_strided_slice %21 {offsets = [0, 0], sizes = [64, 32], strides = [1, 1]} : vector<64x384xbf16> to vector<64x32xbf16>
    %23 = vector.shape_cast %22 : vector<64x32xbf16> to vector<2x32x32xbf16>
    %24 = vector.extract_strided_slice %21 {offsets = [0, 128], sizes = [64, 32], strides = [1, 1]} : vector<64x384xbf16> to vector<64x32xbf16>
    %25 = vector.shape_cast %24 : vector<64x32xbf16> to vector<2x32x32xbf16>
    %26 = vector.extract_strided_slice %21 {offsets = [0, 256], sizes = [64, 32], strides = [1, 1]} : vector<64x384xbf16> to vector<64x32xbf16>
    %27 = vector.shape_cast %26 : vector<64x32xbf16> to vector<2x32x32xbf16>
    "tpu.trace_start"() <{level = 10 : i32, message = "bqd,bkd->bqk"}> : () -> ()
    %cst_12 = arith.constant dense<0.000000e+00> : vector<2x32x32xf32>
    %28 = tpu.matmul %23, %25, %cst_12 {dimension_numbers = #tpu.dot_dimension_numbers<[2], [2], [1], [1], [0, 0, 0, 1, 1, 1], [0], [0]>} : vector<2x32x32xbf16>, vector<2x32x32xbf16>, vector<2x32x32xf32> -> vector<2x32x32xf32>
    "tpu.trace_stop"() : () -> ()
    %cst_13 = arith.constant dense<0xFF800000> : vector<2x32xf32>
    %29 = vector.multi_reduction <maximumf>, %28, %cst_13 [2] : vector<2x32x32xf32> to vector<2x32xf32>
    %30 = vector.shape_cast %29 : vector<2x32xf32> to vector<2x32x1xf32>
    %31 = vector.broadcast %30 : vector<2x32x1xf32> to vector<2x32x32xf32>
    %32 = arith.subf %28, %31 : vector<2x32x32xf32>
    %33 = math.exp %32 : vector<2x32x32xf32>
    %cst_14 = arith.constant dense<0.000000e+00> : vector<2x32xf32>
    %34 = vector.multi_reduction <add>, %33, %cst_14 [2] : vector<2x32x32xf32> to vector<2x32xf32>
    %35 = vector.shape_cast %34 : vector<2x32xf32> to vector<2x32x1xf32>
    %36 = tpu.reciprocal %35 {approx = true} : vector<2x32x1xf32> -> vector<2x32x1xf32>
    %37 = vector.broadcast %36 : vector<2x32x1xf32> to vector<2x32x32xf32>
    %38 = arith.mulf %33, %37 : vector<2x32x32xf32>
    %39 = arith.truncf %38 : vector<2x32x32xf32> to vector<2x32x32xbf16>
    "tpu.trace_start"() <{level = 10 : i32, message = "bqk,bkd->bqd"}> : () -> ()
    %cst_15 = arith.constant dense<0.000000e+00> : vector<2x32x32xf32>
    %40 = tpu.matmul %39, %27, %cst_15 {dimension_numbers = #tpu.dot_dimension_numbers<[2], [1], [1], [2], [0, 0, 0, 1, 1, 2], [0], [0]>} : vector<2x32x32xbf16>, vector<2x32x32xbf16>, vector<2x32x32xf32> -> vector<2x32x32xf32>
    "tpu.trace_stop"() : () -> ()
    %41 = vector.extract_strided_slice %21 {offsets = [0, 32], sizes = [64, 32], strides = [1, 1]} : vector<64x384xbf16> to vector<64x32xbf16>
    %42 = vector.shape_cast %41 : vector<64x32xbf16> to vector<2x32x32xbf16>
    %43 = vector.extract_strided_slice %21 {offsets = [0, 160], sizes = [64, 32], strides = [1, 1]} : vector<64x384xbf16> to vector<64x32xbf16>
    %44 = vector.shape_cast %43 : vector<64x32xbf16> to vector<2x32x32xbf16>
    %45 = vector.extract_strided_slice %21 {offsets = [0, 288], sizes = [64, 32], strides = [1, 1]} : vector<64x384xbf16> to vector<64x32xbf16>
    %46 = vector.shape_cast %45 : vector<64x32xbf16> to vector<2x32x32xbf16>
    "tpu.trace_start"() <{level = 10 : i32, message = "bqd,bkd->bqk"}> : () -> ()
    %cst_16 = arith.constant dense<0.000000e+00> : vector<2x32x32xf32>
    %47 = tpu.matmul %42, %44, %cst_16 {dimension_numbers = #tpu.dot_dimension_numbers<[2], [2], [1], [1], [0, 0, 0, 1, 1, 1], [0], [0]>} : vector<2x32x32xbf16>, vector<2x32x32xbf16>, vector<2x32x32xf32> -> vector<2x32x32xf32>
    "tpu.trace_stop"() : () -> ()
    %cst_17 = arith.constant dense<0xFF800000> : vector<2x32xf32>
    %48 = vector.multi_reduction <maximumf>, %47, %cst_17 [2] : vector<2x32x32xf32> to vector<2x32xf32>
    %49 = vector.shape_cast %48 : vector<2x32xf32> to vector<2x32x1xf32>
    %50 = vector.broadcast %49 : vector<2x32x1xf32> to vector<2x32x32xf32>
    %51 = arith.subf %47, %50 : vector<2x32x32xf32>
    %52 = math.exp %51 : vector<2x32x32xf32>
    %cst_18 = arith.constant dense<0.000000e+00> : vector<2x32xf32>
    %53 = vector.multi_reduction <add>, %52, %cst_18 [2] : vector<2x32x32xf32> to vector<2x32xf32>
    %54 = vector.shape_cast %53 : vector<2x32xf32> to vector<2x32x1xf32>
    %55 = tpu.reciprocal %54 {approx = true} : vector<2x32x1xf32> -> vector<2x32x1xf32>
    %56 = vector.broadcast %55 : vector<2x32x1xf32> to vector<2x32x32xf32>
    %57 = arith.mulf %52, %56 : vector<2x32x32xf32>
    %58 = arith.truncf %57 : vector<2x32x32xf32> to vector<2x32x32xbf16>
    "tpu.trace_start"() <{level = 10 : i32, message = "bqk,bkd->bqd"}> : () -> ()
    %cst_19 = arith.constant dense<0.000000e+00> : vector<2x32x32xf32>
    %59 = tpu.matmul %58, %46, %cst_19 {dimension_numbers = #tpu.dot_dimension_numbers<[2], [1], [1], [2], [0, 0, 0, 1, 1, 2], [0], [0]>} : vector<2x32x32xbf16>, vector<2x32x32xbf16>, vector<2x32x32xf32> -> vector<2x32x32xf32>
    "tpu.trace_stop"() : () -> ()
    %60 = vector.extract_strided_slice %21 {offsets = [0, 64], sizes = [64, 32], strides = [1, 1]} : vector<64x384xbf16> to vector<64x32xbf16>
    %61 = vector.shape_cast %60 : vector<64x32xbf16> to vector<2x32x32xbf16>
    %62 = vector.extract_strided_slice %21 {offsets = [0, 192], sizes = [64, 32], strides = [1, 1]} : vector<64x384xbf16> to vector<64x32xbf16>
    %63 = vector.shape_cast %62 : vector<64x32xbf16> to vector<2x32x32xbf16>
    %64 = vector.extract_strided_slice %21 {offsets = [0, 320], sizes = [64, 32], strides = [1, 1]} : vector<64x384xbf16> to vector<64x32xbf16>
    %65 = vector.shape_cast %64 : vector<64x32xbf16> to vector<2x32x32xbf16>
    "tpu.trace_start"() <{level = 10 : i32, message = "bqd,bkd->bqk"}> : () -> ()
    %cst_20 = arith.constant dense<0.000000e+00> : vector<2x32x32xf32>
    %66 = tpu.matmul %61, %63, %cst_20 {dimension_numbers = #tpu.dot_dimension_numbers<[2], [2], [1], [1], [0, 0, 0, 1, 1, 1], [0], [0]>} : vector<2x32x32xbf16>, vector<2x32x32xbf16>, vector<2x32x32xf32> -> vector<2x32x32xf32>
    "tpu.trace_stop"() : () -> ()
    %cst_21 = arith.constant dense<0xFF800000> : vector<2x32xf32>
    %67 = vector.multi_reduction <maximumf>, %66, %cst_21 [2] : vector<2x32x32xf32> to vector<2x32xf32>
    %68 = vector.shape_cast %67 : vector<2x32xf32> to vector<2x32x1xf32>
    %69 = vector.broadcast %68 : vector<2x32x1xf32> to vector<2x32x32xf32>
    %70 = arith.subf %66, %69 : vector<2x32x32xf32>
    %71 = math.exp %70 : vector<2x32x32xf32>
    %cst_22 = arith.constant dense<0.000000e+00> : vector<2x32xf32>
    %72 = vector.multi_reduction <add>, %71, %cst_22 [2] : vector<2x32x32xf32> to vector<2x32xf32>
    %73 = vector.shape_cast %72 : vector<2x32xf32> to vector<2x32x1xf32>
    %74 = tpu.reciprocal %73 {approx = true} : vector<2x32x1xf32> -> vector<2x32x1xf32>
    %75 = vector.broadcast %74 : vector<2x32x1xf32> to vector<2x32x32xf32>
    %76 = arith.mulf %71, %75 : vector<2x32x32xf32>
    %77 = arith.truncf %76 : vector<2x32x32xf32> to vector<2x32x32xbf16>
    "tpu.trace_start"() <{level = 10 : i32, message = "bqk,bkd->bqd"}> : () -> ()
    %cst_23 = arith.constant dense<0.000000e+00> : vector<2x32x32xf32>
    %78 = tpu.matmul %77, %65, %cst_23 {dimension_numbers = #tpu.dot_dimension_numbers<[2], [1], [1], [2], [0, 0, 0, 1, 1, 2], [0], [0]>} : vector<2x32x32xbf16>, vector<2x32x32xbf16>, vector<2x32x32xf32> -> vector<2x32x32xf32>
    "tpu.trace_stop"() : () -> ()
    %79 = vector.extract_strided_slice %21 {offsets = [0, 96], sizes = [64, 32], strides = [1, 1]} : vector<64x384xbf16> to vector<64x32xbf16>
    %80 = vector.shape_cast %79 : vector<64x32xbf16> to vector<2x32x32xbf16>
    %81 = vector.extract_strided_slice %21 {offsets = [0, 224], sizes = [64, 32], strides = [1, 1]} : vector<64x384xbf16> to vector<64x32xbf16>
    %82 = vector.shape_cast %81 : vector<64x32xbf16> to vector<2x32x32xbf16>
    %83 = vector.extract_strided_slice %21 {offsets = [0, 352], sizes = [64, 32], strides = [1, 1]} : vector<64x384xbf16> to vector<64x32xbf16>
    %84 = vector.shape_cast %83 : vector<64x32xbf16> to vector<2x32x32xbf16>
    "tpu.trace_start"() <{level = 10 : i32, message = "bqd,bkd->bqk"}> : () -> ()
    %cst_24 = arith.constant dense<0.000000e+00> : vector<2x32x32xf32>
    %85 = tpu.matmul %80, %82, %cst_24 {dimension_numbers = #tpu.dot_dimension_numbers<[2], [2], [1], [1], [0, 0, 0, 1, 1, 1], [0], [0]>} : vector<2x32x32xbf16>, vector<2x32x32xbf16>, vector<2x32x32xf32> -> vector<2x32x32xf32>
    "tpu.trace_stop"() : () -> ()
    %cst_25 = arith.constant dense<0xFF800000> : vector<2x32xf32>
    %86 = vector.multi_reduction <maximumf>, %85, %cst_25 [2] : vector<2x32x32xf32> to vector<2x32xf32>
    %87 = vector.shape_cast %86 : vector<2x32xf32> to vector<2x32x1xf32>
    %88 = vector.broadcast %87 : vector<2x32x1xf32> to vector<2x32x32xf32>
    %89 = arith.subf %85, %88 : vector<2x32x32xf32>
    %90 = math.exp %89 : vector<2x32x32xf32>
    %cst_26 = arith.constant dense<0.000000e+00> : vector<2x32xf32>
    %91 = vector.multi_reduction <add>, %90, %cst_26 [2] : vector<2x32x32xf32> to vector<2x32xf32>
    %92 = vector.shape_cast %91 : vector<2x32xf32> to vector<2x32x1xf32>
    %93 = tpu.reciprocal %92 {approx = true} : vector<2x32x1xf32> -> vector<2x32x1xf32>
    %94 = vector.broadcast %93 : vector<2x32x1xf32> to vector<2x32x32xf32>
    %95 = arith.mulf %90, %94 : vector<2x32x32xf32>
    %96 = arith.truncf %95 : vector<2x32x32xf32> to vector<2x32x32xbf16>
    "tpu.trace_start"() <{level = 10 : i32, message = "bqk,bkd->bqd"}> : () -> ()
    %cst_27 = arith.constant dense<0.000000e+00> : vector<2x32x32xf32>
    %97 = tpu.matmul %96, %84, %cst_27 {dimension_numbers = #tpu.dot_dimension_numbers<[2], [1], [1], [2], [0, 0, 0, 1, 1, 2], [0], [0]>} : vector<2x32x32xbf16>, vector<2x32x32xbf16>, vector<2x32x32xf32> -> vector<2x32x32xf32>
    "tpu.trace_stop"() : () -> ()
    %98 = tpu.concatenate %40, %59, %78, %97 in 2 : vector<2x32x32xf32>, vector<2x32x32xf32>, vector<2x32x32xf32>, vector<2x32x32xf32> -> vector<2x32x128xf32>
    %99 = vector.shape_cast %98 : vector<2x32x128xf32> to vector<64x128xf32>
    %100 = arith.truncf %99 : vector<64x128xf32> to vector<64x128xbf16>
    %c0_28 = arith.constant 0 : index
    %c0_29 = arith.constant 0 : index
    %101 = vector.load %arg6[%c0_28, %c0_29] : memref<128x128xbf16, #tpu.memory_space<vmem>>, vector<128x128xbf16>
    %cst_30 = arith.constant dense<0.000000e+00> : vector<64x128xf32>
    %102 = tpu.matmul %100, %101, %cst_30 {dimension_numbers = #tpu.dot_dimension_numbers<[1], [0], [0], [1], [0, 0, 1, 1], [], []>} : vector<64x128xbf16>, vector<128x128xbf16>, vector<64x128xf32> -> vector<64x128xf32>
    %c0_31 = arith.constant 0 : index
    %c0_32 = arith.constant 0 : index
    %103 = vector.load %arg7[%c0_31, %c0_32] : memref<1x128xf32, #tpu.memory_space<vmem>>, vector<1x128xf32>
    %104 = vector.broadcast %103 : vector<1x128xf32> to vector<64x128xf32>
    %105 = arith.addf %102, %104 : vector<64x128xf32>
    %106 = arith.addf %14, %105 : vector<64x128xf32>
    %c0_33 = arith.constant 0 : index
    %c0_34 = arith.constant 0 : index
    %107 = vector.load %arg8[%c0_33, %c0_34] : memref<1x128xf32, #tpu.memory_space<vmem>>, vector<1x128xf32>
    %c0_35 = arith.constant 0 : index
    %c0_36 = arith.constant 0 : index
    %108 = vector.load %arg9[%c0_35, %c0_36] : memref<1x128xf32, #tpu.memory_space<vmem>>, vector<1x128xf32>
    %cst_37 = arith.constant dense<0.000000e+00> : vector<64xf32>
    %109 = vector.multi_reduction <add>, %106, %cst_37 [1] : vector<64x128xf32> to vector<64xf32>
    %110 = vector.shape_cast %109 : vector<64xf32> to vector<64x1xf32>
    %cst_38 = arith.constant 1.280000e+02 : f32
    %111 = vector.broadcast %cst_38 : f32 to vector<64x1xf32>
    %112 = arith.divf %110, %111 : vector<64x1xf32>
    %113 = vector.broadcast %112 : vector<64x1xf32> to vector<64x128xf32>
    %114 = arith.subf %106, %113 : vector<64x128xf32>
    %115 = arith.mulf %114, %114 : vector<64x128xf32>
    %cst_39 = arith.constant dense<0.000000e+00> : vector<64xf32>
    %116 = vector.multi_reduction <add>, %115, %cst_39 [1] : vector<64x128xf32> to vector<64xf32>
    %117 = vector.shape_cast %116 : vector<64xf32> to vector<64x1xf32>
    %cst_40 = arith.constant 1.280000e+02 : f32
    %118 = vector.broadcast %cst_40 : f32 to vector<64x1xf32>
    %119 = arith.divf %117, %118 : vector<64x1xf32>
    %cst_41 = arith.constant 9.99999974E-6 : f32
    %120 = vector.broadcast %cst_41 : f32 to vector<64x1xf32>
    %121 = arith.addf %119, %120 : vector<64x1xf32>
    %122 = math.rsqrt %121 : vector<64x1xf32>
    %123 = vector.broadcast %112 : vector<64x1xf32> to vector<64x128xf32>
    %124 = arith.subf %106, %123 : vector<64x128xf32>
    %125 = vector.broadcast %122 : vector<64x1xf32> to vector<64x128xf32>
    %126 = arith.mulf %124, %125 : vector<64x128xf32>
    %127 = vector.broadcast %107 : vector<1x128xf32> to vector<64x128xf32>
    %128 = arith.mulf %126, %127 : vector<64x128xf32>
    %129 = vector.broadcast %108 : vector<1x128xf32> to vector<64x128xf32>
    %130 = arith.addf %128, %129 : vector<64x128xf32>
    %131 = arith.truncf %130 : vector<64x128xf32> to vector<64x128xbf16>
    %c0_42 = arith.constant 0 : index
    %c0_43 = arith.constant 0 : index
    %132 = vector.load %arg10[%c0_42, %c0_43] : memref<128x512xbf16, #tpu.memory_space<vmem>>, vector<128x512xbf16>
    %cst_44 = arith.constant dense<0.000000e+00> : vector<64x512xf32>
    %133 = tpu.matmul %131, %132, %cst_44 {dimension_numbers = #tpu.dot_dimension_numbers<[1], [0], [0], [1], [0, 0, 1, 1], [], []>} : vector<64x128xbf16>, vector<128x512xbf16>, vector<64x512xf32> -> vector<64x512xf32>
    %c0_45 = arith.constant 0 : index
    %c0_46 = arith.constant 0 : index
    %134 = vector.load %arg11[%c0_45, %c0_46] : memref<1x512xf32, #tpu.memory_space<vmem>>, vector<1x512xf32>
    %135 = vector.broadcast %134 : vector<1x512xf32> to vector<64x512xf32>
    %136 = arith.addf %133, %135 : vector<64x512xf32>
    %cst_47 = arith.constant 0.000000e+00 : f32
    %137 = vector.broadcast %cst_47 : f32 to vector<64x512xf32>
    %138 = arith.maximumf %136, %137 : vector<64x512xf32>
    %139 = arith.truncf %138 : vector<64x512xf32> to vector<64x512xbf16>
    %c0_48 = arith.constant 0 : index
    %c0_49 = arith.constant 0 : index
    %140 = vector.load %arg12[%c0_48, %c0_49] : memref<512x128xbf16, #tpu.memory_space<vmem>>, vector<512x128xbf16>
    %cst_50 = arith.constant dense<0.000000e+00> : vector<64x128xf32>
    %141 = tpu.matmul %139, %140, %cst_50 {dimension_numbers = #tpu.dot_dimension_numbers<[1], [0], [0], [1], [0, 0, 1, 1], [], []>} : vector<64x512xbf16>, vector<512x128xbf16>, vector<64x128xf32> -> vector<64x128xf32>
    %c0_51 = arith.constant 0 : index
    %c0_52 = arith.constant 0 : index
    %142 = vector.load %arg13[%c0_51, %c0_52] : memref<1x128xf32, #tpu.memory_space<vmem>>, vector<1x128xf32>
    %143 = vector.broadcast %142 : vector<1x128xf32> to vector<64x128xf32>
    %144 = arith.addf %141, %143 : vector<64x128xf32>
    %145 = arith.addf %130, %144 : vector<64x128xf32>
    %c0_53 = arith.constant 0 : index
    %c0_54 = arith.constant 0 : index
    %146 = vector.load %arg14[%c0_53, %c0_54] : memref<1x128xf32, #tpu.memory_space<vmem>>, vector<1x128xf32>
    %c0_55 = arith.constant 0 : index
    %c0_56 = arith.constant 0 : index
    %147 = vector.load %arg15[%c0_55, %c0_56] : memref<1x128xf32, #tpu.memory_space<vmem>>, vector<1x128xf32>
    %cst_57 = arith.constant dense<0.000000e+00> : vector<64xf32>
    %148 = vector.multi_reduction <add>, %145, %cst_57 [1] : vector<64x128xf32> to vector<64xf32>
    %149 = vector.shape_cast %148 : vector<64xf32> to vector<64x1xf32>
    %cst_58 = arith.constant 1.280000e+02 : f32
    %150 = vector.broadcast %cst_58 : f32 to vector<64x1xf32>
    %151 = arith.divf %149, %150 : vector<64x1xf32>
    %152 = vector.broadcast %151 : vector<64x1xf32> to vector<64x128xf32>
    %153 = arith.subf %145, %152 : vector<64x128xf32>
    %154 = arith.mulf %153, %153 : vector<64x128xf32>
    %cst_59 = arith.constant dense<0.000000e+00> : vector<64xf32>
    %155 = vector.multi_reduction <add>, %154, %cst_59 [1] : vector<64x128xf32> to vector<64xf32>
    %156 = vector.shape_cast %155 : vector<64xf32> to vector<64x1xf32>
    %cst_60 = arith.constant 1.280000e+02 : f32
    %157 = vector.broadcast %cst_60 : f32 to vector<64x1xf32>
    %158 = arith.divf %156, %157 : vector<64x1xf32>
    %cst_61 = arith.constant 9.99999974E-6 : f32
    %159 = vector.broadcast %cst_61 : f32 to vector<64x1xf32>
    %160 = arith.addf %158, %159 : vector<64x1xf32>
    %161 = math.rsqrt %160 : vector<64x1xf32>
    %162 = vector.broadcast %151 : vector<64x1xf32> to vector<64x128xf32>
    %163 = arith.subf %145, %162 : vector<64x128xf32>
    %164 = vector.broadcast %161 : vector<64x1xf32> to vector<64x128xf32>
    %165 = arith.mulf %163, %164 : vector<64x128xf32>
    %166 = vector.broadcast %146 : vector<1x128xf32> to vector<64x128xf32>
    %167 = arith.mulf %165, %166 : vector<64x128xf32>
    %168 = vector.broadcast %147 : vector<1x128xf32> to vector<64x128xf32>
    %169 = arith.addf %167, %168 : vector<64x128xf32>
    %170 = arith.truncf %169 : vector<64x128xf32> to vector<64x128xbf16>
    %c0_62 = arith.constant 0 : index
    %c0_63 = arith.constant 0 : index
    %171 = vector.load %arg16[%c0_62, %c0_63] : memref<128x256xbf16, #tpu.memory_space<vmem>>, vector<128x256xbf16>
    %cst_64 = arith.constant dense<0.000000e+00> : vector<64x256xf32>
    %172 = tpu.matmul %170, %171, %cst_64 {dimension_numbers = #tpu.dot_dimension_numbers<[1], [0], [0], [1], [0, 0, 1, 1], [], []>} : vector<64x128xbf16>, vector<128x256xbf16>, vector<64x256xf32> -> vector<64x256xf32>
    %c0_65 = arith.constant 0 : index
    %c0_66 = arith.constant 0 : index
    %173 = vector.load %arg17[%c0_65, %c0_66] : memref<1x256xf32, #tpu.memory_space<vmem>>, vector<1x256xf32>
    %174 = vector.broadcast %173 : vector<1x256xf32> to vector<64x256xf32>
    %175 = arith.addf %172, %174 : vector<64x256xf32>
    %176 = vector.shape_cast %175 : vector<64x256xf32> to vector<2x32x256xf32>
    %c0_67 = arith.constant 0 : index
    %c0_68 = arith.constant 0 : index
    %c0_69 = arith.constant 0 : index
    %177 = vector.load %arg18[%c0_67, %c0_68, %c0_69] : memref<2x32x256xf32, #tpu.memory_space<vmem>>, vector<2x32x256xf32>
    tpu.vector_store %arg18[%c0_67, %c0_68, %c0_69], %176 {strides = array<i32>} : memref<2x32x256xf32, #tpu.memory_space<vmem>>, vector<2x32x256xf32>,
    return
  }
  func.func @transform_0(%arg0: i32) -> (i32, i32, i32) {
    %c0_i32 = arith.constant 0 : i32
    %c0_i32_0 = arith.constant 0 : i32
    %c0_i32_1 = arith.constant 0 : i32
    return %arg0, %c0_i32, %c0_i32_0 : i32, i32, i32
  }
  func.func @transform_1(%arg0: i32) -> (i32, i32) {
    %c0_i32 = arith.constant 0 : i32
    %c0_i32_0 = arith.constant 0 : i32
    %c0_i32_1 = arith.constant 0 : i32
    return %c0_i32, %c0_i32_0 : i32, i32
  }
  func.func @transform_2(%arg0: i32) -> (i32, i32, i32) {
    %c0_i32 = arith.constant 0 : i32
    %c0_i32_0 = arith.constant 0 : i32
    %c0_i32_1 = arith.constant 0 : i32
    %c0_i32_2 = arith.constant 0 : i32
    return %c0_i32, %c0_i32_0, %c0_i32_1 : i32, i32, i32
  }
  func.func @transform_3(%arg0: i32) -> (i32, i32) {
    %c0_i32 = arith.constant 0 : i32
    %c0_i32_0 = arith.constant 0 : i32
    %c0_i32_1 = arith.constant 0 : i32
    return %c0_i32, %c0_i32_0 : i32, i32
  }
  func.func @transform_4(%arg0: i32) -> (i32, i32) {
    %c0_i32 = arith.constant 0 : i32
    %c0_i32_0 = arith.constant 0 : i32
    %c0_i32_1 = arith.constant 0 : i32
    return %c0_i32, %c0_i32_0 : i32, i32
  }
  func.func @transform_5(%arg0: i32) -> (i32, i32) {
    %c0_i32 = arith.constant 0 : i32
    %c0_i32_0 = arith.constant 0 : i32
    %c0_i32_1 = arith.constant 0 : i32
    return %c0_i32, %c0_i32_0 : i32, i32
  }
  func.func @transform_6(%arg0: i32) -> (i32, i32) {
    %c0_i32 = arith.constant 0 : i32
    %c0_i32_0 = arith.constant 0 : i32
    %c0_i32_1 = arith.constant 0 : i32
    return %c0_i32, %c0_i32_0 : i32, i32
  }
  func.func @transform_7(%arg0: i32) -> (i32, i32) {
    %c0_i32 = arith.constant 0 : i32
    %c0_i32_0 = arith.constant 0 : i32
    %c0_i32_1 = arith.constant 0 : i32
    return %c0_i32, %c0_i32_0 : i32, i32
  }
  func.func @transform_8(%arg0: i32) -> (i32, i32) {
    %c0_i32 = arith.constant 0 : i32
    %c0_i32_0 = arith.constant 0 : i32
    %c0_i32_1 = arith.constant 0 : i32
    return %c0_i32, %c0_i32_0 : i32, i32
  }
  func.func @transform_9(%arg0: i32) -> (i32, i32) {
    %c0_i32 = arith.constant 0 : i32
    %c0_i32_0 = arith.constant 0 : i32
    %c0_i32_1 = arith.constant 0 : i32
    return %c0_i32, %c0_i32_0 : i32, i32
  }
  func.func @transform_10(%arg0: i32) -> (i32, i32) {
    %c0_i32 = arith.constant 0 : i32
    %c0_i32_0 = arith.constant 0 : i32
    %c0_i32_1 = arith.constant 0 : i32
    return %c0_i32, %c0_i32_0 : i32, i32
  }
  func.func @transform_11(%arg0: i32) -> (i32, i32) {
    %c0_i32 = arith.constant 0 : i32
    %c0_i32_0 = arith.constant 0 : i32
    %c0_i32_1 = arith.constant 0 : i32
    return %c0_i32, %c0_i32_0 : i32, i32
  }
  func.func @transform_12(%arg0: i32) -> (i32, i32) {
    %c0_i32 = arith.constant 0 : i32
    %c0_i32_0 = arith.constant 0 : i32
    %c0_i32_1 = arith.constant 0 : i32
    return %c0_i32, %c0_i32_0 : i32, i32
  }
  func.func @transform_13(%arg0: i32) -> (i32, i32) {
    %c0_i32 = arith.constant 0 : i32
    %c0_i32_0 = arith.constant 0 : i32
    %c0_i32_1 = arith.constant 0 : i32
    return %c0_i32, %c0_i32_0 : i32, i32
  }
  func.func @transform_14(%arg0: i32) -> (i32, i32) {
    %c0_i32 = arith.constant 0 : i32
    %c0_i32_0 = arith.constant 0 : i32
    %c0_i32_1 = arith.constant 0 : i32
    return %c0_i32, %c0_i32_0 : i32, i32
  }
  func.func @transform_15(%arg0: i32) -> (i32, i32) {
    %c0_i32 = arith.constant 0 : i32
    %c0_i32_0 = arith.constant 0 : i32
    %c0_i32_1 = arith.constant 0 : i32
    return %c0_i32, %c0_i32_0 : i32, i32
  }
  func.func @transform_16(%arg0: i32) -> (i32, i32) {
    %c0_i32 = arith.constant 0 : i32
    %c0_i32_0 = arith.constant 0 : i32
    %c0_i32_1 = arith.constant 0 : i32
    return %c0_i32, %c0_i32_0 : i32, i32
  }
  func.func @transform_17(%arg0: i32) -> (i32, i32, i32) {
    %c0_i32 = arith.constant 0 : i32
    %c0_i32_0 = arith.constant 0 : i32
    %c0_i32_1 = arith.constant 0 : i32
    return %arg0, %c0_i32, %c0_i32_0 : i32, i32, i32
  }
}

</mosaic_0001>

<llo_original>
// kernel: tiny_transformer.1
$region0: #{tiny_transformer.1}
  #allocation0 [shape = 'u32[]', space=smem, size = 0x4, offset = 0x4, fixed_abs, tag = 'smem constant byte address 0x4 - core index']
  #allocation1 [shape = 'u32[72,128]{1,0:T(1,128)}', space=vmem, size = 0x9000, scoped, tag = 'internal scratch']
  %s0 = inlined_call_operand.vmem [shape: s32[2,32,1], index: 0, kind: input, shape index: {}]
  %s1 = inlined_call_operand.vmem [shape: bf16[256,128], index: 1, kind: input, shape index: {}]
  %s2 = inlined_call_operand.vmem [shape: f32[1,32,128], index: 2, kind: input, shape index: {}]
  %s3 = inlined_call_operand.vmem [shape: bf16[128,384], index: 3, kind: input, shape index: {}]
  %s4 = inlined_call_operand.vmem [shape: f32[1,384], index: 4, kind: input, shape index: {}]
  %s5 = inlined_call_operand.vmem [shape: bf16[128,128], index: 5, kind: input, shape index: {}]
  %s6 = inlined_call_operand.vmem [shape: f32[1,128], index: 6, kind: input, shape index: {}]
  %s7 = inlined_call_operand.vmem [shape: f32[1,128], index: 7, kind: input, shape index: {}]
  %s8 = inlined_call_operand.vmem [shape: f32[1,128], index: 8, kind: input, shape index: {}]
  %s9 = inlined_call_operand.vmem [shape: bf16[128,512], index: 9, kind: input, shape index: {}]
  %s10 = inlined_call_operand.vmem [shape: f32[1,512], index: 10, kind: input, shape index: {}]
  %s11 = inlined_call_operand.vmem [shape: bf16[512,128], index: 11, kind: input, shape index: {}]
  %s12 = inlined_call_operand.vmem [shape: f32[1,128], index: 12, kind: input, shape index: {}]
  %s13 = inlined_call_operand.vmem [shape: f32[1,128], index: 13, kind: input, shape index: {}]
  %s14 = inlined_call_operand.vmem [shape: f32[1,128], index: 14, kind: input, shape index: {}]
  %s15 = inlined_call_operand.vmem [shape: bf16[128,256], index: 15, kind: input, shape index: {}]
  %s16 = inlined_call_operand.vmem [shape: f32[1,256], index: 16, kind: input, shape index: {}]
  %s17 = inlined_call_operand.hbm [shape: f32[2,32,256], index: 17, kind: output, shape index: {}]
  %s18 = sld [smem:[#allocation0]]
  $region78: #{tiny_transformer.1} parent=0
    _
  %s20 = ssub.s32 1, %s18
  %s21 = scalar_select 0, %s20, %s18
  $region1: #{tiny_transformer.1} parent=0
    #allocation2 [shape = 'u8[65536]{0}', space=vmem, size = 0x10000, scoped, tag = 'output window, operand 0, single buffered']
    #allocation3 [shape = 's32[1]{0}', space=sflag, size = 0x4, scoped, tag = 'scoped memory for tiny_transformer.1']
    %22 = vsyncpa [#allocation3], 0
    // Predicated region
    $region2: #{tiny_transformer.1} parent=1 // pred_check
      _
    $region3: #{tiny_transformer.1} parent=1 // pred_check_branch
      %24 = sbr.rel (0) target = $region5
    $region4: #{tiny_transformer.1} parent=1 // pred_region
      _
    $region5: #{tiny_transformer.1} parent=1 // pred_fallthru
      _
    // Predicated region
    $region6: #{tiny_transformer.1} parent=1 // pred_check
      _
    $region7: #{tiny_transformer.1} parent=1 // pred_check_branch
      %26 = sbr.rel (0) target = $region9
    $region8: #{tiny_transformer.1} parent=1 // pred_region
      _
    $region9: #{tiny_transformer.1} parent=1 // pred_fallthru
      _
    // Predicated region
    $region10: #{tiny_transformer.1} parent=1 // pred_check
      _
    $region11: #{tiny_transformer.1} parent=1 // pred_check_branch
      %28 = sbr.rel (0) target = $region13
    $region12: #{tiny_transformer.1} parent=1 // pred_region
      _
    $region13: #{tiny_transformer.1} parent=1 // pred_fallthru
      _
    // Predicated region
    $region14: #{tiny_transformer.1} parent=1 // pred_check
      _
    $region15: #{tiny_transformer.1} parent=1 // pred_check_branch
      %30 = sbr.rel (0) target = $region17
    $region16: #{tiny_transformer.1} parent=1 // pred_region
      _
    $region17: #{tiny_transformer.1} parent=1 // pred_fallthru
      _
    // Predicated region
    $region18: #{tiny_transformer.1} parent=1 // pred_check
      _
    $region19: #{tiny_transformer.1} parent=1 // pred_check_branch
      %32 = sbr.rel (0) target = $region21
    $region20: #{tiny_transformer.1} parent=1 // pred_region
      _
    $region21: #{tiny_transformer.1} parent=1 // pred_fallthru
      _
    // Predicated region
    $region22: #{tiny_transformer.1} parent=1 // pred_check
      _
    $region23: #{tiny_transformer.1} parent=1 // pred_check_branch
      %34 = sbr.rel (0) target = $region25
    $region24: #{tiny_transformer.1} parent=1 // pred_region
      _
    $region25: #{tiny_transformer.1} parent=1 // pred_fallthru
      _
    // Predicated region
    $region26: #{tiny_transformer.1} parent=1 // pred_check
      _
    $region27: #{tiny_transformer.1} parent=1 // pred_check_branch
      %36 = sbr.rel (0) target = $region29
    $region28: #{tiny_transformer.1} parent=1 // pred_region
      _
    $region29: #{tiny_transformer.1} parent=1 // pred_fallthru
      _
    // Predicated region
    $region30: #{tiny_transformer.1} parent=1 // pred_check
      _
    $region31: #{tiny_transformer.1} parent=1 // pred_check_branch
      %38 = sbr.rel (0) target = $region33
    $region32: #{tiny_transformer.1} parent=1 // pred_region
      _
    $region33: #{tiny_transformer.1} parent=1 // pred_fallthru
      _
    // Predicated region
    $region34: #{tiny_transformer.1} parent=1 // pred_check
      _
    $region35: #{tiny_transformer.1} parent=1 // pred_check_branch
      %40 = sbr.rel (0) target = $region37
    $region36: #{tiny_transformer.1} parent=1 // pred_region
      _
    $region37: #{tiny_transformer.1} parent=1 // pred_fallthru
      _
    // Predicated region
    $region38: #{tiny_transformer.1} parent=1 // pred_check
      _
    $region39: #{tiny_transformer.1} parent=1 // pred_check_branch
      %42 = sbr.rel (0) target = $region41
    $region40: #{tiny_transformer.1} parent=1 // pred_region
      _
    $region41: #{tiny_transformer.1} parent=1 // pred_fallthru
      _
    // Predicated region
    $region42: #{tiny_transformer.1} parent=1 // pred_check
      _
    $region43: #{tiny_transformer.1} parent=1 // pred_check_branch
      %44 = sbr.rel (0) target = $region45
    $region44: #{tiny_transformer.1} parent=1 // pred_region
      _
    $region45: #{tiny_transformer.1} parent=1 // pred_fallthru
      _
    // Predicated region
    $region46: #{tiny_transformer.1} parent=1 // pred_check
      _
    $region47: #{tiny_transformer.1} parent=1 // pred_check_branch
      %46 = sbr.rel (0) target = $region49
    $region48: #{tiny_transformer.1} parent=1 // pred_region
      _
    $region49: #{tiny_transformer.1} parent=1 // pred_fallthru
      _
    // Predicated region
    $region50: #{tiny_transformer.1} parent=1 // pred_check
      _
    $region51: #{tiny_transformer.1} parent=1 // pred_check_branch
      %48 = sbr.rel (0) target = $region53
    $region52: #{tiny_transformer.1} parent=1 // pred_region
      _
    $region53: #{tiny_transformer.1} parent=1 // pred_fallthru
      _
    // Predicated region
    $region54: #{tiny_transformer.1} parent=1 // pred_check
      _
    $region55: #{tiny_transformer.1} parent=1 // pred_check_branch
      %50 = sbr.rel (0) target = $region57
    $region56: #{tiny_transformer.1} parent=1 // pred_region
      _
    $region57: #{tiny_transformer.1} parent=1 // pred_fallthru
      _
    // Predicated region
    $region58: #{tiny_transformer.1} parent=1 // pred_check
      _
    $region59: #{tiny_transformer.1} parent=1 // pred_check_branch
      %52 = sbr.rel (0) target = $region61
    $region60: #{tiny_transformer.1} parent=1 // pred_region
      _
    $region61: #{tiny_transformer.1} parent=1 // pred_fallthru
      _
    // Predicated region
    $region62: #{tiny_transformer.1} parent=1 // pred_check
      _
    $region63: #{tiny_transformer.1} parent=1 // pred_check_branch
      %54 = sbr.rel (0) target = $region65
    $region64: #{tiny_transformer.1} parent=1 // pred_region
      _
    $region65: #{tiny_transformer.1} parent=1 // pred_fallthru
      _
    // Predicated region
    $region66: #{tiny_transformer.1} parent=1 // pred_check
      _
    $region67: #{tiny_transformer.1} parent=1 // pred_check_branch
      %56 = sbr.rel (0) target = $region69
    $region68: #{tiny_transformer.1} parent=1 // pred_region
      _
    $region69: #{tiny_transformer.1} parent=1 // pred_fallthru
      _
    %v58 = vld [vmem:[%s0] sm:$0xff]
    %v59 = vld [vmem:[%s0 + $0x8] sm:$0xff]
    %v60 = vld [vmem:[%s0 + $0x10] sm:$0xff]
    %v61 = vld [vmem:[%s0 + $0x18] sm:$0xff]
    %v62 = vld [vmem:[%s0 + $0x20] sm:$0xff]
    %v63 = vld [vmem:[%s0 + $0x28] sm:$0xff]
    %v64 = vld [vmem:[%s0 + $0x30] sm:$0xff]
    %v65 = vld [vmem:[%s0 + $0x38] sm:$0xff]
    %v66 = vlaneseq
    %v67 = vand.u32 %v66, 127
    %v68 = vadd.s32 %v67, 128
    %69 = vset.pattern.permute.xlu0 0
    %70 = vperm.xlu0 %69, %v58
    %v71 = vpop.permute.xlu0 %70
    %72 = vset.pattern.permute.xlu0 0
    %73 = vperm.xlu0 %72, %v59
    %v74 = vpop.permute.xlu0 %73
    %75 = vset.pattern.permute.xlu0 0
    %76 = vperm.xlu0 %75, %v60
    %v77 = vpop.permute.xlu0 %76
    %78 = vset.pattern.permute.xlu0 0
    %79 = vperm.xlu0 %78, %v61
    %v80 = vpop.permute.xlu0 %79
    %81 = vset.pattern.permute.xlu0 0
    %82 = vperm.xlu0 %81, %v62
    %v83 = vpop.permute.xlu0 %82
    %84 = vset.pattern.permute.xlu0 0
    %85 = vperm.xlu0 %84, %v63
    %v86 = vpop.permute.xlu0 %85
    %87 = vset.pattern.permute.xlu0 0
    %88 = vperm.xlu0 %87, %v64
    %v89 = vpop.permute.xlu0 %88
    %90 = vset.pattern.permute.xlu0 0
    %91 = vperm.xlu0 %90, %v65
    %v92 = vpop.permute.xlu0 %91
    %vm93 = vcmp.eq.s32.totalorder %v67, %v71
    %vm94 = vcmp.eq.s32.totalorder %v68, %v71
    %vm95 = vcmp.eq.s32.totalorder %v67, %v74
    %vm96 = vcmp.eq.s32.totalorder %v68, %v74
    %vm97 = vcmp.eq.s32.totalorder %v67, %v77
    %vm98 = vcmp.eq.s32.totalorder %v68, %v77
    %vm99 = vcmp.eq.s32.totalorder %v67, %v80
    %vm100 = vcmp.eq.s32.totalorder %v68, %v80
    %vm101 = vcmp.eq.s32.totalorder %v67, %v83
    %vm102 = vcmp.eq.s32.totalorder %v68, %v83
    %vm103 = vcmp.eq.s32.totalorder %v67, %v86
    %vm104 = vcmp.eq.s32.totalorder %v68, %v86
    %vm105 = vcmp.eq.s32.totalorder %v67, %v89
    %vm106 = vcmp.eq.s32.totalorder %v68, %v89
    %vm107 = vcmp.eq.s32.totalorder %v67, %v92
    %vm108 = vcmp.eq.s32.totalorder %v68, %v92
    %v109 = vsel %vm93, 1, 0
    %v110 = vsel %vm94, 1, 0
    %v111 = vsel %vm95, 1, 0
    %v112 = vsel %vm96, 1, 0
    %v113 = vsel %vm97, 1, 0
    %v114 = vsel %vm98, 1, 0
    %v115 = vsel %vm99, 1, 0
    %v116 = vsel %vm100, 1, 0
    %v117 = vsel %vm101, 1, 0
    %v118 = vsel %vm102, 1, 0
    %v119 = vsel %vm103, 1, 0
    %v120 = vsel %vm104, 1, 0
    %v121 = vsel %vm105, 1, 0
    %v122 = vsel %vm106, 1, 0
    %v123 = vsel %vm107, 1, 0
    %v124 = vsel %vm108, 1, 0
    %v125 = vcvt.s32.f32 %v109
    %v126 = vcvt.s32.f32 %v110
    %v127 = vcvt.s32.f32 %v111
    %v128 = vcvt.s32.f32 %v112
    %v129 = vcvt.s32.f32 %v113
    %v130 = vcvt.s32.f32 %v114
    %v131 = vcvt.s32.f32 %v115
    %v132 = vcvt.s32.f32 %v116
    %v133 = vcvt.s32.f32 %v117
    %v134 = vcvt.s32.f32 %v118
    %v135 = vcvt.s32.f32 %v119
    %v136 = vcvt.s32.f32 %v120
    %v137 = vcvt.s32.f32 %v121
    %v138 = vcvt.s32.f32 %v122
    %v139 = vcvt.s32.f32 %v123
    %v140 = vcvt.s32.f32 %v124
    %v141 = vpack.c.bf16 %v126, %v125
    %v142 = vpack.c.bf16 %v128, %v127
    %v143 = vpack.c.bf16 %v130, %v129
    %v144 = vpack.c.bf16 %v132, %v131
    %v145 = vpack.c.bf16 %v134, %v133
    %v146 = vpack.c.bf16 %v136, %v135
    %v147 = vpack.c.bf16 %v138, %v137
    %v148 = vpack.c.bf16 %v140, %v139
    %v149 = vld [vmem:[%s1] sm:$0xf]
    %v150 = vld [vmem:[%s1 + $0x4] sm:$0xf]
    %v151 = vld [vmem:[%s1 + $0x8] sm:$0xf]
    %v152 = vld [vmem:[%s1 + $0xc] sm:$0xf]
    %v153 = vld [vmem:[%s1 + $0x10] sm:$0xf]
    %v154 = vld [vmem:[%s1 + $0x14] sm:$0xf]
    %v155 = vld [vmem:[%s1 + $0x18] sm:$0xf]
    %v156 = vld [vmem:[%s1 + $0x1c] sm:$0xf]
    %v157 = vld [vmem:[%s1 + $0x20] sm:$0xf]
    %v158 = vld [vmem:[%s1 + $0x24] sm:$0xf]
    %v159 = vld [vmem:[%s1 + $0x28] sm:$0xf]
    %v160 = vld [vmem:[%s1 + $0x2c] sm:$0xf]
    %v161 = vld [vmem:[%s1 + $0x30] sm:$0xf]
    %v162 = vld [vmem:[%s1 + $0x34] sm:$0xf]
    %v163 = vld [vmem:[%s1 + $0x38] sm:$0xf]
    %v164 = vld [vmem:[%s1 + $0x3c] sm:$0xf]
    %v165 = vld [vmem:[%s1 + $0x40] sm:$0xf]
    %v166 = vld [vmem:[%s1 + $0x44] sm:$0xf]
    %v167 = vld [vmem:[%s1 + $0x48] sm:$0xf]
    %v168 = vld [vmem:[%s1 + $0x4c] sm:$0xf]
    %v169 = vld [vmem:[%s1 + $0x50] sm:$0xf]
    %v170 = vld [vmem:[%s1 + $0x54] sm:$0xf]
    %v171 = vld [vmem:[%s1 + $0x58] sm:$0xf]
    %v172 = vld [vmem:[%s1 + $0x5c] sm:$0xf]
    %v173 = vld [vmem:[%s1 + $0x60] sm:$0xf]
    %v174 = vld [vmem:[%s1 + $0x64] sm:$0xf]
    %v175 = vld [vmem:[%s1 + $0x68] sm:$0xf]
    %v176 = vld [vmem:[%s1 + $0x6c] sm:$0xf]
    %v177 = vld [vmem:[%s1 + $0x70] sm:$0xf]
    %v178 = vld [vmem:[%s1 + $0x74] sm:$0xf]
    %v179 = vld [vmem:[%s1 + $0x78] sm:$0xf]
    %v180 = vld [vmem:[%s1 + $0x7c] sm:$0xf]
    %v189 = vunpack.c.l.b16 %v141
    %v190 = vunpack.c.h.b16 %v141
    %v191 = vunpack.c.l.b16 %v142
    %v192 = vunpack.c.h.b16 %v142
    %v193 = vunpack.c.l.b16 %v143
    %v194 = vunpack.c.h.b16 %v143
    %v195 = vunpack.c.l.b16 %v144
    %v196 = vunpack.c.h.b16 %v144
    %v197 = vunpack.c.l.b16 %v145
    %v198 = vunpack.c.h.b16 %v145
    %v199 = vunpack.c.l.b16 %v146
    %v200 = vunpack.c.h.b16 %v146
    %v201 = vunpack.c.l.b16 %v147
    %v202 = vunpack.c.h.b16 %v147
    %v203 = vunpack.c.l.b16 %v148
    %v204 = vunpack.c.h.b16 %v148
    %v205 = vpack.c.b16 %v191, %v189
    %v206 = vpack.c.b16 %v192, %v190
    %v207 = vpack.c.b16 %v195, %v193
    %v208 = vpack.c.b16 %v196, %v194
    %v209 = vpack.c.b16 %v199, %v197
    %v210 = vpack.c.b16 %v200, %v198
    %v211 = vpack.c.b16 %v203, %v201
    %v212 = vpack.c.b16 %v204, %v202
    %v253 = vunpack.c.l.b16 %v149
    %v254 = vunpack.c.l.b16 %v150
    %v255 = vunpack.c.l.b16 %v151
    %v256 = vunpack.c.l.b16 %v152
    %v257 = vunpack.c.l.b16 %v153
    %v258 = vunpack.c.l.b16 %v154
    %v259 = vunpack.c.l.b16 %v155
    %v260 = vunpack.c.l.b16 %v156
    %v261 = vunpack.c.l.b16 %v157
    %v262 = vunpack.c.l.b16 %v158
    %v263 = vunpack.c.l.b16 %v159
    %v264 = vunpack.c.l.b16 %v160
    %v265 = vunpack.c.l.b16 %v161
    %v266 = vunpack.c.l.b16 %v162
    %v267 = vunpack.c.l.b16 %v163
    %v268 = vunpack.c.l.b16 %v164
    %v269 = vunpack.c.l.b16 %v165
    %v270 = vunpack.c.l.b16 %v166
    %v271 = vunpack.c.l.b16 %v167
    %v272 = vunpack.c.l.b16 %v168
    %v273 = vunpack.c.l.b16 %v169
    %v274 = vunpack.c.l.b16 %v170
    %v275 = vunpack.c.l.b16 %v171
    %v276 = vunpack.c.l.b16 %v172
    %v277 = vunpack.c.l.b16 %v173
    %v278 = vunpack.c.l.b16 %v174
    %v279 = vunpack.c.l.b16 %v175
    %v280 = vunpack.c.l.b16 %v176
    %v281 = vunpack.c.l.b16 %v177
    %v282 = vunpack.c.l.b16 %v178
    %v283 = vunpack.c.l.b16 %v179
    %v284 = vunpack.c.l.b16 %v180
    %v285 = vpack.c.b16 %v254, %v253
    %v286 = vpack.c.b16 %v256, %v255
    %v287 = vpack.c.b16 %v258, %v257
    %v288 = vpack.c.b16 %v260, %v259
    %v289 = vpack.c.b16 %v262, %v261
    %v290 = vpack.c.b16 %v264, %v263
    %v291 = vpack.c.b16 %v266, %v265
    %v292 = vpack.c.b16 %v268, %v267
    %v293 = vpack.c.b16 %v270, %v269
    %v294 = vpack.c.b16 %v272, %v271
    %v295 = vpack.c.b16 %v274, %v273
    %v296 = vpack.c.b16 %v276, %v275
    %v297 = vpack.c.b16 %v278, %v277
    %v298 = vpack.c.b16 %v280, %v279
    %v299 = vpack.c.b16 %v282, %v281
    %v300 = vpack.c.b16 %v284, %v283
    %317 = vmatpush.bf16.msra.mxu0 %v292
    %318 = vmatpush.bf16.msra.mxu0 %v291
    %319 = vmatpush.bf16.msra.mxu0 %v290
    %320 = vmatpush.bf16.msra.mxu0 %v289
    %321 = vmatpush.bf16.msra.mxu0 %v288
    %322 = vmatpush.bf16.msra.mxu0 %v287
    %323 = vmatpush.bf16.msra.mxu0 %v286
    %324 = vmatpush.bf16.msra.mxu0 %v285
    %325 = vmatmul.bf16.gmra.mxu0 %v205
    %v326 = vpop.f32.mrf.mxu0
    %v327 = vadd.f32 0.0, %v326
    %v328 = vpop.f32.mrf.mxu0
    %v329 = vadd.f32 0.0, %v328
    %330 = vmatmul.bf16.gmra.mxu0 %v207
    %v331 = vpop.f32.mrf.mxu0
    %v332 = vadd.f32 0.0, %v331
    %v333 = vpop.f32.mrf.mxu0
    %v334 = vadd.f32 0.0, %v333
    %335 = vmatmul.bf16.gmra.mxu0 %v209
    %v336 = vpop.f32.mrf.mxu0
    %v337 = vadd.f32 0.0, %v336
    %v338 = vpop.f32.mrf.mxu0
    %v339 = vadd.f32 0.0, %v338
    %340 = vmatmul.bf16.gmra.mxu0 %v211
    %v341 = vpop.f32.mrf.mxu0
    %v342 = vadd.f32 0.0, %v341
    %v343 = vpop.f32.mrf.mxu0
    %v344 = vadd.f32 0.0, %v343
    %345 = vdwg.mxu0
    %346 = vmatpush.bf16.msra.mxu0 %v300
    %347 = vmatpush.bf16.msra.mxu0 %v299
    %348 = vmatpush.bf16.msra.mxu0 %v298
    %349 = vmatpush.bf16.msra.mxu0 %v297
    %350 = vmatpush.bf16.msra.mxu0 %v296
    %351 = vmatpush.bf16.msra.mxu0 %v295
    %352 = vmatpush.bf16.msra.mxu0 %v294
    %353 = vmatpush.bf16.msra.mxu0 %v293
    %354 = vmatmul.bf16.gmra.mxu0 %v206
    %v355 = vpop.f32.mrf.mxu0
    %v356 = vadd.f32 %v327, %v355
    %v357 = vpop.f32.mrf.mxu0
    %v358 = vadd.f32 %v329, %v357
    %359 = vmatmul.bf16.gmra.mxu0 %v208
    %v360 = vpop.f32.mrf.mxu0
    %v361 = vadd.f32 %v332, %v360
    %v362 = vpop.f32.mrf.mxu0
    %v363 = vadd.f32 %v334, %v362
    %364 = vmatmul.bf16.gmra.mxu0 %v210
    %v365 = vpop.f32.mrf.mxu0
    %v366 = vadd.f32 %v337, %v365
    %v367 = vpop.f32.mrf.mxu0
    %v368 = vadd.f32 %v339, %v367
    %369 = vmatmul.bf16.gmra.mxu0 %v212
    %v370 = vpop.f32.mrf.mxu0
    %v371 = vadd.f32 %v342, %v370
    %v372 = vpop.f32.mrf.mxu0
    %v373 = vadd.f32 %v344, %v372
    %374 = vdwg.mxu0
    %v375 = vld [vmem:[%s2] sm:$0xff]
    %v376 = vld [vmem:[%s2 + $0x8] sm:$0xff]
    %v377 = vld [vmem:[%s2 + $0x10] sm:$0xff]
    %v378 = vld [vmem:[%s2 + $0x18] sm:$0xff]
    %v379 = vadd.f32 %v356, %v375
    %v380 = vadd.f32 %v358, %v376
    %v381 = vadd.f32 %v361, %v377
    %v382 = vadd.f32 %v363, %v378
    %v383 = vadd.f32 %v366, %v375
    %v384 = vadd.f32 %v368, %v376
    %v385 = vadd.f32 %v371, %v377
    %v386 = vadd.f32 %v373, %v378
    %v387 = vpack.c.bf16 %v380, %v379
    %v388 = vpack.c.bf16 %v382, %v381
    %v389 = vpack.c.bf16 %v384, %v383
    %v390 = vpack.c.bf16 %v386, %v385
    %v391 = vld [vmem:[%s3] sm:$0xff]
    %v392 = vld [vmem:[%s3 + $0x8] sm:$0xf]
    %v393 = vld [vmem:[%s3 + $0xc] sm:$0xff]
    %v394 = vld [vmem:[%s3 + $0x14] sm:$0xf]
    %v395 = vld [vmem:[%s3 + $0x18] sm:$0xff]
    %v396 = vld [vmem:[%s3 + $0x20] sm:$0xf]
    %v397 = vld [vmem:[%s3 + $0x24] sm:$0xff]
    %v398 = vld [vmem:[%s3 + $0x2c] sm:$0xf]
    %v399 = vld [vmem:[%s3 + $0x30] sm:$0xff]
    %v400 = vld [vmem:[%s3 + $0x38] sm:$0xf]
    %v401 = vld [vmem:[%s3 + $0x3c] sm:$0xff]
    %v402 = vld [vmem:[%s3 + $0x44] sm:$0xf]
    %v403 = vld [vmem:[%s3 + $0x48] sm:$0xff]
    %v404 = vld [vmem:[%s3 + $0x50] sm:$0xf]
    %v405 = vld [vmem:[%s3 + $0x54] sm:$0xff]
    %v406 = vld [vmem:[%s3 + $0x5c] sm:$0xf]
    %v407 = vld [vmem:[%s3 + $0x60] sm:$0xff]
    %v408 = vld [vmem:[%s3 + $0x68] sm:$0xf]
    %v409 = vld [vmem:[%s3 + $0x6c] sm:$0xff]
    %v410 = vld [vmem:[%s3 + $0x74] sm:$0xf]
    %v411 = vld [vmem:[%s3 + $0x78] sm:$0xff]
    %v412 = vld [vmem:[%s3 + $0x80] sm:$0xf]
    %v413 = vld [vmem:[%s3 + $0x84] sm:$0xff]
    %v414 = vld [vmem:[%s3 + $0x8c] sm:$0xf]
    %v415 = vld [vmem:[%s3 + $0x90] sm:$0xff]
    %v416 = vld [vmem:[%s3 + $0x98] sm:$0xf]
    %v417 = vld [vmem:[%s3 + $0x9c] sm:$0xff]
    %v418 = vld [vmem:[%s3 + $0xa4] sm:$0xf]
    %v419 = vld [vmem:[%s3 + $0xa8] sm:$0xff]
    %v420 = vld [vmem:[%s3 + $0xb0] sm:$0xf]
    %v421 = vld [vmem:[%s3 + $0xb4] sm:$0xff]
    %v422 = vld [vmem:[%s3 + $0xbc] sm:$0xf]
    %v423 = vld [vmem:[%s4] sm:$0x7]
    %v425 = vperm.slane %v423, 0
    %v426 = vperm.slane %v423, 1
    %v427 = vperm.slane %v423, 2
    %v463 = vunpack.c.l.b16 %v391
    %v464 = vunpack.c.h.b16 %v391
    %v465 = vunpack.c.l.b16 %v392
    %v466 = vunpack.c.l.b16 %v393
    %v467 = vunpack.c.h.b16 %v393
    %v468 = vunpack.c.l.b16 %v394
    %v469 = vunpack.c.l.b16 %v395
    %v470 = vunpack.c.h.b16 %v395
    %v471 = vunpack.c.l.b16 %v396
    %v472 = vunpack.c.l.b16 %v397
    %v473 = vunpack.c.h.b16 %v397
    %v474 = vunpack.c.l.b16 %v398
    %v475 = vunpack.c.l.b16 %v399
    %v476 = vunpack.c.h.b16 %v399
    %v477 = vunpack.c.l.b16 %v400
    %v478 = vunpack.c.l.b16 %v401
    %v479 = vunpack.c.h.b16 %v401
    %v480 = vunpack.c.l.b16 %v402
    %v481 = vunpack.c.l.b16 %v403
    %v482 = vunpack.c.h.b16 %v403
    %v483 = vunpack.c.l.b16 %v404
    %v484 = vunpack.c.l.b16 %v405
    %v485 = vunpack.c.h.b16 %v405
    %v486 = vunpack.c.l.b16 %v406
    %v487 = vunpack.c.l.b16 %v407
    %v488 = vunpack.c.h.b16 %v407
    %v489 = vunpack.c.l.b16 %v408
    %v490 = vunpack.c.l.b16 %v409
    %v491 = vunpack.c.h.b16 %v409
    %v492 = vunpack.c.l.b16 %v410
    %v493 = vunpack.c.l.b16 %v411
    %v494 = vunpack.c.h.b16 %v411
    %v495 = vunpack.c.l.b16 %v412
    %v496 = vunpack.c.l.b16 %v413
    %v497 = vunpack.c.h.b16 %v413
    %v498 = vunpack.c.l.b16 %v414
    %v499 = vunpack.c.l.b16 %v415
    %v500 = vunpack.c.h.b16 %v415
    %v501 = vunpack.c.l.b16 %v416
    %v502 = vunpack.c.l.b16 %v417
    %v503 = vunpack.c.h.b16 %v417
    %v504 = vunpack.c.l.b16 %v418
    %v505 = vunpack.c.l.b16 %v419
    %v506 = vunpack.c.h.b16 %v419
    %v507 = vunpack.c.l.b16 %v420
    %v508 = vunpack.c.l.b16 %v421
    %v509 = vunpack.c.h.b16 %v421
    %v510 = vunpack.c.l.b16 %v422
    %v511 = vpack.c.b16 %v466, %v463
    %v512 = vpack.c.b16 %v467, %v464
    %v513 = vpack.c.b16 %v468, %v465
    %v514 = vpack.c.b16 %v472, %v469
    %v515 = vpack.c.b16 %v473, %v470
    %v516 = vpack.c.b16 %v474, %v471
    %v517 = vpack.c.b16 %v478, %v475
    %v518 = vpack.c.b16 %v479, %v476
    %v519 = vpack.c.b16 %v480, %v477
    %v520 = vpack.c.b16 %v484, %v481
    %v521 = vpack.c.b16 %v485, %v482
    %v522 = vpack.c.b16 %v486, %v483
    %v523 = vpack.c.b16 %v490, %v487
    %v524 = vpack.c.b16 %v491, %v488
    %v525 = vpack.c.b16 %v492, %v489
    %v526 = vpack.c.b16 %v496, %v493
    %v527 = vpack.c.b16 %v497, %v494
    %v528 = vpack.c.b16 %v498, %v495
    %v529 = vpack.c.b16 %v502, %v499
    %v530 = vpack.c.b16 %v503, %v500
    %v531 = vpack.c.b16 %v504, %v501
    %v532 = vpack.c.b16 %v508, %v505
    %v533 = vpack.c.b16 %v509, %v506
    %v534 = vpack.c.b16 %v510, %v507
    %559 = vmatpush.bf16.msra.mxu0 %v532
    %560 = vmatpush.bf16.msra.mxu0 %v529
    %561 = vmatpush.bf16.msra.mxu0 %v526
    %562 = vmatpush.bf16.msra.mxu0 %v523
    %563 = vmatpush.bf16.msra.mxu0 %v520
    %564 = vmatpush.bf16.msra.mxu0 %v517
    %565 = vmatpush.bf16.msra.mxu0 %v514
    %566 = vmatpush.bf16.msra.mxu0 %v511
    %567 = vmatmul.bf16.gmra.mxu0 %v387
    %v568 = vpop.f32.mrf.mxu0
    %v569 = vadd.f32 %v425, %v568
    %v570 = vpop.f32.mrf.mxu0
    %v571 = vadd.f32 %v425, %v570
    %572 = vmatmul.bf16.gmra.mxu0 %v388
    %v573 = vpop.f32.mrf.mxu0
    %v574 = vadd.f32 %v425, %v573
    %v575 = vpop.f32.mrf.mxu0
    %v576 = vadd.f32 %v425, %v575
    %577 = vmatmul.bf16.gmra.mxu0 %v389
    %v578 = vpop.f32.mrf.mxu0
    %v579 = vadd.f32 %v425, %v578
    %v580 = vpop.f32.mrf.mxu0
    %v581 = vadd.f32 %v425, %v580
    %582 = vmatmul.bf16.gmra.mxu0 %v390
    %v583 = vpop.f32.mrf.mxu0
    %v584 = vadd.f32 %v425, %v583
    %v585 = vpop.f32.mrf.mxu0
    %v586 = vadd.f32 %v425, %v585
    %587 = vdwg.mxu0
    %588 = vmatpush.bf16.msra.mxu0 %v533
    %589 = vmatpush.bf16.msra.mxu0 %v530
    %590 = vmatpush.bf16.msra.mxu0 %v527
    %591 = vmatpush.bf16.msra.mxu0 %v524
    %592 = vmatpush.bf16.msra.mxu0 %v521
    %593 = vmatpush.bf16.msra.mxu0 %v518
    %594 = vmatpush.bf16.msra.mxu0 %v515
    %595 = vmatpush.bf16.msra.mxu0 %v512
    %596 = vmatmul.bf16.gmra.mxu0 %v387
    %v597 = vpop.f32.mrf.mxu0
    %v598 = vadd.f32 %v426, %v597
    %v599 = vpop.f32.mrf.mxu0
    %v600 = vadd.f32 %v426, %v599
    %601 = vmatmul.bf16.gmra.mxu0 %v388
    %v602 = vpop.f32.mrf.mxu0
    %v603 = vadd.f32 %v426, %v602
    %v604 = vpop.f32.mrf.mxu0
    %v605 = vadd.f32 %v426, %v604
    %606 = vmatmul.bf16.gmra.mxu0 %v389
    %v607 = vpop.f32.mrf.mxu0
    %v608 = vadd.f32 %v426, %v607
    %v609 = vpop.f32.mrf.mxu0
    %v610 = vadd.f32 %v426, %v609
    %611 = vmatmul.bf16.gmra.mxu0 %v390
    %v612 = vpop.f32.mrf.mxu0
    %v613 = vadd.f32 %v426, %v612
    %v614 = vpop.f32.mrf.mxu0
    %v615 = vadd.f32 %v426, %v614
    %616 = vdwg.mxu0
    %617 = vmatpush.bf16.msra.mxu0 %v534
    %618 = vmatpush.bf16.msra.mxu0 %v531
    %619 = vmatpush.bf16.msra.mxu0 %v528
    %620 = vmatpush.bf16.msra.mxu0 %v525
    %621 = vmatpush.bf16.msra.mxu0 %v522
    %622 = vmatpush.bf16.msra.mxu0 %v519
    %623 = vmatpush.bf16.msra.mxu0 %v516
    %624 = vmatpush.bf16.msra.mxu0 %v513
    %625 = vmatmul.bf16.gmra.mxu0 %v387
    %v626 = vpop.f32.mrf.mxu0
    %v627 = vadd.f32 %v427, %v626
    %v628 = vpop.f32.mrf.mxu0
    %v629 = vadd.f32 %v427, %v628
    %630 = vmatmul.bf16.gmra.mxu0 %v388
    %v631 = vpop.f32.mrf.mxu0
    %v632 = vadd.f32 %v427, %v631
    %v633 = vpop.f32.mrf.mxu0
    %v634 = vadd.f32 %v427, %v633
    %635 = vmatmul.bf16.gmra.mxu0 %v389
    %v636 = vpop.f32.mrf.mxu0
    %v637 = vadd.f32 %v427, %v636
    %v638 = vpop.f32.mrf.mxu0
    %v639 = vadd.f32 %v427, %v638
    %640 = vmatmul.bf16.gmra.mxu0 %v390
    %v641 = vpop.f32.mrf.mxu0
    %v642 = vadd.f32 %v427, %v641
    %v643 = vpop.f32.mrf.mxu0
    %v644 = vadd.f32 %v427, %v643
    %645 = vdwg.mxu0
    %v646 = vpack.c.bf16 %v598, %v569
    %v647 = vpack.c.bf16 %v627, %v627
    %v648 = vpack.c.bf16 %v600, %v571
    %v649 = vpack.c.bf16 %v629, %v629
    %v650 = vpack.c.bf16 %v603, %v574
    %v651 = vpack.c.bf16 %v632, %v632
    %v652 = vpack.c.bf16 %v605, %v576
    %v653 = vpack.c.bf16 %v634, %v634
    %v654 = vpack.c.bf16 %v608, %v579
    %v655 = vpack.c.bf16 %v637, %v637
    %v656 = vpack.c.bf16 %v610, %v581
    %v657 = vpack.c.bf16 %v639, %v639
    %v658 = vpack.c.bf16 %v613, %v584
    %v659 = vpack.c.bf16 %v642, %v642
    %v660 = vpack.c.bf16 %v615, %v586
    %v661 = vpack.c.bf16 %v644, %v644
    %v670 = vrot.slane %v646, 4
    %v671 = vrot.slane %v648, 4
    %v672 = vrot.slane %v650, 4
    %v673 = vrot.slane %v652, 4
    %v674 = vrot.slane %v654, 4
    %v675 = vrot.slane %v656, 4
    %v676 = vrot.slane %v658, 4
    %v677 = vrot.slane %v660, 4
    %v678 = vunpack.c.l.b16 %v646
    %v679 = vunpack.c.l.b16 %v648
    %v680 = vunpack.c.l.b16 %v650
    %v681 = vunpack.c.l.b16 %v652
    %v682 = vpack.c.b16 %v679, %v678
    %v683 = vpack.c.b16 %v681, %v680
    %v684 = vunpack.c.l.b16 %v670
    %v685 = vunpack.c.l.b16 %v671
    %v686 = vunpack.c.l.b16 %v672
    %v687 = vunpack.c.l.b16 %v673
    %v688 = vpack.c.b16 %v685, %v684
    %v689 = vpack.c.b16 %v687, %v686
    %vm690 = vcmask 261120
    %v692 = vsel %vm690, %v682, 0
    %v695 = vsel %vm690, %v683, 0
    %v698 = vsel %vm690, %v688, 0
    %v701 = vsel %vm690, %v689, 0
    %703 = vmatpush.bf16.xpose.msra.mxu0 0
    %704 = vmatpush.bf16.xpose.msra.mxu0 0
    %705 = vmatpush.bf16.xpose.msra.mxu0 0
    %706 = vmatpush.bf16.xpose.msra.mxu0 0
    %707 = vmatpush.bf16.xpose.msra.mxu0 0
    %708 = vmatpush.bf16.xpose.msra.mxu0 0
    %709 = vmatpush.bf16.xpose.msra.mxu0 %v701
    %710 = vmatpush.bf16.xpose.msra.mxu0 %v698
    %711 = vmatmul.bf16.gmra.mxu0 %v692
    %v712 = vpop.f32.mrf.mxu0
    %v713 = vadd.f32 0.0, %v712
    %v714 = vpop.f32.mrf.mxu0
    %v715 = vadd.f32 0.0, %v714
    %716 = vmatmul.bf16.gmra.mxu0 %v695
    %v717 = vpop.f32.mrf.mxu0
    %v718 = vadd.f32 0.0, %v717
    %v719 = vpop.f32.mrf.mxu0
    %v720 = vadd.f32 0.0, %v719
    %721 = vdwg.mxu0
    %v722 = vunpack.c.l.b16 %v654
    %v723 = vunpack.c.l.b16 %v656
    %v724 = vunpack.c.l.b16 %v658
    %v725 = vunpack.c.l.b16 %v660
    %v726 = vpack.c.b16 %v723, %v722
    %v727 = vpack.c.b16 %v725, %v724
    %v728 = vunpack.c.l.b16 %v674
    %v729 = vunpack.c.l.b16 %v675
    %v730 = vunpack.c.l.b16 %v676
    %v731 = vunpack.c.l.b16 %v677
    %v732 = vpack.c.b16 %v729, %v728
    %v733 = vpack.c.b16 %v731, %v730
    %v735 = vsel %vm690, %v726, 0
    %v738 = vsel %vm690, %v727, 0
    %v741 = vsel %vm690, %v732, 0
    %v744 = vsel %vm690, %v733, 0
    %746 = vmatpush.bf16.xpose.msra.mxu0 0
    %747 = vmatpush.bf16.xpose.msra.mxu0 0
    %748 = vmatpush.bf16.xpose.msra.mxu0 0
    %749 = vmatpush.bf16.xpose.msra.mxu0 0
    %750 = vmatpush.bf16.xpose.msra.mxu0 0
    %751 = vmatpush.bf16.xpose.msra.mxu0 0
    %752 = vmatpush.bf16.xpose.msra.mxu0 %v744
    %753 = vmatpush.bf16.xpose.msra.mxu0 %v741
    %754 = vmatmul.bf16.gmra.mxu0 %v735
    %v755 = vpop.f32.mrf.mxu0
    %v756 = vadd.f32 0.0, %v755
    %v757 = vpop.f32.mrf.mxu0
    %v758 = vadd.f32 0.0, %v757
    %759 = vmatmul.bf16.gmra.mxu0 %v738
    %v760 = vpop.f32.mrf.mxu0
    %v761 = vadd.f32 0.0, %v760
    %v762 = vpop.f32.mrf.mxu0
    %v763 = vadd.f32 0.0, %v762
    %764 = vdwg.mxu0
    %v765 = vsel %vm690, %v713, -inf
    %766 = vmax.xlane.f32.xlu0 %v765
    %v767 = vpop.xlane.xlu0 %766
    %v768 = vsel %vm690, %v715, -inf
    %769 = vmax.xlane.f32.xlu0 %v768
    %v770 = vpop.xlane.xlu0 %769
    %v771 = vsel %vm690, %v718, -inf
    %772 = vmax.xlane.f32.xlu0 %v771
    %v773 = vpop.xlane.xlu0 %772
    %v774 = vsel %vm690, %v720, -inf
    %775 = vmax.xlane.f32.xlu0 %v774
    %v776 = vpop.xlane.xlu0 %775
    %v777 = vsel %vm690, %v756, -inf
    %778 = vmax.xlane.f32.xlu0 %v777
    %v779 = vpop.xlane.xlu0 %778
    %v780 = vsel %vm690, %v758, -inf
    %781 = vmax.xlane.f32.xlu0 %v780
    %v782 = vpop.xlane.xlu0 %781
    %v783 = vsel %vm690, %v761, -inf
    %784 = vmax.xlane.f32.xlu0 %v783
    %v785 = vpop.xlane.xlu0 %784
    %v786 = vsel %vm690, %v763, -inf
    %787 = vmax.xlane.f32.xlu0 %v786
    %v788 = vpop.xlane.xlu0 %787
    %v789 = vsub.f32 %v713, %v767
    %v790 = vsub.f32 %v715, %v770
    %v791 = vsub.f32 %v718, %v773
    %v792 = vsub.f32 %v720, %v776
    %v793 = vsub.f32 %v756, %v779
    %v794 = vsub.f32 %v758, %v782
    %v795 = vsub.f32 %v761, %v785
    %v796 = vsub.f32 %v763, %v788
    %v797 = vmul.f32 %v789, 1.442695
    %v798 = vpow.pop %v797
    %v799 = vmul.f32 %v790, 1.442695
    %v800 = vpow.pop %v799
    %v801 = vmul.f32 %v791, 1.442695
    %v802 = vpow.pop %v801
    %v803 = vmul.f32 %v792, 1.442695
    %v804 = vpow.pop %v803
    %v805 = vmul.f32 %v793, 1.442695
    %v806 = vpow.pop %v805
    %v807 = vmul.f32 %v794, 1.442695
    %v808 = vpow.pop %v807
    %v809 = vmul.f32 %v795, 1.442695
    %v810 = vpow.pop %v809
    %v811 = vmul.f32 %v796, 1.442695
    %v812 = vpow.pop %v811
    %v813 = vsel %vm690, %v798, 0.0
    %814 = vadd.xlane.f32.xlu0 %v813
    %v815 = vpop.xlane.xlu0 %814
    %v816 = vsel %vm690, %v800, 0.0
    %817 = vadd.xlane.f32.xlu0 %v816
    %v818 = vpop.xlane.xlu0 %817
    %v819 = vsel %vm690, %v802, 0.0
    %820 = vadd.xlane.f32.xlu0 %v819
    %v821 = vpop.xlane.xlu0 %820
    %v822 = vsel %vm690, %v804, 0.0
    %823 = vadd.xlane.f32.xlu0 %v822
    %v824 = vpop.xlane.xlu0 %823
    %v825 = vsel %vm690, %v806, 0.0
    %826 = vadd.xlane.f32.xlu0 %v825
    %v827 = vpop.xlane.xlu0 %826
    %v828 = vsel %vm690, %v808, 0.0
    %829 = vadd.xlane.f32.xlu0 %v828
    %v830 = vpop.xlane.xlu0 %829
    %v831 = vsel %vm690, %v810, 0.0
    %832 = vadd.xlane.f32.xlu0 %v831
    %v833 = vpop.xlane.xlu0 %832
    %v834 = vsel %vm690, %v812, 0.0
    %835 = vadd.xlane.f32.xlu0 %v834
    %v836 = vpop.xlane.xlu0 %835
    %v837 = vrcp.pop %v815
    %v838 = vrcp.pop %v818
    %v839 = vrcp.pop %v821
    %v840 = vrcp.pop %v824
    %v841 = vrcp.pop %v827
    %v842 = vrcp.pop %v830
    %v843 = vrcp.pop %v833
    %v844 = vrcp.pop %v836
    %v845 = vmul.f32 %v798, %v837
    %v846 = vmul.f32 %v800, %v838
    %v847 = vmul.f32 %v802, %v839
    %v848 = vmul.f32 %v804, %v840
    %v849 = vmul.f32 %v806, %v841
    %v850 = vmul.f32 %v808, %v842
    %v851 = vmul.f32 %v810, %v843
    %v852 = vmul.f32 %v812, %v844
    %v853 = vpack.c.bf16 %v845, %v845
    %v854 = vpack.c.bf16 %v846, %v846
    %v855 = vpack.c.bf16 %v847, %v847
    %v856 = vpack.c.bf16 %v848, %v848
    %v857 = vpack.c.bf16 %v849, %v849
    %v858 = vpack.c.bf16 %v850, %v850
    %v859 = vpack.c.bf16 %v851, %v851
    %v860 = vpack.c.bf16 %v852, %v852
    %v865 = vunpack.c.l.b16 %v853
    %v866 = vunpack.c.l.b16 %v854
    %v867 = vunpack.c.l.b16 %v855
    %v868 = vunpack.c.l.b16 %v856
    %v869 = vpack.c.b16 %v866, %v865
    %v870 = vpack.c.b16 %v868, %v867
    %v875 = vunpack.c.l.b16 %v647
    %v876 = vunpack.c.l.b16 %v649
    %v877 = vunpack.c.l.b16 %v651
    %v878 = vunpack.c.l.b16 %v653
    %v879 = vpack.c.b16 %v876, %v875
    %v880 = vpack.c.b16 %v878, %v877
    %v884 = vsel %vm690, %v869, 0
    %v887 = vsel %vm690, %v870, 0
    %889 = vmatpush.bf16.msra.mxu0 0
    %890 = vmatpush.bf16.msra.mxu0 0
    %891 = vmatpush.bf16.msra.mxu0 0
    %892 = vmatpush.bf16.msra.mxu0 0
    %893 = vmatpush.bf16.msra.mxu0 0
    %894 = vmatpush.bf16.msra.mxu0 0
    %895 = vmatpush.bf16.msra.mxu0 %v880
    %896 = vmatpush.bf16.msra.mxu0 %v879
    %897 = vmatmul.bf16.gmra.mxu0 %v884
    %v898 = vpop.f32.mrf.mxu0
    %v899 = vadd.f32 0.0, %v898
    %v900 = vpop.f32.mrf.mxu0
    %v901 = vadd.f32 0.0, %v900
    %902 = vmatmul.bf16.gmra.mxu0 %v887
    %v903 = vpop.f32.mrf.mxu0
    %v904 = vadd.f32 0.0, %v903
    %v905 = vpop.f32.mrf.mxu0
    %v906 = vadd.f32 0.0, %v905
    %907 = vdwg.mxu0
    %v912 = vunpack.c.l.b16 %v857
    %v913 = vunpack.c.l.b16 %v858
    %v914 = vunpack.c.l.b16 %v859
    %v915 = vunpack.c.l.b16 %v860
    %v916 = vpack.c.b16 %v913, %v912
    %v917 = vpack.c.b16 %v915, %v914
    %v922 = vunpack.c.l.b16 %v655
    %v923 = vunpack.c.l.b16 %v657
    %v924 = vunpack.c.l.b16 %v659
    %v925 = vunpack.c.l.b16 %v661
    %v926 = vpack.c.b16 %v923, %v922
    %v927 = vpack.c.b16 %v925, %v924
    %v931 = vsel %vm690, %v916, 0
    %v934 = vsel %vm690, %v917, 0
    %936 = vmatpush.bf16.msra.mxu0 0
    %937 = vmatpush.bf16.msra.mxu0 0
    %938 = vmatpush.bf16.msra.mxu0 0
    %939 = vmatpush.bf16.msra.mxu0 0
    %940 = vmatpush.bf16.msra.mxu0 0
    %941 = vmatpush.bf16.msra.mxu0 0
    %942 = vmatpush.bf16.msra.mxu0 %v927
    %943 = vmatpush.bf16.msra.mxu0 %v926
    %944 = vmatmul.bf16.gmra.mxu0 %v931
    %v945 = vpop.f32.mrf.mxu0
    %v946 = vadd.f32 0.0, %v945
    %v947 = vpop.f32.mrf.mxu0
    %v948 = vadd.f32 0.0, %v947
    %949 = vmatmul.bf16.gmra.mxu0 %v934
    %v950 = vpop.f32.mrf.mxu0
    %v951 = vadd.f32 0.0, %v950
    %v952 = vpop.f32.mrf.mxu0
    %v953 = vadd.f32 0.0, %v952
    %954 = vdwg.mxu0
    %955 = vrot.lane.b32.xlu0 %v646, 96
    %v956 = vpop.permute.xlu0 %955
    %957 = vrot.lane.b32.xlu0 %v648, 96
    %v958 = vpop.permute.xlu0 %957
    %959 = vrot.lane.b32.xlu0 %v650, 96
    %v960 = vpop.permute.xlu0 %959
    %961 = vrot.lane.b32.xlu0 %v652, 96
    %v962 = vpop.permute.xlu0 %961
    %963 = vrot.lane.b32.xlu0 %v654, 96
    %v964 = vpop.permute.xlu0 %963
    %965 = vrot.lane.b32.xlu0 %v656, 96
    %v966 = vpop.permute.xlu0 %965
    %967 = vrot.lane.b32.xlu0 %v658, 96
    %v968 = vpop.permute.xlu0 %967
    %969 = vrot.lane.b32.xlu0 %v660, 96
    %v970 = vpop.permute.xlu0 %969
    %v971 = vrot.slane %v956, 4
    %v972 = vrot.slane %v958, 4
    %v973 = vrot.slane %v960, 4
    %v974 = vrot.slane %v962, 4
    %v975 = vrot.slane %v964, 4
    %v976 = vrot.slane %v966, 4
    %v977 = vrot.slane %v968, 4
    %v978 = vrot.slane %v970, 4
    %979 = vrot.lane.b32.xlu0 %v682, 96
    %v980 = vpop.permute.xlu0 %979
    %981 = vrot.lane.b32.xlu0 %v683, 96
    %v982 = vpop.permute.xlu0 %981
    %v983 = vunpack.c.l.b16 %v971
    %v984 = vunpack.c.l.b16 %v972
    %v985 = vunpack.c.l.b16 %v973
    %v986 = vunpack.c.l.b16 %v974
    %v987 = vpack.c.b16 %v984, %v983
    %v988 = vpack.c.b16 %v986, %v985
    %v990 = vsel %vm690, %v980, 0
    %v993 = vsel %vm690, %v982, 0
    %v996 = vsel %vm690, %v987, 0
    %v999 = vsel %vm690, %v988, 0
    %1001 = vmatpush.bf16.xpose.msra.mxu0 0
    %1002 = vmatpush.bf16.xpose.msra.mxu0 0
    %1003 = vmatpush.bf16.xpose.msra.mxu0 0
    %1004 = vmatpush.bf16.xpose.msra.mxu0 0
    %1005 = vmatpush.bf16.xpose.msra.mxu0 0
    %1006 = vmatpush.bf16.xpose.msra.mxu0 0
    %1007 = vmatpush.bf16.xpose.msra.mxu0 %v999
    %1008 = vmatpush.bf16.xpose.msra.mxu0 %v996
    %1009 = vmatmul.bf16.gmra.mxu0 %v990
    %v1010 = vpop.f32.mrf.mxu0
    %v1011 = vadd.f32 0.0, %v1010
    %v1012 = vpop.f32.mrf.mxu0
    %v1013 = vadd.f32 0.0, %v1012
    %1014 = vmatmul.bf16.gmra.mxu0 %v993
    %v1015 = vpop.f32.mrf.mxu0
    %v1016 = vadd.f32 0.0, %v1015
    %v1017 = vpop.f32.mrf.mxu0
    %v1018 = vadd.f32 0.0, %v1017
    %1019 = vdwg.mxu0
    %1020 = vrot.lane.b32.xlu0 %v726, 96
    %v1021 = vpop.permute.xlu0 %1020
    %1022 = vrot.lane.b32.xlu0 %v727, 96
    %v1023 = vpop.permute.xlu0 %1022
    %v1024 = vunpack.c.l.b16 %v975
    %v1025 = vunpack.c.l.b16 %v976
    %v1026 = vunpack.c.l.b16 %v977
    %v1027 = vunpack.c.l.b16 %v978
    %v1028 = vpack.c.b16 %v1025, %v1024
    %v1029 = vpack.c.b16 %v1027, %v1026
    %v1031 = vsel %vm690, %v1021, 0
    %v1034 = vsel %vm690, %v1023, 0
    %v1037 = vsel %vm690, %v1028, 0
    %v1040 = vsel %vm690, %v1029, 0
    %1042 = vmatpush.bf16.xpose.msra.mxu0 0
    %1043 = vmatpush.bf16.xpose.msra.mxu0 0
    %1044 = vmatpush.bf16.xpose.msra.mxu0 0
    %1045 = vmatpush.bf16.xpose.msra.mxu0 0
    %1046 = vmatpush.bf16.xpose.msra.mxu0 0
    %1047 = vmatpush.bf16.xpose.msra.mxu0 0
    %1048 = vmatpush.bf16.xpose.msra.mxu0 %v1040
    %1049 = vmatpush.bf16.xpose.msra.mxu0 %v1037
    %1050 = vmatmul.bf16.gmra.mxu0 %v1031
    %v1051 = vpop.f32.mrf.mxu0
    %v1052 = vadd.f32 0.0, %v1051
    %v1053 = vpop.f32.mrf.mxu0
    %v1054 = vadd.f32 0.0, %v1053
    %1055 = vmatmul.bf16.gmra.mxu0 %v1034
    %v1056 = vpop.f32.mrf.mxu0
    %v1057 = vadd.f32 0.0, %v1056
    %v1058 = vpop.f32.mrf.mxu0
    %v1059 = vadd.f32 0.0, %v1058
    %1060 = vdwg.mxu0
    %v1061 = vsel %vm690, %v1011, -inf
    %1062 = vmax.xlane.f32.xlu0 %v1061
    %v1063 = vpop.xlane.xlu0 %1062
    %v1064 = vsel %vm690, %v1013, -inf
    %1065 = vmax.xlane.f32.xlu0 %v1064
    %v1066 = vpop.xlane.xlu0 %1065
    %v1067 = vsel %vm690, %v1016, -inf
    %1068 = vmax.xlane.f32.xlu0 %v1067
    %v1069 = vpop.xlane.xlu0 %1068
    %v1070 = vsel %vm690, %v1018, -inf
    %1071 = vmax.xlane.f32.xlu0 %v1070
    %v1072 = vpop.xlane.xlu0 %1071
    %v1073 = vsel %vm690, %v1052, -inf
    %1074 = vmax.xlane.f32.xlu0 %v1073
    %v1075 = vpop.xlane.xlu0 %1074
    %v1076 = vsel %vm690, %v1054, -inf
    %1077 = vmax.xlane.f32.xlu0 %v1076
    %v1078 = vpop.xlane.xlu0 %1077
    %v1079 = vsel %vm690, %v1057, -inf
    %1080 = vmax.xlane.f32.xlu0 %v1079
    %v1081 = vpop.xlane.xlu0 %1080
    %v1082 = vsel %vm690, %v1059, -inf
    %1083 = vmax.xlane.f32.xlu0 %v1082
    %v1084 = vpop.xlane.xlu0 %1083
    %v1085 = vsub.f32 %v1011, %v1063
    %v1086 = vsub.f32 %v1013, %v1066
    %v1087 = vsub.f32 %v1016, %v1069
    %v1088 = vsub.f32 %v1018, %v1072
    %v1089 = vsub.f32 %v1052, %v1075
    %v1090 = vsub.f32 %v1054, %v1078
    %v1091 = vsub.f32 %v1057, %v1081
    %v1092 = vsub.f32 %v1059, %v1084
    %v1093 = vmul.f32 %v1085, 1.442695
    %v1094 = vpow.pop %v1093
    %v1095 = vmul.f32 %v1086, 1.442695
    %v1096 = vpow.pop %v1095
    %v1097 = vmul.f32 %v1087, 1.442695
    %v1098 = vpow.pop %v1097
    %v1099 = vmul.f32 %v1088, 1.442695
    %v1100 = vpow.pop %v1099
    %v1101 = vmul.f32 %v1089, 1.442695
    %v1102 = vpow.pop %v1101
    %v1103 = vmul.f32 %v1090, 1.442695
    %v1104 = vpow.pop %v1103
    %v1105 = vmul.f32 %v1091, 1.442695
    %v1106 = vpow.pop %v1105
    %v1107 = vmul.f32 %v1092, 1.442695
    %v1108 = vpow.pop %v1107
    %v1109 = vsel %vm690, %v1094, 0.0
    %1110 = vadd.xlane.f32.xlu0 %v1109
    %v1111 = vpop.xlane.xlu0 %1110
    %v1112 = vsel %vm690, %v1096, 0.0
    %1113 = vadd.xlane.f32.xlu0 %v1112
    %v1114 = vpop.xlane.xlu0 %1113
    %v1115 = vsel %vm690, %v1098, 0.0
    %1116 = vadd.xlane.f32.xlu0 %v1115
    %v1117 = vpop.xlane.xlu0 %1116
    %v1118 = vsel %vm690, %v1100, 0.0
    %1119 = vadd.xlane.f32.xlu0 %v1118
    %v1120 = vpop.xlane.xlu0 %1119
    %v1121 = vsel %vm690, %v1102, 0.0
    %1122 = vadd.xlane.f32.xlu0 %v1121
    %v1123 = vpop.xlane.xlu0 %1122
    %v1124 = vsel %vm690, %v1104, 0.0
    %1125 = vadd.xlane.f32.xlu0 %v1124
    %v1126 = vpop.xlane.xlu0 %1125
    %v1127 = vsel %vm690, %v1106, 0.0
    %1128 = vadd.xlane.f32.xlu0 %v1127
    %v1129 = vpop.xlane.xlu0 %1128
    %v1130 = vsel %vm690, %v1108, 0.0
    %1131 = vadd.xlane.f32.xlu0 %v1130
    %v1132 = vpop.xlane.xlu0 %1131
    %v1133 = vrcp.pop %v1111
    %v1134 = vrcp.pop %v1114
    %v1135 = vrcp.pop %v1117
    %v1136 = vrcp.pop %v1120
    %v1137 = vrcp.pop %v1123
    %v1138 = vrcp.pop %v1126
    %v1139 = vrcp.pop %v1129
    %v1140 = vrcp.pop %v1132
    %v1141 = vmul.f32 %v1094, %v1133
    %v1142 = vmul.f32 %v1096, %v1134
    %v1143 = vmul.f32 %v1098, %v1135
    %v1144 = vmul.f32 %v1100, %v1136
    %v1145 = vmul.f32 %v1102, %v1137
    %v1146 = vmul.f32 %v1104, %v1138
    %v1147 = vmul.f32 %v1106, %v1139
    %v1148 = vmul.f32 %v1108, %v1140
    %v1149 = vpack.c.bf16 %v1141, %v1141
    %v1150 = vpack.c.bf16 %v1142, %v1142
    %v1151 = vpack.c.bf16 %v1143, %v1143
    %v1152 = vpack.c.bf16 %v1144, %v1144
    %v1153 = vpack.c.bf16 %v1145, %v1145
    %v1154 = vpack.c.bf16 %v1146, %v1146
    %v1155 = vpack.c.bf16 %v1147, %v1147
    %v1156 = vpack.c.bf16 %v1148, %v1148
    %v1161 = vunpack.c.l.b16 %v1149
    %v1162 = vunpack.c.l.b16 %v1150
    %v1163 = vunpack.c.l.b16 %v1151
    %v1164 = vunpack.c.l.b16 %v1152
    %v1165 = vpack.c.b16 %v1162, %v1161
    %v1166 = vpack.c.b16 %v1164, %v1163
    %1167 = vrot.lane.b32.xlu0 %v879, 96
    %v1168 = vpop.permute.xlu0 %1167
    %1169 = vrot.lane.b32.xlu0 %v880, 96
    %v1170 = vpop.permute.xlu0 %1169
    %v1174 = vsel %vm690, %v1165, 0
    %v1177 = vsel %vm690, %v1166, 0
    %1179 = vmatpush.bf16.msra.mxu0 0
    %1180 = vmatpush.bf16.msra.mxu0 0
    %1181 = vmatpush.bf16.msra.mxu0 0
    %1182 = vmatpush.bf16.msra.mxu0 0
    %1183 = vmatpush.bf16.msra.mxu0 0
    %1184 = vmatpush.bf16.msra.mxu0 0
    %1185 = vmatpush.bf16.msra.mxu0 %v1170
    %1186 = vmatpush.bf16.msra.mxu0 %v1168
    %1187 = vmatmul.bf16.gmra.mxu0 %v1174
    %v1188 = vpop.f32.mrf.mxu0
    %v1189 = vadd.f32 0.0, %v1188
    %v1190 = vpop.f32.mrf.mxu0
    %v1191 = vadd.f32 0.0, %v1190
    %1192 = vmatmul.bf16.gmra.mxu0 %v1177
    %v1193 = vpop.f32.mrf.mxu0
    %v1194 = vadd.f32 0.0, %v1193
    %v1195 = vpop.f32.mrf.mxu0
    %v1196 = vadd.f32 0.0, %v1195
    %1197 = vdwg.mxu0
    %v1202 = vunpack.c.l.b16 %v1153
    %v1203 = vunpack.c.l.b16 %v1154
    %v1204 = vunpack.c.l.b16 %v1155
    %v1205 = vunpack.c.l.b16 %v1156
    %v1206 = vpack.c.b16 %v1203, %v1202
    %v1207 = vpack.c.b16 %v1205, %v1204
    %1208 = vrot.lane.b32.xlu0 %v926, 96
    %v1209 = vpop.permute.xlu0 %1208
    %1210 = vrot.lane.b32.xlu0 %v927, 96
    %v1211 = vpop.permute.xlu0 %1210
    %v1215 = vsel %vm690, %v1206, 0
    %v1218 = vsel %vm690, %v1207, 0
    %1220 = vmatpush.bf16.msra.mxu0 0
    %1221 = vmatpush.bf16.msra.mxu0 0
    %1222 = vmatpush.bf16.msra.mxu0 0
    %1223 = vmatpush.bf16.msra.mxu0 0
    %1224 = vmatpush.bf16.msra.mxu0 0
    %1225 = vmatpush.bf16.msra.mxu0 0
    %1226 = vmatpush.bf16.msra.mxu0 %v1211
    %1227 = vmatpush.bf16.msra.mxu0 %v1209
    %1228 = vmatmul.bf16.gmra.mxu0 %v1215
    %v1229 = vpop.f32.mrf.mxu0
    %v1230 = vadd.f32 0.0, %v1229
    %v1231 = vpop.f32.mrf.mxu0
    %v1232 = vadd.f32 0.0, %v1231
    %1233 = vmatmul.bf16.gmra.mxu0 %v1218
    %v1234 = vpop.f32.mrf.mxu0
    %v1235 = vadd.f32 0.0, %v1234
    %v1236 = vpop.f32.mrf.mxu0
    %v1237 = vadd.f32 0.0, %v1236
    %1238 = vdwg.mxu0
    %1239 = vrot.lane.b32.xlu0 %v646, 64
    %v1240 = vpop.permute.xlu0 %1239
    %1241 = vrot.lane.b32.xlu0 %v648, 64
    %v1242 = vpop.permute.xlu0 %1241
    %1243 = vrot.lane.b32.xlu0 %v650, 64
    %v1244 = vpop.permute.xlu0 %1243
    %1245 = vrot.lane.b32.xlu0 %v652, 64
    %v1246 = vpop.permute.xlu0 %1245
    %1247 = vrot.lane.b32.xlu0 %v654, 64
    %v1248 = vpop.permute.xlu0 %1247
    %1249 = vrot.lane.b32.xlu0 %v656, 64
    %v1250 = vpop.permute.xlu0 %1249
    %1251 = vrot.lane.b32.xlu0 %v658, 64
    %v1252 = vpop.permute.xlu0 %1251
    %1253 = vrot.lane.b32.xlu0 %v660, 64
    %v1254 = vpop.permute.xlu0 %1253
    %v1255 = vrot.slane %v1240, 4
    %v1256 = vrot.slane %v1242, 4
    %v1257 = vrot.slane %v1244, 4
    %v1258 = vrot.slane %v1246, 4
    %v1259 = vrot.slane %v1248, 4
    %v1260 = vrot.slane %v1250, 4
    %v1261 = vrot.slane %v1252, 4
    %v1262 = vrot.slane %v1254, 4
    %1263 = vrot.lane.b32.xlu0 %v682, 64
    %v1264 = vpop.permute.xlu0 %1263
    %1265 = vrot.lane.b32.xlu0 %v683, 64
    %v1266 = vpop.permute.xlu0 %1265
    %v1267 = vunpack.c.l.b16 %v1255
    %v1268 = vunpack.c.l.b16 %v1256
    %v1269 = vunpack.c.l.b16 %v1257
    %v1270 = vunpack.c.l.b16 %v1258
    %v1271 = vpack.c.b16 %v1268, %v1267
    %v1272 = vpack.c.b16 %v1270, %v1269
    %v1274 = vsel %vm690, %v1264, 0
    %v1277 = vsel %vm690, %v1266, 0
    %v1280 = vsel %vm690, %v1271, 0
    %v1283 = vsel %vm690, %v1272, 0
    %1285 = vmatpush.bf16.xpose.msra.mxu0 0
    %1286 = vmatpush.bf16.xpose.msra.mxu0 0
    %1287 = vmatpush.bf16.xpose.msra.mxu0 0
    %1288 = vmatpush.bf16.xpose.msra.mxu0 0
    %1289 = vmatpush.bf16.xpose.msra.mxu0 0
    %1290 = vmatpush.bf16.xpose.msra.mxu0 0
    %1291 = vmatpush.bf16.xpose.msra.mxu0 %v1283
    %1292 = vmatpush.bf16.xpose.msra.mxu0 %v1280
    %1293 = vmatmul.bf16.gmra.mxu0 %v1274
    %v1294 = vpop.f32.mrf.mxu0
    %v1295 = vadd.f32 0.0, %v1294
    %v1296 = vpop.f32.mrf.mxu0
    %v1297 = vadd.f32 0.0, %v1296
    %1298 = vmatmul.bf16.gmra.mxu0 %v1277
    %v1299 = vpop.f32.mrf.mxu0
    %v1300 = vadd.f32 0.0, %v1299
    %v1301 = vpop.f32.mrf.mxu0
    %v1302 = vadd.f32 0.0, %v1301
    %1303 = vdwg.mxu0
    %1304 = vrot.lane.b32.xlu0 %v726, 64
    %v1305 = vpop.permute.xlu0 %1304
    %1306 = vrot.lane.b32.xlu0 %v727, 64
    %v1307 = vpop.permute.xlu0 %1306
    %v1308 = vunpack.c.l.b16 %v1259
    %v1309 = vunpack.c.l.b16 %v1260
    %v1310 = vunpack.c.l.b16 %v1261
    %v1311 = vunpack.c.l.b16 %v1262
    %v1312 = vpack.c.b16 %v1309, %v1308
    %v1313 = vpack.c.b16 %v1311, %v1310
    %v1315 = vsel %vm690, %v1305, 0
    %v1318 = vsel %vm690, %v1307, 0
    %v1321 = vsel %vm690, %v1312, 0
    %v1324 = vsel %vm690, %v1313, 0
    %1326 = vmatpush.bf16.xpose.msra.mxu0 0
    %1327 = vmatpush.bf16.xpose.msra.mxu0 0
    %1328 = vmatpush.bf16.xpose.msra.mxu0 0
    %1329 = vmatpush.bf16.xpose.msra.mxu0 0
    %1330 = vmatpush.bf16.xpose.msra.mxu0 0
    %1331 = vmatpush.bf16.xpose.msra.mxu0 0
    %1332 = vmatpush.bf16.xpose.msra.mxu0 %v1324
    %1333 = vmatpush.bf16.xpose.msra.mxu0 %v1321
    %1334 = vmatmul.bf16.gmra.mxu0 %v1315
    %v1335 = vpop.f32.mrf.mxu0
    %v1336 = vadd.f32 0.0, %v1335
    %v1337 = vpop.f32.mrf.mxu0
    %v1338 = vadd.f32 0.0, %v1337
    %1339 = vmatmul.bf16.gmra.mxu0 %v1318
    %v1340 = vpop.f32.mrf.mxu0
    %v1341 = vadd.f32 0.0, %v1340
    %v1342 = vpop.f32.mrf.mxu0
    %v1343 = vadd.f32 0.0, %v1342
    %1344 = vdwg.mxu0
    %v1345 = vsel %vm690, %v1295, -inf
    %1346 = vmax.xlane.f32.xlu0 %v1345
    %v1347 = vpop.xlane.xlu0 %1346
    %v1348 = vsel %vm690, %v1297, -inf
    %1349 = vmax.xlane.f32.xlu0 %v1348
    %v1350 = vpop.xlane.xlu0 %1349
    %v1351 = vsel %vm690, %v1300, -inf
    %1352 = vmax.xlane.f32.xlu0 %v1351
    %v1353 = vpop.xlane.xlu0 %1352
    %v1354 = vsel %vm690, %v1302, -inf
    %1355 = vmax.xlane.f32.xlu0 %v1354
    %v1356 = vpop.xlane.xlu0 %1355
    %v1357 = vsel %vm690, %v1336, -inf
    %1358 = vmax.xlane.f32.xlu0 %v1357
    %v1359 = vpop.xlane.xlu0 %1358
    %v1360 = vsel %vm690, %v1338, -inf
    %1361 = vmax.xlane.f32.xlu0 %v1360
    %v1362 = vpop.xlane.xlu0 %1361
    %v1363 = vsel %vm690, %v1341, -inf
    %1364 = vmax.xlane.f32.xlu0 %v1363
    %v1365 = vpop.xlane.xlu0 %1364
    %v1366 = vsel %vm690, %v1343, -inf
    %1367 = vmax.xlane.f32.xlu0 %v1366
    %v1368 = vpop.xlane.xlu0 %1367
    %v1369 = vsub.f32 %v1295, %v1347
    %v1370 = vsub.f32 %v1297, %v1350
    %v1371 = vsub.f32 %v1300, %v1353
    %v1372 = vsub.f32 %v1302, %v1356
    %v1373 = vsub.f32 %v1336, %v1359
    %v1374 = vsub.f32 %v1338, %v1362
    %v1375 = vsub.f32 %v1341, %v1365
    %v1376 = vsub.f32 %v1343, %v1368
    %v1377 = vmul.f32 %v1369, 1.442695
    %v1378 = vpow.pop %v1377
    %v1379 = vmul.f32 %v1370, 1.442695
    %v1380 = vpow.pop %v1379
    %v1381 = vmul.f32 %v1371, 1.442695
    %v1382 = vpow.pop %v1381
    %v1383 = vmul.f32 %v1372, 1.442695
    %v1384 = vpow.pop %v1383
    %v1385 = vmul.f32 %v1373, 1.442695
    %v1386 = vpow.pop %v1385
    %v1387 = vmul.f32 %v1374, 1.442695
    %v1388 = vpow.pop %v1387
    %v1389 = vmul.f32 %v1375, 1.442695
    %v1390 = vpow.pop %v1389
    %v1391 = vmul.f32 %v1376, 1.442695
    %v1392 = vpow.pop %v1391
    %v1393 = vsel %vm690, %v1378, 0.0
    %1394 = vadd.xlane.f32.xlu0 %v1393
    %v1395 = vpop.xlane.xlu0 %1394
    %v1396 = vsel %vm690, %v1380, 0.0
    %1397 = vadd.xlane.f32.xlu0 %v1396
    %v1398 = vpop.xlane.xlu0 %1397
    %v1399 = vsel %vm690, %v1382, 0.0
    %1400 = vadd.xlane.f32.xlu0 %v1399
    %v1401 = vpop.xlane.xlu0 %1400
    %v1402 = vsel %vm690, %v1384, 0.0
    %1403 = vadd.xlane.f32.xlu0 %v1402
    %v1404 = vpop.xlane.xlu0 %1403
    %v1405 = vsel %vm690, %v1386, 0.0
    %1406 = vadd.xlane.f32.xlu0 %v1405
    %v1407 = vpop.xlane.xlu0 %1406
    %v1408 = vsel %vm690, %v1388, 0.0
    %1409 = vadd.xlane.f32.xlu0 %v1408
    %v1410 = vpop.xlane.xlu0 %1409
    %v1411 = vsel %vm690, %v1390, 0.0
    %1412 = vadd.xlane.f32.xlu0 %v1411
    %v1413 = vpop.xlane.xlu0 %1412
    %v1414 = vsel %vm690, %v1392, 0.0
    %1415 = vadd.xlane.f32.xlu0 %v1414
    %v1416 = vpop.xlane.xlu0 %1415
    %v1417 = vrcp.pop %v1395
    %v1418 = vrcp.pop %v1398
    %v1419 = vrcp.pop %v1401
    %v1420 = vrcp.pop %v1404
    %v1421 = vrcp.pop %v1407
    %v1422 = vrcp.pop %v1410
    %v1423 = vrcp.pop %v1413
    %v1424 = vrcp.pop %v1416
    %v1425 = vmul.f32 %v1378, %v1417
    %v1426 = vmul.f32 %v1380, %v1418
    %v1427 = vmul.f32 %v1382, %v1419
    %v1428 = vmul.f32 %v1384, %v1420
    %v1429 = vmul.f32 %v1386, %v1421
    %v1430 = vmul.f32 %v1388, %v1422
    %v1431 = vmul.f32 %v1390, %v1423
    %v1432 = vmul.f32 %v1392, %v1424
    %v1433 = vpack.c.bf16 %v1425, %v1425
    %v1434 = vpack.c.bf16 %v1426, %v1426
    %v1435 = vpack.c.bf16 %v1427, %v1427
    %v1436 = vpack.c.bf16 %v1428, %v1428
    %v1437 = vpack.c.bf16 %v1429, %v1429
    %v1438 = vpack.c.bf16 %v1430, %v1430
    %v1439 = vpack.c.bf16 %v1431, %v1431
    %v1440 = vpack.c.bf16 %v1432, %v1432
    %v1445 = vunpack.c.l.b16 %v1433
    %v1446 = vunpack.c.l.b16 %v1434
    %v1447 = vunpack.c.l.b16 %v1435
    %v1448 = vunpack.c.l.b16 %v1436
    %v1449 = vpack.c.b16 %v1446, %v1445
    %v1450 = vpack.c.b16 %v1448, %v1447
    %1451 = vrot.lane.b32.xlu0 %v879, 64
    %v1452 = vpop.permute.xlu0 %1451
    %1453 = vrot.lane.b32.xlu0 %v880, 64
    %v1454 = vpop.permute.xlu0 %1453
    %v1458 = vsel %vm690, %v1449, 0
    %v1461 = vsel %vm690, %v1450, 0
    %1463 = vmatpush.bf16.msra.mxu0 0
    %1464 = vmatpush.bf16.msra.mxu0 0
    %1465 = vmatpush.bf16.msra.mxu0 0
    %1466 = vmatpush.bf16.msra.mxu0 0
    %1467 = vmatpush.bf16.msra.mxu0 0
    %1468 = vmatpush.bf16.msra.mxu0 0
    %1469 = vmatpush.bf16.msra.mxu0 %v1454
    %1470 = vmatpush.bf16.msra.mxu0 %v1452
    %1471 = vmatmul.bf16.gmra.mxu0 %v1458
    %v1472 = vpop.f32.mrf.mxu0
    %v1473 = vadd.f32 0.0, %v1472
    %v1474 = vpop.f32.mrf.mxu0
    %v1475 = vadd.f32 0.0, %v1474
    %1476 = vmatmul.bf16.gmra.mxu0 %v1461
    %v1477 = vpop.f32.mrf.mxu0
    %v1478 = vadd.f32 0.0, %v1477
    %v1479 = vpop.f32.mrf.mxu0
    %v1480 = vadd.f32 0.0, %v1479
    %1481 = vdwg.mxu0
    %v1486 = vunpack.c.l.b16 %v1437
    %v1487 = vunpack.c.l.b16 %v1438
    %v1488 = vunpack.c.l.b16 %v1439
    %v1489 = vunpack.c.l.b16 %v1440
    %v1490 = vpack.c.b16 %v1487, %v1486
    %v1491 = vpack.c.b16 %v1489, %v1488
    %1492 = vrot.lane.b32.xlu0 %v926, 64
    %v1493 = vpop.permute.xlu0 %1492
    %1494 = vrot.lane.b32.xlu0 %v927, 64
    %v1495 = vpop.permute.xlu0 %1494
    %v1499 = vsel %vm690, %v1490, 0
    %v1502 = vsel %vm690, %v1491, 0
    %1504 = vmatpush.bf16.msra.mxu0 0
    %1505 = vmatpush.bf16.msra.mxu0 0
    %1506 = vmatpush.bf16.msra.mxu0 0
    %1507 = vmatpush.bf16.msra.mxu0 0
    %1508 = vmatpush.bf16.msra.mxu0 0
    %1509 = vmatpush.bf16.msra.mxu0 0
    %1510 = vmatpush.bf16.msra.mxu0 %v1495
    %1511 = vmatpush.bf16.msra.mxu0 %v1493
    %1512 = vmatmul.bf16.gmra.mxu0 %v1499
    %v1513 = vpop.f32.mrf.mxu0
    %v1514 = vadd.f32 0.0, %v1513
    %v1515 = vpop.f32.mrf.mxu0
    %v1516 = vadd.f32 0.0, %v1515
    %1517 = vmatmul.bf16.gmra.mxu0 %v1502
    %v1518 = vpop.f32.mrf.mxu0
    %v1519 = vadd.f32 0.0, %v1518
    %v1520 = vpop.f32.mrf.mxu0
    %v1521 = vadd.f32 0.0, %v1520
    %1522 = vdwg.mxu0
    %1523 = vrot.lane.b32.xlu0 %v646, 32
    %v1524 = vpop.permute.xlu0 %1523
    %1525 = vrot.lane.b32.xlu0 %v648, 32
    %v1526 = vpop.permute.xlu0 %1525
    %1527 = vrot.lane.b32.xlu0 %v650, 32
    %v1528 = vpop.permute.xlu0 %1527
    %1529 = vrot.lane.b32.xlu0 %v652, 32
    %v1530 = vpop.permute.xlu0 %1529
    %1531 = vrot.lane.b32.xlu0 %v654, 32
    %v1532 = vpop.permute.xlu0 %1531
    %1533 = vrot.lane.b32.xlu0 %v656, 32
    %v1534 = vpop.permute.xlu0 %1533
    %1535 = vrot.lane.b32.xlu0 %v658, 32
    %v1536 = vpop.permute.xlu0 %1535
    %1537 = vrot.lane.b32.xlu0 %v660, 32
    %v1538 = vpop.permute.xlu0 %1537
    %v1539 = vrot.slane %v1524, 4
    %v1540 = vrot.slane %v1526, 4
    %v1541 = vrot.slane %v1528, 4
    %v1542 = vrot.slane %v1530, 4
    %v1543 = vrot.slane %v1532, 4
    %v1544 = vrot.slane %v1534, 4
    %v1545 = vrot.slane %v1536, 4
    %v1546 = vrot.slane %v1538, 4
    %1547 = vrot.lane.b32.xlu0 %v682, 32
    %v1548 = vpop.permute.xlu0 %1547
    %1549 = vrot.lane.b32.xlu0 %v683, 32
    %v1550 = vpop.permute.xlu0 %1549
    %v1551 = vunpack.c.l.b16 %v1539
    %v1552 = vunpack.c.l.b16 %v1540
    %v1553 = vunpack.c.l.b16 %v1541
    %v1554 = vunpack.c.l.b16 %v1542
    %v1555 = vpack.c.b16 %v1552, %v1551
    %v1556 = vpack.c.b16 %v1554, %v1553
    %v1558 = vsel %vm690, %v1548, 0
    %v1561 = vsel %vm690, %v1550, 0
    %v1564 = vsel %vm690, %v1555, 0
    %v1567 = vsel %vm690, %v1556, 0
    %1569 = vmatpush.bf16.xpose.msra.mxu0 0
    %1570 = vmatpush.bf16.xpose.msra.mxu0 0
    %1571 = vmatpush.bf16.xpose.msra.mxu0 0
    %1572 = vmatpush.bf16.xpose.msra.mxu0 0
    %1573 = vmatpush.bf16.xpose.msra.mxu0 0
    %1574 = vmatpush.bf16.xpose.msra.mxu0 0
    %1575 = vmatpush.bf16.xpose.msra.mxu0 %v1567
    %1576 = vmatpush.bf16.xpose.msra.mxu0 %v1564
    %1577 = vmatmul.bf16.gmra.mxu0 %v1558
    %v1578 = vpop.f32.mrf.mxu0
    %v1579 = vadd.f32 0.0, %v1578
    %v1580 = vpop.f32.mrf.mxu0
    %v1581 = vadd.f32 0.0, %v1580
    %1582 = vmatmul.bf16.gmra.mxu0 %v1561
    %v1583 = vpop.f32.mrf.mxu0
    %v1584 = vadd.f32 0.0, %v1583
    %v1585 = vpop.f32.mrf.mxu0
    %v1586 = vadd.f32 0.0, %v1585
    %1587 = vdwg.mxu0
    %1588 = vrot.lane.b32.xlu0 %v726, 32
    %v1589 = vpop.permute.xlu0 %1588
    %1590 = vrot.lane.b32.xlu0 %v727, 32
    %v1591 = vpop.permute.xlu0 %1590
    %v1592 = vunpack.c.l.b16 %v1543
    %v1593 = vunpack.c.l.b16 %v1544
    %v1594 = vunpack.c.l.b16 %v1545
    %v1595 = vunpack.c.l.b16 %v1546
    %v1596 = vpack.c.b16 %v1593, %v1592
    %v1597 = vpack.c.b16 %v1595, %v1594
    %v1599 = vsel %vm690, %v1589, 0
    %v1602 = vsel %vm690, %v1591, 0
    %v1605 = vsel %vm690, %v1596, 0
    %v1608 = vsel %vm690, %v1597, 0
    %1610 = vmatpush.bf16.xpose.msra.mxu0 0
    %1611 = vmatpush.bf16.xpose.msra.mxu0 0
    %1612 = vmatpush.bf16.xpose.msra.mxu0 0
    %1613 = vmatpush.bf16.xpose.msra.mxu0 0
    %1614 = vmatpush.bf16.xpose.msra.mxu0 0
    %1615 = vmatpush.bf16.xpose.msra.mxu0 0
    %1616 = vmatpush.bf16.xpose.msra.mxu0 %v1608
    %1617 = vmatpush.bf16.xpose.msra.mxu0 %v1605
    %1618 = vmatmul.bf16.gmra.mxu0 %v1599
    %v1619 = vpop.f32.mrf.mxu0
    %v1620 = vadd.f32 0.0, %v1619
    %v1621 = vpop.f32.mrf.mxu0
    %v1622 = vadd.f32 0.0, %v1621
    %1623 = vmatmul.bf16.gmra.mxu0 %v1602
    %v1624 = vpop.f32.mrf.mxu0
    %v1625 = vadd.f32 0.0, %v1624
    %v1626 = vpop.f32.mrf.mxu0
    %v1627 = vadd.f32 0.0, %v1626
    %1628 = vdwg.mxu0
    %v1629 = vsel %vm690, %v1579, -inf
    %1630 = vmax.xlane.f32.xlu0 %v1629
    %v1631 = vpop.xlane.xlu0 %1630
    %v1632 = vsel %vm690, %v1581, -inf
    %1633 = vmax.xlane.f32.xlu0 %v1632
    %v1634 = vpop.xlane.xlu0 %1633
    %v1635 = vsel %vm690, %v1584, -inf
    %1636 = vmax.xlane.f32.xlu0 %v1635
    %v1637 = vpop.xlane.xlu0 %1636
    %v1638 = vsel %vm690, %v1586, -inf
    %1639 = vmax.xlane.f32.xlu0 %v1638
    %v1640 = vpop.xlane.xlu0 %1639
    %v1641 = vsel %vm690, %v1620, -inf
    %1642 = vmax.xlane.f32.xlu0 %v1641
    %v1643 = vpop.xlane.xlu0 %1642
    %v1644 = vsel %vm690, %v1622, -inf
    %1645 = vmax.xlane.f32.xlu0 %v1644
    %v1646 = vpop.xlane.xlu0 %1645
    %v1647 = vsel %vm690, %v1625, -inf
    %1648 = vmax.xlane.f32.xlu0 %v1647
    %v1649 = vpop.xlane.xlu0 %1648
    %v1650 = vsel %vm690, %v1627, -inf
    %1651 = vmax.xlane.f32.xlu0 %v1650
    %v1652 = vpop.xlane.xlu0 %1651
    %v1653 = vsub.f32 %v1579, %v1631
    %v1654 = vsub.f32 %v1581, %v1634
    %v1655 = vsub.f32 %v1584, %v1637
    %v1656 = vsub.f32 %v1586, %v1640
    %v1657 = vsub.f32 %v1620, %v1643
    %v1658 = vsub.f32 %v1622, %v1646
    %v1659 = vsub.f32 %v1625, %v1649
    %v1660 = vsub.f32 %v1627, %v1652
    %v1661 = vmul.f32 %v1653, 1.442695
    %v1662 = vpow.pop %v1661
    %v1663 = vmul.f32 %v1654, 1.442695
    %v1664 = vpow.pop %v1663
    %v1665 = vmul.f32 %v1655, 1.442695
    %v1666 = vpow.pop %v1665
    %v1667 = vmul.f32 %v1656, 1.442695
    %v1668 = vpow.pop %v1667
    %v1669 = vmul.f32 %v1657, 1.442695
    %v1670 = vpow.pop %v1669
    %v1671 = vmul.f32 %v1658, 1.442695
    %v1672 = vpow.pop %v1671
    %v1673 = vmul.f32 %v1659, 1.442695
    %v1674 = vpow.pop %v1673
    %v1675 = vmul.f32 %v1660, 1.442695
    %v1676 = vpow.pop %v1675
    %v1677 = vsel %vm690, %v1662, 0.0
    %1678 = vadd.xlane.f32.xlu0 %v1677
    %v1679 = vpop.xlane.xlu0 %1678
    %v1680 = vsel %vm690, %v1664, 0.0
    %1681 = vadd.xlane.f32.xlu0 %v1680
    %v1682 = vpop.xlane.xlu0 %1681
    %v1683 = vsel %vm690, %v1666, 0.0
    %1684 = vadd.xlane.f32.xlu0 %v1683
    %v1685 = vpop.xlane.xlu0 %1684
    %v1686 = vsel %vm690, %v1668, 0.0
    %1687 = vadd.xlane.f32.xlu0 %v1686
    %v1688 = vpop.xlane.xlu0 %1687
    %v1689 = vsel %vm690, %v1670, 0.0
    %1690 = vadd.xlane.f32.xlu0 %v1689
    %v1691 = vpop.xlane.xlu0 %1690
    %v1692 = vsel %vm690, %v1672, 0.0
    %1693 = vadd.xlane.f32.xlu0 %v1692
    %v1694 = vpop.xlane.xlu0 %1693
    %v1695 = vsel %vm690, %v1674, 0.0
    %1696 = vadd.xlane.f32.xlu0 %v1695
    %v1697 = vpop.xlane.xlu0 %1696
    %v1698 = vsel %vm690, %v1676, 0.0
    %1699 = vadd.xlane.f32.xlu0 %v1698
    %v1700 = vpop.xlane.xlu0 %1699
    %v1701 = vrcp.pop %v1679
    %v1702 = vrcp.pop %v1682
    %v1703 = vrcp.pop %v1685
    %v1704 = vrcp.pop %v1688
    %v1705 = vrcp.pop %v1691
    %v1706 = vrcp.pop %v1694
    %v1707 = vrcp.pop %v1697
    %v1708 = vrcp.pop %v1700
    %v1709 = vmul.f32 %v1662, %v1701
    %v1710 = vmul.f32 %v1664, %v1702
    %v1711 = vmul.f32 %v1666, %v1703
    %v1712 = vmul.f32 %v1668, %v1704
    %v1713 = vmul.f32 %v1670, %v1705
    %v1714 = vmul.f32 %v1672, %v1706
    %v1715 = vmul.f32 %v1674, %v1707
    %v1716 = vmul.f32 %v1676, %v1708
    %v1717 = vpack.c.bf16 %v1709, %v1709
    %v1718 = vpack.c.bf16 %v1710, %v1710
    %v1719 = vpack.c.bf16 %v1711, %v1711
    %v1720 = vpack.c.bf16 %v1712, %v1712
    %v1721 = vpack.c.bf16 %v1713, %v1713
    %v1722 = vpack.c.bf16 %v1714, %v1714
    %v1723 = vpack.c.bf16 %v1715, %v1715
    %v1724 = vpack.c.bf16 %v1716, %v1716
    %v1729 = vunpack.c.l.b16 %v1717
    %v1730 = vunpack.c.l.b16 %v1718
    %v1731 = vunpack.c.l.b16 %v1719
    %v1732 = vunpack.c.l.b16 %v1720
    %v1733 = vpack.c.b16 %v1730, %v1729
    %v1734 = vpack.c.b16 %v1732, %v1731
    %1735 = vrot.lane.b32.xlu0 %v879, 32
    %v1736 = vpop.permute.xlu0 %1735
    %1737 = vrot.lane.b32.xlu0 %v880, 32
    %v1738 = vpop.permute.xlu0 %1737
    %v1742 = vsel %vm690, %v1733, 0
    %v1745 = vsel %vm690, %v1734, 0
    %1747 = vmatpush.bf16.msra.mxu0 0
    %1748 = vmatpush.bf16.msra.mxu0 0
    %1749 = vmatpush.bf16.msra.mxu0 0
    %1750 = vmatpush.bf16.msra.mxu0 0
    %1751 = vmatpush.bf16.msra.mxu0 0
    %1752 = vmatpush.bf16.msra.mxu0 0
    %1753 = vmatpush.bf16.msra.mxu0 %v1738
    %1754 = vmatpush.bf16.msra.mxu0 %v1736
    %1755 = vmatmul.bf16.gmra.mxu0 %v1742
    %v1756 = vpop.f32.mrf.mxu0
    %v1757 = vadd.f32 0.0, %v1756
    %v1758 = vpop.f32.mrf.mxu0
    %v1759 = vadd.f32 0.0, %v1758
    %1760 = vmatmul.bf16.gmra.mxu0 %v1745
    %v1761 = vpop.f32.mrf.mxu0
    %v1762 = vadd.f32 0.0, %v1761
    %v1763 = vpop.f32.mrf.mxu0
    %v1764 = vadd.f32 0.0, %v1763
    %1765 = vdwg.mxu0
    %v1770 = vunpack.c.l.b16 %v1721
    %v1771 = vunpack.c.l.b16 %v1722
    %v1772 = vunpack.c.l.b16 %v1723
    %v1773 = vunpack.c.l.b16 %v1724
    %v1774 = vpack.c.b16 %v1771, %v1770
    %v1775 = vpack.c.b16 %v1773, %v1772
    %1776 = vrot.lane.b32.xlu0 %v926, 32
    %v1777 = vpop.permute.xlu0 %1776
    %1778 = vrot.lane.b32.xlu0 %v927, 32
    %v1779 = vpop.permute.xlu0 %1778
    %v1783 = vsel %vm690, %v1774, 0
    %v1786 = vsel %vm690, %v1775, 0
    %1788 = vmatpush.bf16.msra.mxu0 0
    %1789 = vmatpush.bf16.msra.mxu0 0
    %1790 = vmatpush.bf16.msra.mxu0 0
    %1791 = vmatpush.bf16.msra.mxu0 0
    %1792 = vmatpush.bf16.msra.mxu0 0
    %1793 = vmatpush.bf16.msra.mxu0 0
    %1794 = vmatpush.bf16.msra.mxu0 %v1779
    %1795 = vmatpush.bf16.msra.mxu0 %v1777
    %1796 = vmatmul.bf16.gmra.mxu0 %v1783
    %v1797 = vpop.f32.mrf.mxu0
    %v1798 = vadd.f32 0.0, %v1797
    %v1799 = vpop.f32.mrf.mxu0
    %v1800 = vadd.f32 0.0, %v1799
    %1801 = vmatmul.bf16.gmra.mxu0 %v1786
    %v1802 = vpop.f32.mrf.mxu0
    %v1803 = vadd.f32 0.0, %v1802
    %v1804 = vpop.f32.mrf.mxu0
    %v1805 = vadd.f32 0.0, %v1804
    %1806 = vdwg.mxu0
    %1815 = vrot.lane.b32.xlu0 %v1189, 32
    %v1816 = vpop.permute.xlu0 %1815
    %1817 = vrot.lane.b32.xlu0 %v1191, 32
    %v1818 = vpop.permute.xlu0 %1817
    %1819 = vrot.lane.b32.xlu0 %v1194, 32
    %v1820 = vpop.permute.xlu0 %1819
    %1821 = vrot.lane.b32.xlu0 %v1196, 32
    %v1822 = vpop.permute.xlu0 %1821
    %1823 = vrot.lane.b32.xlu0 %v1230, 32
    %v1824 = vpop.permute.xlu0 %1823
    %1825 = vrot.lane.b32.xlu0 %v1232, 32
    %v1826 = vpop.permute.xlu0 %1825
    %1827 = vrot.lane.b32.xlu0 %v1235, 32
    %v1828 = vpop.permute.xlu0 %1827
    %1829 = vrot.lane.b32.xlu0 %v1237, 32
    %v1830 = vpop.permute.xlu0 %1829
    %1847 = vrot.lane.b32.xlu0 %v1473, 64
    %v1848 = vpop.permute.xlu0 %1847
    %1849 = vrot.lane.b32.xlu0 %v1475, 64
    %v1850 = vpop.permute.xlu0 %1849
    %1851 = vrot.lane.b32.xlu0 %v1478, 64
    %v1852 = vpop.permute.xlu0 %1851
    %1853 = vrot.lane.b32.xlu0 %v1480, 64
    %v1854 = vpop.permute.xlu0 %1853
    %1855 = vrot.lane.b32.xlu0 %v1514, 64
    %v1856 = vpop.permute.xlu0 %1855
    %1857 = vrot.lane.b32.xlu0 %v1516, 64
    %v1858 = vpop.permute.xlu0 %1857
    %1859 = vrot.lane.b32.xlu0 %v1519, 64
    %v1860 = vpop.permute.xlu0 %1859
    %1861 = vrot.lane.b32.xlu0 %v1521, 64
    %v1862 = vpop.permute.xlu0 %1861
    %1879 = vrot.lane.b32.xlu0 %v1757, 96
    %v1880 = vpop.permute.xlu0 %1879
    %1881 = vrot.lane.b32.xlu0 %v1759, 96
    %v1882 = vpop.permute.xlu0 %1881
    %1883 = vrot.lane.b32.xlu0 %v1762, 96
    %v1884 = vpop.permute.xlu0 %1883
    %1885 = vrot.lane.b32.xlu0 %v1764, 96
    %v1886 = vpop.permute.xlu0 %1885
    %1887 = vrot.lane.b32.xlu0 %v1798, 96
    %v1888 = vpop.permute.xlu0 %1887
    %1889 = vrot.lane.b32.xlu0 %v1800, 96
    %v1890 = vpop.permute.xlu0 %1889
    %1891 = vrot.lane.b32.xlu0 %v1803, 96
    %v1892 = vpop.permute.xlu0 %1891
    %1893 = vrot.lane.b32.xlu0 %v1805, 96
    %v1894 = vpop.permute.xlu0 %1893
    %v1903 = vsel %vm690, %v899, %v1816
    %v1904 = vsel %vm690, %v901, %v1818
    %v1905 = vsel %vm690, %v904, %v1820
    %v1906 = vsel %vm690, %v906, %v1822
    %v1907 = vsel %vm690, %v946, %v1824
    %v1908 = vsel %vm690, %v948, %v1826
    %v1909 = vsel %vm690, %v951, %v1828
    %v1910 = vsel %vm690, %v953, %v1830
    %vm1911 = vcmask 523264
    %v1912 = vsel %vm1911, %v1903, %v1848
    %v1913 = vsel %vm1911, %v1904, %v1850
    %v1914 = vsel %vm1911, %v1905, %v1852
    %v1915 = vsel %vm1911, %v1906, %v1854
    %v1916 = vsel %vm1911, %v1907, %v1856
    %v1917 = vsel %vm1911, %v1908, %v1858
    %v1918 = vsel %vm1911, %v1909, %v1860
    %v1919 = vsel %vm1911, %v1910, %v1862
    %vm1920 = vcmask 785408
    %v1921 = vsel %vm1920, %v1912, %v1880
    %v1922 = vsel %vm1920, %v1913, %v1882
    %v1923 = vsel %vm1920, %v1914, %v1884
    %v1924 = vsel %vm1920, %v1915, %v1886
    %v1925 = vsel %vm1920, %v1916, %v1888
    %v1926 = vsel %vm1920, %v1917, %v1890
    %v1927 = vsel %vm1920, %v1918, %v1892
    %v1928 = vsel %vm1920, %v1919, %v1894
    %v1929 = vpack.c.bf16 %v1922, %v1921
    %v1930 = vpack.c.bf16 %v1924, %v1923
    %v1931 = vpack.c.bf16 %v1926, %v1925
    %v1932 = vpack.c.bf16 %v1928, %v1927
    %v1933 = vld [vmem:[%s5] sm:$0xf]
    %v1934 = vld [vmem:[%s5 + $0x4] sm:$0xf]
    %v1935 = vld [vmem:[%s5 + $0x8] sm:$0xf]
    %v1936 = vld [vmem:[%s5 + $0xc] sm:$0xf]
    %v1937 = vld [vmem:[%s5 + $0x10] sm:$0xf]
    %v1938 = vld [vmem:[%s5 + $0x14] sm:$0xf]
    %v1939 = vld [vmem:[%s5 + $0x18] sm:$0xf]
    %v1940 = vld [vmem:[%s5 + $0x1c] sm:$0xf]
    %v1941 = vld [vmem:[%s5 + $0x20] sm:$0xf]
    %v1942 = vld [vmem:[%s5 + $0x24] sm:$0xf]
    %v1943 = vld [vmem:[%s5 + $0x28] sm:$0xf]
    %v1944 = vld [vmem:[%s5 + $0x2c] sm:$0xf]
    %v1945 = vld [vmem:[%s5 + $0x30] sm:$0xf]
    %v1946 = vld [vmem:[%s5 + $0x34] sm:$0xf]
    %v1947 = vld [vmem:[%s5 + $0x38] sm:$0xf]
    %v1948 = vld [vmem:[%s5 + $0x3c] sm:$0xf]
    %v1949 = vld [vmem:[%s6] sm:$0x1]
    %v1951 = vperm.slane %v1949, 0
    %v1969 = vunpack.c.l.b16 %v1933
    %v1970 = vunpack.c.l.b16 %v1934
    %v1971 = vunpack.c.l.b16 %v1935
    %v1972 = vunpack.c.l.b16 %v1936
    %v1973 = vunpack.c.l.b16 %v1937
    %v1974 = vunpack.c.l.b16 %v1938
    %v1975 = vunpack.c.l.b16 %v1939
    %v1976 = vunpack.c.l.b16 %v1940
    %v1977 = vunpack.c.l.b16 %v1941
    %v1978 = vunpack.c.l.b16 %v1942
    %v1979 = vunpack.c.l.b16 %v1943
    %v1980 = vunpack.c.l.b16 %v1944
    %v1981 = vunpack.c.l.b16 %v1945
    %v1982 = vunpack.c.l.b16 %v1946
    %v1983 = vunpack.c.l.b16 %v1947
    %v1984 = vunpack.c.l.b16 %v1948
    %v1985 = vpack.c.b16 %v1970, %v1969
    %v1986 = vpack.c.b16 %v1972, %v1971
    %v1987 = vpack.c.b16 %v1974, %v1973
    %v1988 = vpack.c.b16 %v1976, %v1975
    %v1989 = vpack.c.b16 %v1978, %v1977
    %v1990 = vpack.c.b16 %v1980, %v1979
    %v1991 = vpack.c.b16 %v1982, %v1981
    %v1992 = vpack.c.b16 %v1984, %v1983
    %2001 = vmatpush.bf16.msra.mxu0 %v1992
    %2002 = vmatpush.bf16.msra.mxu0 %v1991
    %2003 = vmatpush.bf16.msra.mxu0 %v1990
    %2004 = vmatpush.bf16.msra.mxu0 %v1989
    %2005 = vmatpush.bf16.msra.mxu0 %v1988
    %2006 = vmatpush.bf16.msra.mxu0 %v1987
    %2007 = vmatpush.bf16.msra.mxu0 %v1986
    %2008 = vmatpush.bf16.msra.mxu0 %v1985
    %2009 = vmatmul.bf16.gmra.mxu0 %v1929
    %v2010 = vpop.f32.mrf.mxu0
    %v2011 = vadd.f32 %v1951, %v2010
    %v2012 = vpop.f32.mrf.mxu0
    %v2013 = vadd.f32 %v1951, %v2012
    %2014 = vmatmul.bf16.gmra.mxu0 %v1930
    %v2015 = vpop.f32.mrf.mxu0
    %v2016 = vadd.f32 %v1951, %v2015
    %v2017 = vpop.f32.mrf.mxu0
    %v2018 = vadd.f32 %v1951, %v2017
    %2019 = vmatmul.bf16.gmra.mxu0 %v1931
    %v2020 = vpop.f32.mrf.mxu0
    %v2021 = vadd.f32 %v1951, %v2020
    %v2022 = vpop.f32.mrf.mxu0
    %v2023 = vadd.f32 %v1951, %v2022
    %2024 = vmatmul.bf16.gmra.mxu0 %v1932
    %v2025 = vpop.f32.mrf.mxu0
    %v2026 = vadd.f32 %v1951, %v2025
    %v2027 = vpop.f32.mrf.mxu0
    %v2028 = vadd.f32 %v1951, %v2027
    %2029 = vdwg.mxu0
    %v2030 = vadd.f32 %v379, %v2011
    %v2031 = vadd.f32 %v380, %v2013
    %v2032 = vadd.f32 %v381, %v2016
    %v2033 = vadd.f32 %v382, %v2018
    %v2034 = vadd.f32 %v383, %v2021
    %v2035 = vadd.f32 %v384, %v2023
    %v2036 = vadd.f32 %v385, %v2026
    %v2037 = vadd.f32 %v386, %v2028
    %v2038 = vld [vmem:[%s7] sm:$0x1]
    %v2039 = vld [vmem:[%s8] sm:$0x1]
    %2040 = vadd.xlane.f32.xlu0 %v2030
    %v2041 = vpop.xlane.xlu0 %2040
    %2042 = vadd.xlane.f32.xlu0 %v2031
    %v2043 = vpop.xlane.xlu0 %2042
    %2044 = vadd.xlane.f32.xlu0 %v2032
    %v2045 = vpop.xlane.xlu0 %2044
    %2046 = vadd.xlane.f32.xlu0 %v2033
    %v2047 = vpop.xlane.xlu0 %2046
    %2048 = vadd.xlane.f32.xlu0 %v2034
    %v2049 = vpop.xlane.xlu0 %2048
    %2050 = vadd.xlane.f32.xlu0 %v2035
    %v2051 = vpop.xlane.xlu0 %2050
    %2052 = vadd.xlane.f32.xlu0 %v2036
    %v2053 = vpop.xlane.xlu0 %2052
    %2054 = vadd.xlane.f32.xlu0 %v2037
    %v2055 = vpop.xlane.xlu0 %2054
    %v2056 = vrcp.pop 128.0
    %v2057 = vmul.f32 128.0, %v2056
    %v2058 = vsub.f32 1.0, %v2057
    %v2059 = vmul.f32 %v2056, %v2058
    %v2060 = vadd.f32 %v2056, %v2059
    %vm2061 = vweird.f32 %v2056
    %v2062 = vsel %vm2061, %v2056, %v2060
    %v2063 = vmul.f32 %v2041, %v2062
    %v2064 = vmul.f32 %v2043, %v2062
    %v2065 = vmul.f32 %v2045, %v2062
    %v2066 = vmul.f32 %v2047, %v2062
    %v2067 = vmul.f32 %v2049, %v2062
    %v2068 = vmul.f32 %v2051, %v2062
    %v2069 = vmul.f32 %v2053, %v2062
    %v2070 = vmul.f32 %v2055, %v2062
    %v2071 = vsub.f32 %v2030, %v2063
    %v2072 = vsub.f32 %v2031, %v2064
    %v2073 = vsub.f32 %v2032, %v2065
    %v2074 = vsub.f32 %v2033, %v2066
    %v2075 = vsub.f32 %v2034, %v2067
    %v2076 = vsub.f32 %v2035, %v2068
    %v2077 = vsub.f32 %v2036, %v2069
    %v2078 = vsub.f32 %v2037, %v2070
    %v2079 = vmul.f32 %v2071, %v2071
    %v2080 = vmul.f32 %v2072, %v2072
    %v2081 = vmul.f32 %v2073, %v2073
    %v2082 = vmul.f32 %v2074, %v2074
    %v2083 = vmul.f32 %v2075, %v2075
    %v2084 = vmul.f32 %v2076, %v2076
    %v2085 = vmul.f32 %v2077, %v2077
    %v2086 = vmul.f32 %v2078, %v2078
    %2087 = vadd.xlane.f32.xlu0 %v2079
    %v2088 = vpop.xlane.xlu0 %2087
    %2089 = vadd.xlane.f32.xlu0 %v2080
    %v2090 = vpop.xlane.xlu0 %2089
    %2091 = vadd.xlane.f32.xlu0 %v2081
    %v2092 = vpop.xlane.xlu0 %2091
    %2093 = vadd.xlane.f32.xlu0 %v2082
    %v2094 = vpop.xlane.xlu0 %2093
    %2095 = vadd.xlane.f32.xlu0 %v2083
    %v2096 = vpop.xlane.xlu0 %2095
    %2097 = vadd.xlane.f32.xlu0 %v2084
    %v2098 = vpop.xlane.xlu0 %2097
    %2099 = vadd.xlane.f32.xlu0 %v2085
    %v2100 = vpop.xlane.xlu0 %2099
    %2101 = vadd.xlane.f32.xlu0 %v2086
    %v2102 = vpop.xlane.xlu0 %2101
    %v2103 = vmul.f32 %v2088, %v2062
    %v2104 = vmul.f32 %v2090, %v2062
    %v2105 = vmul.f32 %v2092, %v2062
    %v2106 = vmul.f32 %v2094, %v2062
    %v2107 = vmul.f32 %v2096, %v2062
    %v2108 = vmul.f32 %v2098, %v2062
    %v2109 = vmul.f32 %v2100, %v2062
    %v2110 = vmul.f32 %v2102, %v2062
    %v2111 = vadd.f32 %v2103, 1e-05
    %v2112 = vadd.f32 %v2104, 1e-05
    %v2113 = vadd.f32 %v2105, 1e-05
    %v2114 = vadd.f32 %v2106, 1e-05
    %v2115 = vadd.f32 %v2107, 1e-05
    %v2116 = vadd.f32 %v2108, 1e-05
    %v2117 = vadd.f32 %v2109, 1e-05
    %v2118 = vadd.f32 %v2110, 1e-05
    %v2119 = vrsqrt.pop %v2111
    %v2120 = vmul.f32 %v2119, %v2111
    %v2121 = vmul.f32 %v2120, %v2119
    %v2122 = vmul.f32 0.5, %v2121
    %v2123 = vsub.f32 1.5, %v2122
    %v2124 = vmul.f32 %v2119, %v2123
    %vm2125 = vweird.f32 %v2111
    %vm2126 = vweird.f32 %v2119
    %vm2127 = vmor %vm2125, %vm2126
    %v2128 = vsel %vm2127, %v2119, %v2124
    %v2129 = vrsqrt.pop %v2112
    %v2130 = vmul.f32 %v2129, %v2112
    %v2131 = vmul.f32 %v2130, %v2129
    %v2132 = vmul.f32 0.5, %v2131
    %v2133 = vsub.f32 1.5, %v2132
    %v2134 = vmul.f32 %v2129, %v2133
    %vm2135 = vweird.f32 %v2112
    %vm2136 = vweird.f32 %v2129
    %vm2137 = vmor %vm2135, %vm2136
    %v2138 = vsel %vm2137, %v2129, %v2134
    %v2139 = vrsqrt.pop %v2113
    %v2140 = vmul.f32 %v2139, %v2113
    %v2141 = vmul.f32 %v2140, %v2139
    %v2142 = vmul.f32 0.5, %v2141
    %v2143 = vsub.f32 1.5, %v2142
    %v2144 = vmul.f32 %v2139, %v2143
    %vm2145 = vweird.f32 %v2113
    %vm2146 = vweird.f32 %v2139
    %vm2147 = vmor %vm2145, %vm2146
    %v2148 = vsel %vm2147, %v2139, %v2144
    %v2149 = vrsqrt.pop %v2114
    %v2150 = vmul.f32 %v2149, %v2114
    %v2151 = vmul.f32 %v2150, %v2149
    %v2152 = vmul.f32 0.5, %v2151
    %v2153 = vsub.f32 1.5, %v2152
    %v2154 = vmul.f32 %v2149, %v2153
    %vm2155 = vweird.f32 %v2114
    %vm2156 = vweird.f32 %v2149
    %vm2157 = vmor %vm2155, %vm2156
    %v2158 = vsel %vm2157, %v2149, %v2154
    %v2159 = vrsqrt.pop %v2115
    %v2160 = vmul.f32 %v2159, %v2115
    %v2161 = vmul.f32 %v2160, %v2159
    %v2162 = vmul.f32 0.5, %v2161
    %v2163 = vsub.f32 1.5, %v2162
    %v2164 = vmul.f32 %v2159, %v2163
    %vm2165 = vweird.f32 %v2115
    %vm2166 = vweird.f32 %v2159
    %vm2167 = vmor %vm2165, %vm2166
    %v2168 = vsel %vm2167, %v2159, %v2164
    %v2169 = vrsqrt.pop %v2116
    %v2170 = vmul.f32 %v2169, %v2116
    %v2171 = vmul.f32 %v2170, %v2169
    %v2172 = vmul.f32 0.5, %v2171
    %v2173 = vsub.f32 1.5, %v2172
    %v2174 = vmul.f32 %v2169, %v2173
    %vm2175 = vweird.f32 %v2116
    %vm2176 = vweird.f32 %v2169
    %vm2177 = vmor %vm2175, %vm2176
    %v2178 = vsel %vm2177, %v2169, %v2174
    %v2179 = vrsqrt.pop %v2117
    %v2180 = vmul.f32 %v2179, %v2117
    %v2181 = vmul.f32 %v2180, %v2179
    %v2182 = vmul.f32 0.5, %v2181
    %v2183 = vsub.f32 1.5, %v2182
    %v2184 = vmul.f32 %v2179, %v2183
    %vm2185 = vweird.f32 %v2117
    %vm2186 = vweird.f32 %v2179
    %vm2187 = vmor %vm2185, %vm2186
    %v2188 = vsel %vm2187, %v2179, %v2184
    %v2189 = vrsqrt.pop %v2118
    %v2190 = vmul.f32 %v2189, %v2118
    %v2191 = vmul.f32 %v2190, %v2189
    %v2192 = vmul.f32 0.5, %v2191
    %v2193 = vsub.f32 1.5, %v2192
    %v2194 = vmul.f32 %v2189, %v2193
    %vm2195 = vweird.f32 %v2118
    %vm2196 = vweird.f32 %v2189
    %vm2197 = vmor %vm2195, %vm2196
    %v2198 = vsel %vm2197, %v2189, %v2194
    %v2199 = vmul.f32 %v2071, %v2128
    %v2200 = vmul.f32 %v2072, %v2138
    %v2201 = vmul.f32 %v2073, %v2148
    %v2202 = vmul.f32 %v2074, %v2158
    %v2203 = vmul.f32 %v2075, %v2168
    %v2204 = vmul.f32 %v2076, %v2178
    %v2205 = vmul.f32 %v2077, %v2188
    %v2206 = vmul.f32 %v2078, %v2198
    %v2208 = vperm.slane %v2038, 0
    %v2210 = vmul.f32 %v2199, %v2208
    %v2211 = vmul.f32 %v2200, %v2208
    %v2212 = vmul.f32 %v2201, %v2208
    %v2213 = vmul.f32 %v2202, %v2208
    %v2214 = vmul.f32 %v2203, %v2208
    %v2215 = vmul.f32 %v2204, %v2208
    %v2216 = vmul.f32 %v2205, %v2208
    %v2217 = vmul.f32 %v2206, %v2208
    %v2219 = vperm.slane %v2039, 0
    %v2221 = vadd.f32 %v2210, %v2219
    %v2222 = vadd.f32 %v2211, %v2219
    %v2223 = vadd.f32 %v2212, %v2219
    %v2224 = vadd.f32 %v2213, %v2219
    %v2225 = vadd.f32 %v2214, %v2219
    %v2226 = vadd.f32 %v2215, %v2219
    %v2227 = vadd.f32 %v2216, %v2219
    %v2228 = vadd.f32 %v2217, %v2219
    %v2229 = vpack.c.bf16 %v2222, %v2221
    %v2230 = vpack.c.bf16 %v2224, %v2223
    %v2231 = vpack.c.bf16 %v2226, %v2225
    %v2232 = vpack.c.bf16 %v2228, %v2227
    %v2233 = vld [vmem:[%s9] sm:$0xff]
    %v2234 = vld [vmem:[%s9 + $0x8] sm:$0xff]
    %v2235 = vld [vmem:[%s9 + $0x10] sm:$0xff]
    %v2236 = vld [vmem:[%s9 + $0x18] sm:$0xff]
    %v2237 = vld [vmem:[%s9 + $0x20] sm:$0xff]
    %v2238 = vld [vmem:[%s9 + $0x28] sm:$0xff]
    %v2239 = vld [vmem:[%s9 + $0x30] sm:$0xff]
    %v2240 = vld [vmem:[%s9 + $0x38] sm:$0xff]
    %v2241 = vld [vmem:[%s9 + $0x40] sm:$0xff]
    %v2242 = vld [vmem:[%s9 + $0x48] sm:$0xff]
    %v2243 = vld [vmem:[%s9 + $0x50] sm:$0xff]
    %v2244 = vld [vmem:[%s9 + $0x58] sm:$0xff]
    %v2245 = vld [vmem:[%s9 + $0x60] sm:$0xff]
    %v2246 = vld [vmem:[%s9 + $0x68] sm:$0xff]
    %v2247 = vld [vmem:[%s9 + $0x70] sm:$0xff]
    %v2248 = vld [vmem:[%s9 + $0x78] sm:$0xff]
    %v2249 = vld [vmem:[%s9 + $0x80] sm:$0xff]
    %v2250 = vld [vmem:[%s9 + $0x88] sm:$0xff]
    %v2251 = vld [vmem:[%s9 + $0x90] sm:$0xff]
    %v2252 = vld [vmem:[%s9 + $0x98] sm:$0xff]
    %v2253 = vld [vmem:[%s9 + $0xa0] sm:$0xff]
    %v2254 = vld [vmem:[%s9 + $0xa8] sm:$0xff]
    %v2255 = vld [vmem:[%s9 + $0xb0] sm:$0xff]
    %v2256 = vld [vmem:[%s9 + $0xb8] sm:$0xff]
    %v2257 = vld [vmem:[%s9 + $0xc0] sm:$0xff]
    %v2258 = vld [vmem:[%s9 + $0xc8] sm:$0xff]
    %v2259 = vld [vmem:[%s9 + $0xd0] sm:$0xff]
    %v2260 = vld [vmem:[%s9 + $0xd8] sm:$0xff]
    %v2261 = vld [vmem:[%s9 + $0xe0] sm:$0xff]
    %v2262 = vld [vmem:[%s9 + $0xe8] sm:$0xff]
    %v2263 = vld [vmem:[%s9 + $0xf0] sm:$0xff]
    %v2264 = vld [vmem:[%s9 + $0xf8] sm:$0xff]
    %v2265 = vld [vmem:[%s10] sm:$0xf]
    %v2267 = vperm.slane %v2265, 0
    %v2268 = vperm.slane %v2265, 1
    %v2269 = vperm.slane %v2265, 2
    %v2270 = vperm.slane %v2265, 3
    %v2307 = vunpack.c.l.b16 %v2233
    %v2308 = vunpack.c.h.b16 %v2233
    %v2309 = vunpack.c.l.b16 %v2234
    %v2310 = vunpack.c.h.b16 %v2234
    %v2311 = vunpack.c.l.b16 %v2235
    %v2312 = vunpack.c.h.b16 %v2235
    %v2313 = vunpack.c.l.b16 %v2236
    %v2314 = vunpack.c.h.b16 %v2236
    %v2315 = vunpack.c.l.b16 %v2237
    %v2316 = vunpack.c.h.b16 %v2237
    %v2317 = vunpack.c.l.b16 %v2238
    %v2318 = vunpack.c.h.b16 %v2238
    %v2319 = vunpack.c.l.b16 %v2239
    %v2320 = vunpack.c.h.b16 %v2239
    %v2321 = vunpack.c.l.b16 %v2240
    %v2322 = vunpack.c.h.b16 %v2240
    %v2323 = vunpack.c.l.b16 %v2241
    %v2324 = vunpack.c.h.b16 %v2241
    %v2325 = vunpack.c.l.b16 %v2242
    %v2326 = vunpack.c.h.b16 %v2242
    %v2327 = vunpack.c.l.b16 %v2243
    %v2328 = vunpack.c.h.b16 %v2243
    %v2329 = vunpack.c.l.b16 %v2244
    %v2330 = vunpack.c.h.b16 %v2244
    %v2331 = vunpack.c.l.b16 %v2245
    %v2332 = vunpack.c.h.b16 %v2245
    %v2333 = vunpack.c.l.b16 %v2246
    %v2334 = vunpack.c.h.b16 %v2246
    %v2335 = vunpack.c.l.b16 %v2247
    %v2336 = vunpack.c.h.b16 %v2247
    %v2337 = vunpack.c.l.b16 %v2248
    %v2338 = vunpack.c.h.b16 %v2248
    %v2339 = vunpack.c.l.b16 %v2249
    %v2340 = vunpack.c.h.b16 %v2249
    %v2341 = vunpack.c.l.b16 %v2250
    %v2342 = vunpack.c.h.b16 %v2250
    %v2343 = vunpack.c.l.b16 %v2251
    %v2344 = vunpack.c.h.b16 %v2251
    %v2345 = vunpack.c.l.b16 %v2252
    %v2346 = vunpack.c.h.b16 %v2252
    %v2347 = vunpack.c.l.b16 %v2253
    %v2348 = vunpack.c.h.b16 %v2253
    %v2349 = vunpack.c.l.b16 %v2254
    %v2350 = vunpack.c.h.b16 %v2254
    %v2351 = vunpack.c.l.b16 %v2255
    %v2352 = vunpack.c.h.b16 %v2255
    %v2353 = vunpack.c.l.b16 %v2256
    %v2354 = vunpack.c.h.b16 %v2256
    %v2355 = vunpack.c.l.b16 %v2257
    %v2356 = vunpack.c.h.b16 %v2257
    %v2357 = vunpack.c.l.b16 %v2258
    %v2358 = vunpack.c.h.b16 %v2258
    %v2359 = vunpack.c.l.b16 %v2259
    %v2360 = vunpack.c.h.b16 %v2259
    %v2361 = vunpack.c.l.b16 %v2260
    %v2362 = vunpack.c.h.b16 %v2260
    %v2363 = vunpack.c.l.b16 %v2261
    %v2364 = vunpack.c.h.b16 %v2261
    %v2365 = vunpack.c.l.b16 %v2262
    %v2366 = vunpack.c.h.b16 %v2262
    %v2367 = vunpack.c.l.b16 %v2263
    %v2368 = vunpack.c.h.b16 %v2263
    %v2369 = vunpack.c.l.b16 %v2264
    %v2370 = vunpack.c.h.b16 %v2264
    %v2371 = vpack.c.b16 %v2311, %v2307
    %v2372 = vpack.c.b16 %v2312, %v2308
    %v2373 = vpack.c.b16 %v2313, %v2309
    %v2374 = vpack.c.b16 %v2314, %v2310
    %v2375 = vpack.c.b16 %v2319, %v2315
    %v2376 = vpack.c.b16 %v2320, %v2316
    %v2377 = vpack.c.b16 %v2321, %v2317
    %v2378 = vpack.c.b16 %v2322, %v2318
    %v2379 = vpack.c.b16 %v2327, %v2323
    %v2380 = vpack.c.b16 %v2328, %v2324
    %v2381 = vpack.c.b16 %v2329, %v2325
    %v2382 = vpack.c.b16 %v2330, %v2326
    %v2383 = vpack.c.b16 %v2335, %v2331
    %v2384 = vpack.c.b16 %v2336, %v2332
    %v2385 = vpack.c.b16 %v2337, %v2333
    %v2386 = vpack.c.b16 %v2338, %v2334
    %v2387 = vpack.c.b16 %v2343, %v2339
    %v2388 = vpack.c.b16 %v2344, %v2340
    %v2389 = vpack.c.b16 %v2345, %v2341
    %v2390 = vpack.c.b16 %v2346, %v2342
    %v2391 = vpack.c.b16 %v2351, %v2347
    %v2392 = vpack.c.b16 %v2352, %v2348
    %v2393 = vpack.c.b16 %v2353, %v2349
    %v2394 = vpack.c.b16 %v2354, %v2350
    %v2395 = vpack.c.b16 %v2359, %v2355
    %v2396 = vpack.c.b16 %v2360, %v2356
    %v2397 = vpack.c.b16 %v2361, %v2357
    %v2398 = vpack.c.b16 %v2362, %v2358
    %v2399 = vpack.c.b16 %v2367, %v2363
    %v2400 = vpack.c.b16 %v2368, %v2364
    %v2401 = vpack.c.b16 %v2369, %v2365
    %v2402 = vpack.c.b16 %v2370, %v2366
    %2435 = vmatpush.bf16.msra.mxu0 %v2399
    %2436 = vmatpush.bf16.msra.mxu0 %v2395
    %2437 = vmatpush.bf16.msra.mxu0 %v2391
    %2438 = vmatpush.bf16.msra.mxu0 %v2387
    %2439 = vmatpush.bf16.msra.mxu0 %v2383
    %2440 = vmatpush.bf16.msra.mxu0 %v2379
    %2441 = vmatpush.bf16.msra.mxu0 %v2375
    %2442 = vmatpush.bf16.msra.mxu0 %v2371
    %2443 = vmatmul.bf16.gmra.mxu0 %v2229
    %v2444 = vpop.f32.mrf.mxu0
    %v2445 = vadd.f32 %v2267, %v2444
    %v2446 = vpop.f32.mrf.mxu0
    %v2447 = vadd.f32 %v2267, %v2446
    %2448 = vmatmul.bf16.gmra.mxu0 %v2230
    %v2449 = vpop.f32.mrf.mxu0
    %v2450 = vadd.f32 %v2267, %v2449
    %v2451 = vpop.f32.mrf.mxu0
    %v2452 = vadd.f32 %v2267, %v2451
    %2453 = vmatmul.bf16.gmra.mxu0 %v2231
    %v2454 = vpop.f32.mrf.mxu0
    %v2455 = vadd.f32 %v2267, %v2454
    %v2456 = vpop.f32.mrf.mxu0
    %v2457 = vadd.f32 %v2267, %v2456
    %2458 = vmatmul.bf16.gmra.mxu0 %v2232
    %v2459 = vpop.f32.mrf.mxu0
    %v2460 = vadd.f32 %v2267, %v2459
    %v2461 = vpop.f32.mrf.mxu0
    %v2462 = vadd.f32 %v2267, %v2461
    %2463 = vdwg.mxu0
    %2464 = vmatpush.bf16.msra.mxu0 %v2400
    %2465 = vmatpush.bf16.msra.mxu0 %v2396
    %2466 = vmatpush.bf16.msra.mxu0 %v2392
    %2467 = vmatpush.bf16.msra.mxu0 %v2388
    %2468 = vmatpush.bf16.msra.mxu0 %v2384
    %2469 = vmatpush.bf16.msra.mxu0 %v2380
    %2470 = vmatpush.bf16.msra.mxu0 %v2376
    %2471 = vmatpush.bf16.msra.mxu0 %v2372
    %2472 = vmatmul.bf16.gmra.mxu0 %v2229
    %v2473 = vpop.f32.mrf.mxu0
    %v2474 = vadd.f32 %v2268, %v2473
    %v2475 = vpop.f32.mrf.mxu0
    %v2476 = vadd.f32 %v2268, %v2475
    %2477 = vmatmul.bf16.gmra.mxu0 %v2230
    %v2478 = vpop.f32.mrf.mxu0
    %v2479 = vadd.f32 %v2268, %v2478
    %v2480 = vpop.f32.mrf.mxu0
    %v2481 = vadd.f32 %v2268, %v2480
    %2482 = vmatmul.bf16.gmra.mxu0 %v2231
    %v2483 = vpop.f32.mrf.mxu0
    %v2484 = vadd.f32 %v2268, %v2483
    %v2485 = vpop.f32.mrf.mxu0
    %v2486 = vadd.f32 %v2268, %v2485
    %2487 = vmatmul.bf16.gmra.mxu0 %v2232
    %v2488 = vpop.f32.mrf.mxu0
    %v2489 = vadd.f32 %v2268, %v2488
    %v2490 = vpop.f32.mrf.mxu0
    %v2491 = vadd.f32 %v2268, %v2490
    %2492 = vdwg.mxu0
    %2493 = vmatpush.bf16.msra.mxu0 %v2401
    %2494 = vmatpush.bf16.msra.mxu0 %v2397
    %2495 = vmatpush.bf16.msra.mxu0 %v2393
    %2496 = vmatpush.bf16.msra.mxu0 %v2389
    %2497 = vmatpush.bf16.msra.mxu0 %v2385
    %2498 = vmatpush.bf16.msra.mxu0 %v2381
    %2499 = vmatpush.bf16.msra.mxu0 %v2377
    %2500 = vmatpush.bf16.msra.mxu0 %v2373
    %2501 = vmatmul.bf16.gmra.mxu0 %v2229
    %v2502 = vpop.f32.mrf.mxu0
    %v2503 = vadd.f32 %v2269, %v2502
    %v2504 = vpop.f32.mrf.mxu0
    %v2505 = vadd.f32 %v2269, %v2504
    %2506 = vmatmul.bf16.gmra.mxu0 %v2230
    %v2507 = vpop.f32.mrf.mxu0
    %v2508 = vadd.f32 %v2269, %v2507
    %v2509 = vpop.f32.mrf.mxu0
    %v2510 = vadd.f32 %v2269, %v2509
    %2511 = vmatmul.bf16.gmra.mxu0 %v2231
    %v2512 = vpop.f32.mrf.mxu0
    %v2513 = vadd.f32 %v2269, %v2512
    %v2514 = vpop.f32.mrf.mxu0
    %v2515 = vadd.f32 %v2269, %v2514
    %2516 = vmatmul.bf16.gmra.mxu0 %v2232
    %v2517 = vpop.f32.mrf.mxu0
    %v2518 = vadd.f32 %v2269, %v2517
    %v2519 = vpop.f32.mrf.mxu0
    %v2520 = vadd.f32 %v2269, %v2519
    %2521 = vdwg.mxu0
    %2522 = vmatpush.bf16.msra.mxu0 %v2402
    %2523 = vmatpush.bf16.msra.mxu0 %v2398
    %2524 = vmatpush.bf16.msra.mxu0 %v2394
    %2525 = vmatpush.bf16.msra.mxu0 %v2390
    %2526 = vmatpush.bf16.msra.mxu0 %v2386
    %2527 = vmatpush.bf16.msra.mxu0 %v2382
    %2528 = vmatpush.bf16.msra.mxu0 %v2378
    %2529 = vmatpush.bf16.msra.mxu0 %v2374
    %2530 = vmatmul.bf16.gmra.mxu0 %v2229
    %v2531 = vpop.f32.mrf.mxu0
    %v2532 = vadd.f32 %v2270, %v2531
    %v2533 = vpop.f32.mrf.mxu0
    %v2534 = vadd.f32 %v2270, %v2533
    %2535 = vmatmul.bf16.gmra.mxu0 %v2230
    %v2536 = vpop.f32.mrf.mxu0
    %v2537 = vadd.f32 %v2270, %v2536
    %v2538 = vpop.f32.mrf.mxu0
    %v2539 = vadd.f32 %v2270, %v2538
    %2540 = vmatmul.bf16.gmra.mxu0 %v2231
    %v2541 = vpop.f32.mrf.mxu0
    %v2542 = vadd.f32 %v2270, %v2541
    %v2543 = vpop.f32.mrf.mxu0
    %v2544 = vadd.f32 %v2270, %v2543
    %2545 = vmatmul.bf16.gmra.mxu0 %v2232
    %v2546 = vpop.f32.mrf.mxu0
    %v2547 = vadd.f32 %v2270, %v2546
    %v2548 = vpop.f32.mrf.mxu0
    %v2549 = vadd.f32 %v2270, %v2548
    %2550 = vdwg.mxu0
    %v2551 = vmax.f32 %v2445, 0.0
    %v2552 = vmax.f32 %v2474, 0.0
    %v2553 = vmax.f32 %v2503, 0.0
    %v2554 = vmax.f32 %v2532, 0.0
    %v2555 = vmax.f32 %v2447, 0.0
    %v2556 = vmax.f32 %v2476, 0.0
    %v2557 = vmax.f32 %v2505, 0.0
    %v2558 = vmax.f32 %v2534, 0.0
    %v2559 = vmax.f32 %v2450, 0.0
    %v2560 = vmax.f32 %v2479, 0.0
    %v2561 = vmax.f32 %v2508, 0.0
    %v2562 = vmax.f32 %v2537, 0.0
    %v2563 = vmax.f32 %v2452, 0.0
    %v2564 = vmax.f32 %v2481, 0.0
    %v2565 = vmax.f32 %v2510, 0.0
    %v2566 = vmax.f32 %v2539, 0.0
    %v2567 = vmax.f32 %v2455, 0.0
    %v2568 = vmax.f32 %v2484, 0.0
    %v2569 = vmax.f32 %v2513, 0.0
    %v2570 = vmax.f32 %v2542, 0.0
    %v2571 = vmax.f32 %v2457, 0.0
    %v2572 = vmax.f32 %v2486, 0.0
    %v2573 = vmax.f32 %v2515, 0.0
    %v2574 = vmax.f32 %v2544, 0.0
    %v2575 = vmax.f32 %v2460, 0.0
    %v2576 = vmax.f32 %v2489, 0.0
    %v2577 = vmax.f32 %v2518, 0.0
    %v2578 = vmax.f32 %v2547, 0.0
    %v2579 = vmax.f32 %v2462, 0.0
    %v2580 = vmax.f32 %v2491, 0.0
    %v2581 = vmax.f32 %v2520, 0.0
    %v2582 = vmax.f32 %v2549, 0.0
    %v2583 = vpack.c.bf16 %v2555, %v2551
    %v2584 = vpack.c.bf16 %v2556, %v2552
    %v2585 = vpack.c.bf16 %v2557, %v2553
    %v2586 = vpack.c.bf16 %v2558, %v2554
    %v2587 = vpack.c.bf16 %v2563, %v2559
    %v2588 = vpack.c.bf16 %v2564, %v2560
    %v2589 = vpack.c.bf16 %v2565, %v2561
    %v2590 = vpack.c.bf16 %v2566, %v2562
    %v2591 = vpack.c.bf16 %v2571, %v2567
    %v2592 = vpack.c.bf16 %v2572, %v2568
    %v2593 = vpack.c.bf16 %v2573, %v2569
    %v2594 = vpack.c.bf16 %v2574, %v2570
    %v2595 = vpack.c.bf16 %v2579, %v2575
    %v2596 = vpack.c.bf16 %v2580, %v2576
    %v2597 = vpack.c.bf16 %v2581, %v2577
    %v2598 = vpack.c.bf16 %v2582, %v2578
    %v2599 = vld [vmem:[%s11] sm:$0xf]
    %v2600 = vld [vmem:[%s11 + $0x4] sm:$0xf]
    %v2601 = vld [vmem:[%s11 + $0x8] sm:$0xf]
    %v2602 = vld [vmem:[%s11 + $0xc] sm:$0xf]
    %v2603 = vld [vmem:[%s11 + $0x10] sm:$0xf]
    %v2604 = vld [vmem:[%s11 + $0x14] sm:$0xf]
    %v2605 = vld [vmem:[%s11 + $0x18] sm:$0xf]
    %v2606 = vld [vmem:[%s11 + $0x1c] sm:$0xf]
    %v2607 = vld [vmem:[%s11 + $0x20] sm:$0xf]
    %v2608 = vld [vmem:[%s11 + $0x24] sm:$0xf]
    %v2609 = vld [vmem:[%s11 + $0x28] sm:$0xf]
    %v2610 = vld [vmem:[%s11 + $0x2c] sm:$0xf]
    %v2611 = vld [vmem:[%s11 + $0x30] sm:$0xf]
    %v2612 = vld [vmem:[%s11 + $0x34] sm:$0xf]
    %v2613 = vld [vmem:[%s11 + $0x38] sm:$0xf]
    %v2614 = vld [vmem:[%s11 + $0x3c] sm:$0xf]
    %v2615 = vld [vmem:[%s11 + $0x40] sm:$0xf]
    %v2616 = vld [vmem:[%s11 + $0x44] sm:$0xf]
    %v2617 = vld [vmem:[%s11 + $0x48] sm:$0xf]
    %v2618 = vld [vmem:[%s11 + $0x4c] sm:$0xf]
    %v2619 = vld [vmem:[%s11 + $0x50] sm:$0xf]
    %v2620 = vld [vmem:[%s11 + $0x54] sm:$0xf]
    %v2621 = vld [vmem:[%s11 + $0x58] sm:$0xf]
    %v2622 = vld [vmem:[%s11 + $0x5c] sm:$0xf]
    %v2623 = vld [vmem:[%s11 + $0x60] sm:$0xf]
    %v2624 = vld [vmem:[%s11 + $0x64] sm:$0xf]
    %v2625 = vld [vmem:[%s11 + $0x68] sm:$0xf]
    %v2626 = vld [vmem:[%s11 + $0x6c] sm:$0xf]
    %v2627 = vld [vmem:[%s11 + $0x70] sm:$0xf]
    %v2628 = vld [vmem:[%s11 + $0x74] sm:$0xf]
    %v2629 = vld [vmem:[%s11 + $0x78] sm:$0xf]
    %v2630 = vld [vmem:[%s11 + $0x7c] sm:$0xf]
    %v2631 = vld [vmem:[%s11 + $0x80] sm:$0xf]
    %v2632 = vld [vmem:[%s11 + $0x84] sm:$0xf]
    %v2633 = vld [vmem:[%s11 + $0x88] sm:$0xf]
    %v2634 = vld [vmem:[%s11 + $0x8c] sm:$0xf]
    %v2635 = vld [vmem:[%s11 + $0x90] sm:$0xf]
    %v2636 = vld [vmem:[%s11 + $0x94] sm:$0xf]
    %v2637 = vld [vmem:[%s11 + $0x98] sm:$0xf]
    %v2638 = vld [vmem:[%s11 + $0x9c] sm:$0xf]
    %v2639 = vld [vmem:[%s11 + $0xa0] sm:$0xf]
    %v2640 = vld [vmem:[%s11 + $0xa4] sm:$0xf]
    %v2641 = vld [vmem:[%s11 + $0xa8] sm:$0xf]
    %v2642 = vld [vmem:[%s11 + $0xac] sm:$0xf]
    %v2643 = vld [vmem:[%s11 + $0xb0] sm:$0xf]
    %v2644 = vld [vmem:[%s11 + $0xb4] sm:$0xf]
    %v2645 = vld [vmem:[%s11 + $0xb8] sm:$0xf]
    %v2646 = vld [vmem:[%s11 + $0xbc] sm:$0xf]
    %v2647 = vld [vmem:[%s11 + $0xc0] sm:$0xf]
    %v2648 = vld [vmem:[%s11 + $0xc4] sm:$0xf]
    %v2649 = vld [vmem:[%s11 + $0xc8] sm:$0xf]
    %v2650 = vld [vmem:[%s11 + $0xcc] sm:$0xf]
    %v2651 = vld [vmem:[%s11 + $0xd0] sm:$0xf]
    %v2652 = vld [vmem:[%s11 + $0xd4] sm:$0xf]
    %v2653 = vld [vmem:[%s11 + $0xd8] sm:$0xf]
    %v2654 = vld [vmem:[%s11 + $0xdc] sm:$0xf]
    %v2655 = vld [vmem:[%s11 + $0xe0] sm:$0xf]
    %v2656 = vld [vmem:[%s11 + $0xe4] sm:$0xf]
    %v2657 = vld [vmem:[%s11 + $0xe8] sm:$0xf]
    %v2658 = vld [vmem:[%s11 + $0xec] sm:$0xf]
    %v2659 = vld [vmem:[%s11 + $0xf0] sm:$0xf]
    %v2660 = vld [vmem:[%s11 + $0xf4] sm:$0xf]
    %v2661 = vld [vmem:[%s11 + $0xf8] sm:$0xf]
    %v2662 = vld [vmem:[%s11 + $0xfc] sm:$0xf]
    %v2663 = vld [vmem:[%s12] sm:$0x1]
    %v2665 = vperm.slane %v2663, 0
    %v2731 = vunpack.c.l.b16 %v2599
    %v2732 = vunpack.c.l.b16 %v2600
    %v2733 = vunpack.c.l.b16 %v2601
    %v2734 = vunpack.c.l.b16 %v2602
    %v2735 = vunpack.c.l.b16 %v2603
    %v2736 = vunpack.c.l.b16 %v2604
    %v2737 = vunpack.c.l.b16 %v2605
    %v2738 = vunpack.c.l.b16 %v2606
    %v2739 = vunpack.c.l.b16 %v2607
    %v2740 = vunpack.c.l.b16 %v2608
    %v2741 = vunpack.c.l.b16 %v2609
    %v2742 = vunpack.c.l.b16 %v2610
    %v2743 = vunpack.c.l.b16 %v2611
    %v2744 = vunpack.c.l.b16 %v2612
    %v2745 = vunpack.c.l.b16 %v2613
    %v2746 = vunpack.c.l.b16 %v2614
    %v2747 = vunpack.c.l.b16 %v2615
    %v2748 = vunpack.c.l.b16 %v2616
    %v2749 = vunpack.c.l.b16 %v2617
    %v2750 = vunpack.c.l.b16 %v2618
    %v2751 = vunpack.c.l.b16 %v2619
    %v2752 = vunpack.c.l.b16 %v2620
    %v2753 = vunpack.c.l.b16 %v2621
    %v2754 = vunpack.c.l.b16 %v2622
    %v2755 = vunpack.c.l.b16 %v2623
    %v2756 = vunpack.c.l.b16 %v2624
    %v2757 = vunpack.c.l.b16 %v2625
    %v2758 = vunpack.c.l.b16 %v2626
    %v2759 = vunpack.c.l.b16 %v2627
    %v2760 = vunpack.c.l.b16 %v2628
    %v2761 = vunpack.c.l.b16 %v2629
    %v2762 = vunpack.c.l.b16 %v2630
    %v2763 = vunpack.c.l.b16 %v2631
    %v2764 = vunpack.c.l.b16 %v2632
    %v2765 = vunpack.c.l.b16 %v2633
    %v2766 = vunpack.c.l.b16 %v2634
    %v2767 = vunpack.c.l.b16 %v2635
    %v2768 = vunpack.c.l.b16 %v2636
    %v2769 = vunpack.c.l.b16 %v2637
    %v2770 = vunpack.c.l.b16 %v2638
    %v2771 = vunpack.c.l.b16 %v2639
    %v2772 = vunpack.c.l.b16 %v2640
    %v2773 = vunpack.c.l.b16 %v2641
    %v2774 = vunpack.c.l.b16 %v2642
    %v2775 = vunpack.c.l.b16 %v2643
    %v2776 = vunpack.c.l.b16 %v2644
    %v2777 = vunpack.c.l.b16 %v2645
    %v2778 = vunpack.c.l.b16 %v2646
    %v2779 = vunpack.c.l.b16 %v2647
    %v2780 = vunpack.c.l.b16 %v2648
    %v2781 = vunpack.c.l.b16 %v2649
    %v2782 = vunpack.c.l.b16 %v2650
    %v2783 = vunpack.c.l.b16 %v2651
    %v2784 = vunpack.c.l.b16 %v2652
    %v2785 = vunpack.c.l.b16 %v2653
    %v2786 = vunpack.c.l.b16 %v2654
    %v2787 = vunpack.c.l.b16 %v2655
    %v2788 = vunpack.c.l.b16 %v2656
    %v2789 = vunpack.c.l.b16 %v2657
    %v2790 = vunpack.c.l.b16 %v2658
    %v2791 = vunpack.c.l.b16 %v2659
    %v2792 = vunpack.c.l.b16 %v2660
    %v2793 = vunpack.c.l.b16 %v2661
    %v2794 = vunpack.c.l.b16 %v2662
    %v2795 = vpack.c.b16 %v2732, %v2731
    %v2796 = vpack.c.b16 %v2734, %v2733
    %v2797 = vpack.c.b16 %v2736, %v2735
    %v2798 = vpack.c.b16 %v2738, %v2737
    %v2799 = vpack.c.b16 %v2740, %v2739
    %v2800 = vpack.c.b16 %v2742, %v2741
    %v2801 = vpack.c.b16 %v2744, %v2743
    %v2802 = vpack.c.b16 %v2746, %v2745
    %v2803 = vpack.c.b16 %v2748, %v2747
    %v2804 = vpack.c.b16 %v2750, %v2749
    %v2805 = vpack.c.b16 %v2752, %v2751
    %v2806 = vpack.c.b16 %v2754, %v2753
    %v2807 = vpack.c.b16 %v2756, %v2755
    %v2808 = vpack.c.b16 %v2758, %v2757
    %v2809 = vpack.c.b16 %v2760, %v2759
    %v2810 = vpack.c.b16 %v2762, %v2761
    %v2811 = vpack.c.b16 %v2764, %v2763
    %v2812 = vpack.c.b16 %v2766, %v2765
    %v2813 = vpack.c.b16 %v2768, %v2767
    %v2814 = vpack.c.b16 %v2770, %v2769
    %v2815 = vpack.c.b16 %v2772, %v2771
    %v2816 = vpack.c.b16 %v2774, %v2773
    %v2817 = vpack.c.b16 %v2776, %v2775
    %v2818 = vpack.c.b16 %v2778, %v2777
    %v2819 = vpack.c.b16 %v2780, %v2779
    %v2820 = vpack.c.b16 %v2782, %v2781
    %v2821 = vpack.c.b16 %v2784, %v2783
    %v2822 = vpack.c.b16 %v2786, %v2785
    %v2823 = vpack.c.b16 %v2788, %v2787
    %v2824 = vpack.c.b16 %v2790, %v2789
    %v2825 = vpack.c.b16 %v2792, %v2791
    %v2826 = vpack.c.b16 %v2794, %v2793
    %2859 = vmatpush.bf16.msra.mxu0 %v2802
    %2860 = vmatpush.bf16.msra.mxu0 %v2801
    %2861 = vmatpush.bf16.msra.mxu0 %v2800
    %2862 = vmatpush.bf16.msra.mxu0 %v2799
    %2863 = vmatpush.bf16.msra.mxu0 %v2798
    %2864 = vmatpush.bf16.msra.mxu0 %v2797
    %2865 = vmatpush.bf16.msra.mxu0 %v2796
    %2866 = vmatpush.bf16.msra.mxu0 %v2795
    %2867 = vmatmul.bf16.gmra.mxu0 %v2583
    %v2868 = vpop.f32.mrf.mxu0
    %v2869 = vadd.f32 %v2665, %v2868
    %v2870 = vpop.f32.mrf.mxu0
    %v2871 = vadd.f32 %v2665, %v2870
    %2872 = vmatmul.bf16.gmra.mxu0 %v2587
    %v2873 = vpop.f32.mrf.mxu0
    %v2874 = vadd.f32 %v2665, %v2873
    %v2875 = vpop.f32.mrf.mxu0
    %v2876 = vadd.f32 %v2665, %v2875
    %2877 = vmatmul.bf16.gmra.mxu0 %v2591
    %v2878 = vpop.f32.mrf.mxu0
    %v2879 = vadd.f32 %v2665, %v2878
    %v2880 = vpop.f32.mrf.mxu0
    %v2881 = vadd.f32 %v2665, %v2880
    %2882 = vmatmul.bf16.gmra.mxu0 %v2595
    %v2883 = vpop.f32.mrf.mxu0
    %v2884 = vadd.f32 %v2665, %v2883
    %v2885 = vpop.f32.mrf.mxu0
    %v2886 = vadd.f32 %v2665, %v2885
    %2887 = vdwg.mxu0
    %2888 = vmatpush.bf16.msra.mxu0 %v2810
    %2889 = vmatpush.bf16.msra.mxu0 %v2809
    %2890 = vmatpush.bf16.msra.mxu0 %v2808
    %2891 = vmatpush.bf16.msra.mxu0 %v2807
    %2892 = vmatpush.bf16.msra.mxu0 %v2806
    %2893 = vmatpush.bf16.msra.mxu0 %v2805
    %2894 = vmatpush.bf16.msra.mxu0 %v2804
    %2895 = vmatpush.bf16.msra.mxu0 %v2803
    %2896 = vmatmul.bf16.gmra.mxu0 %v2584
    %v2897 = vpop.f32.mrf.mxu0
    %v2898 = vadd.f32 %v2869, %v2897
    %v2899 = vpop.f32.mrf.mxu0
    %v2900 = vadd.f32 %v2871, %v2899
    %2901 = vmatmul.bf16.gmra.mxu0 %v2588
    %v2902 = vpop.f32.mrf.mxu0
    %v2903 = vadd.f32 %v2874, %v2902
    %v2904 = vpop.f32.mrf.mxu0
    %v2905 = vadd.f32 %v2876, %v2904
    %2906 = vmatmul.bf16.gmra.mxu0 %v2592
    %v2907 = vpop.f32.mrf.mxu0
    %v2908 = vadd.f32 %v2879, %v2907
    %v2909 = vpop.f32.mrf.mxu0
    %v2910 = vadd.f32 %v2881, %v2909
    %2911 = vmatmul.bf16.gmra.mxu0 %v2596
    %v2912 = vpop.f32.mrf.mxu0
    %v2913 = vadd.f32 %v2884, %v2912
    %v2914 = vpop.f32.mrf.mxu0
    %v2915 = vadd.f32 %v2886, %v2914
    %2916 = vdwg.mxu0
    %2917 = vmatpush.bf16.msra.mxu0 %v2818
    %2918 = vmatpush.bf16.msra.mxu0 %v2817
    %2919 = vmatpush.bf16.msra.mxu0 %v2816
    %2920 = vmatpush.bf16.msra.mxu0 %v2815
    %2921 = vmatpush.bf16.msra.mxu0 %v2814
    %2922 = vmatpush.bf16.msra.mxu0 %v2813
    %2923 = vmatpush.bf16.msra.mxu0 %v2812
    %2924 = vmatpush.bf16.msra.mxu0 %v2811
    %2925 = vmatmul.bf16.gmra.mxu0 %v2585
    %v2926 = vpop.f32.mrf.mxu0
    %v2927 = vadd.f32 %v2898, %v2926
    %v2928 = vpop.f32.mrf.mxu0
    %v2929 = vadd.f32 %v2900, %v2928
    %2930 = vmatmul.bf16.gmra.mxu0 %v2589
    %v2931 = vpop.f32.mrf.mxu0
    %v2932 = vadd.f32 %v2903, %v2931
    %v2933 = vpop.f32.mrf.mxu0
    %v2934 = vadd.f32 %v2905, %v2933
    %2935 = vmatmul.bf16.gmra.mxu0 %v2593
    %v2936 = vpop.f32.mrf.mxu0
    %v2937 = vadd.f32 %v2908, %v2936
    %v2938 = vpop.f32.mrf.mxu0
    %v2939 = vadd.f32 %v2910, %v2938
    %2940 = vmatmul.bf16.gmra.mxu0 %v2597
    %v2941 = vpop.f32.mrf.mxu0
    %v2942 = vadd.f32 %v2913, %v2941
    %v2943 = vpop.f32.mrf.mxu0
    %v2944 = vadd.f32 %v2915, %v2943
    %2945 = vdwg.mxu0
    %2946 = vmatpush.bf16.msra.mxu0 %v2826
    %2947 = vmatpush.bf16.msra.mxu0 %v2825
    %2948 = vmatpush.bf16.msra.mxu0 %v2824
    %2949 = vmatpush.bf16.msra.mxu0 %v2823
    %2950 = vmatpush.bf16.msra.mxu0 %v2822
    %2951 = vmatpush.bf16.msra.mxu0 %v2821
    %2952 = vmatpush.bf16.msra.mxu0 %v2820
    %2953 = vmatpush.bf16.msra.mxu0 %v2819
    %2954 = vmatmul.bf16.gmra.mxu0 %v2586
    %v2955 = vpop.f32.mrf.mxu0
    %v2956 = vadd.f32 %v2927, %v2955
    %v2957 = vpop.f32.mrf.mxu0
    %v2958 = vadd.f32 %v2929, %v2957
    %2959 = vmatmul.bf16.gmra.mxu0 %v2590
    %v2960 = vpop.f32.mrf.mxu0
    %v2961 = vadd.f32 %v2932, %v2960
    %v2962 = vpop.f32.mrf.mxu0
    %v2963 = vadd.f32 %v2934, %v2962
    %2964 = vmatmul.bf16.gmra.mxu0 %v2594
    %v2965 = vpop.f32.mrf.mxu0
    %v2966 = vadd.f32 %v2937, %v2965
    %v2967 = vpop.f32.mrf.mxu0
    %v2968 = vadd.f32 %v2939, %v2967
    %2969 = vmatmul.bf16.gmra.mxu0 %v2598
    %v2970 = vpop.f32.mrf.mxu0
    %v2971 = vadd.f32 %v2942, %v2970
    %v2972 = vpop.f32.mrf.mxu0
    %v2973 = vadd.f32 %v2944, %v2972
    %2974 = vdwg.mxu0
    %v2975 = vadd.f32 %v2221, %v2956
    %v2976 = vadd.f32 %v2222, %v2958
    %v2977 = vadd.f32 %v2223, %v2961
    %v2978 = vadd.f32 %v2224, %v2963
    %v2979 = vadd.f32 %v2225, %v2966
    %v2980 = vadd.f32 %v2226, %v2968
    %v2981 = vadd.f32 %v2227, %v2971
    %v2982 = vadd.f32 %v2228, %v2973
    %v2983 = vld [vmem:[%s13] sm:$0x1]
    %v2984 = vld [vmem:[%s14] sm:$0x1]
    %2985 = vadd.xlane.f32.xlu0 %v2975
    %v2986 = vpop.xlane.xlu0 %2985
    %2987 = vadd.xlane.f32.xlu0 %v2976
    %v2988 = vpop.xlane.xlu0 %2987
    %2989 = vadd.xlane.f32.xlu0 %v2977
    %v2990 = vpop.xlane.xlu0 %2989
    %2991 = vadd.xlane.f32.xlu0 %v2978
    %v2992 = vpop.xlane.xlu0 %2991
    %2993 = vadd.xlane.f32.xlu0 %v2979
    %v2994 = vpop.xlane.xlu0 %2993
    %2995 = vadd.xlane.f32.xlu0 %v2980
    %v2996 = vpop.xlane.xlu0 %2995
    %2997 = vadd.xlane.f32.xlu0 %v2981
    %v2998 = vpop.xlane.xlu0 %2997
    %2999 = vadd.xlane.f32.xlu0 %v2982
    %v3000 = vpop.xlane.xlu0 %2999
    %v3001 = vmul.f32 %v2986, %v2062
    %v3002 = vmul.f32 %v2988, %v2062
    %v3003 = vmul.f32 %v2990, %v2062
    %v3004 = vmul.f32 %v2992, %v2062
    %v3005 = vmul.f32 %v2994, %v2062
    %v3006 = vmul.f32 %v2996, %v2062
    %v3007 = vmul.f32 %v2998, %v2062
    %v3008 = vmul.f32 %v3000, %v2062
    %v3009 = vsub.f32 %v2975, %v3001
    %v3010 = vsub.f32 %v2976, %v3002
    %v3011 = vsub.f32 %v2977, %v3003
    %v3012 = vsub.f32 %v2978, %v3004
    %v3013 = vsub.f32 %v2979, %v3005
    %v3014 = vsub.f32 %v2980, %v3006
    %v3015 = vsub.f32 %v2981, %v3007
    %v3016 = vsub.f32 %v2982, %v3008
    %v3017 = vmul.f32 %v3009, %v3009
    %v3018 = vmul.f32 %v3010, %v3010
    %v3019 = vmul.f32 %v3011, %v3011
    %v3020 = vmul.f32 %v3012, %v3012
    %v3021 = vmul.f32 %v3013, %v3013
    %v3022 = vmul.f32 %v3014, %v3014
    %v3023 = vmul.f32 %v3015, %v3015
    %v3024 = vmul.f32 %v3016, %v3016
    %3025 = vadd.xlane.f32.xlu0 %v3017
    %v3026 = vpop.xlane.xlu0 %3025
    %3027 = vadd.xlane.f32.xlu0 %v3018
    %v3028 = vpop.xlane.xlu0 %3027
    %3029 = vadd.xlane.f32.xlu0 %v3019
    %v3030 = vpop.xlane.xlu0 %3029
    %3031 = vadd.xlane.f32.xlu0 %v3020
    %v3032 = vpop.xlane.xlu0 %3031
    %3033 = vadd.xlane.f32.xlu0 %v3021
    %v3034 = vpop.xlane.xlu0 %3033
    %3035 = vadd.xlane.f32.xlu0 %v3022
    %v3036 = vpop.xlane.xlu0 %3035
    %3037 = vadd.xlane.f32.xlu0 %v3023
    %v3038 = vpop.xlane.xlu0 %3037
    %3039 = vadd.xlane.f32.xlu0 %v3024
    %v3040 = vpop.xlane.xlu0 %3039
    %v3041 = vmul.f32 %v3026, %v2062
    %v3042 = vmul.f32 %v3028, %v2062
    %v3043 = vmul.f32 %v3030, %v2062
    %v3044 = vmul.f32 %v3032, %v2062
    %v3045 = vmul.f32 %v3034, %v2062
    %v3046 = vmul.f32 %v3036, %v2062
    %v3047 = vmul.f32 %v3038, %v2062
    %v3048 = vmul.f32 %v3040, %v2062
    %v3049 = vadd.f32 %v3041, 1e-05
    %v3050 = vadd.f32 %v3042, 1e-05
    %v3051 = vadd.f32 %v3043, 1e-05
    %v3052 = vadd.f32 %v3044, 1e-05
    %v3053 = vadd.f32 %v3045, 1e-05
    %v3054 = vadd.f32 %v3046, 1e-05
    %v3055 = vadd.f32 %v3047, 1e-05
    %v3056 = vadd.f32 %v3048, 1e-05
    %v3057 = vrsqrt.pop %v3049
    %v3058 = vmul.f32 %v3057, %v3049
    %v3059 = vmul.f32 %v3058, %v3057
    %v3060 = vmul.f32 0.5, %v3059
    %v3061 = vsub.f32 1.5, %v3060
    %v3062 = vmul.f32 %v3057, %v3061
    %vm3063 = vweird.f32 %v3049
    %vm3064 = vweird.f32 %v3057
    %vm3065 = vmor %vm3063, %vm3064
    %v3066 = vsel %vm3065, %v3057, %v3062
    %v3067 = vrsqrt.pop %v3050
    %v3068 = vmul.f32 %v3067, %v3050
    %v3069 = vmul.f32 %v3068, %v3067
    %v3070 = vmul.f32 0.5, %v3069
    %v3071 = vsub.f32 1.5, %v3070
    %v3072 = vmul.f32 %v3067, %v3071
    %vm3073 = vweird.f32 %v3050
    %vm3074 = vweird.f32 %v3067
    %vm3075 = vmor %vm3073, %vm3074
    %v3076 = vsel %vm3075, %v3067, %v3072
    %v3077 = vrsqrt.pop %v3051
    %v3078 = vmul.f32 %v3077, %v3051
    %v3079 = vmul.f32 %v3078, %v3077
    %v3080 = vmul.f32 0.5, %v3079
    %v3081 = vsub.f32 1.5, %v3080
    %v3082 = vmul.f32 %v3077, %v3081
    %vm3083 = vweird.f32 %v3051
    %vm3084 = vweird.f32 %v3077
    %vm3085 = vmor %vm3083, %vm3084
    %v3086 = vsel %vm3085, %v3077, %v3082
    %v3087 = vrsqrt.pop %v3052
    %v3088 = vmul.f32 %v3087, %v3052
    %v3089 = vmul.f32 %v3088, %v3087
    %v3090 = vmul.f32 0.5, %v3089
    %v3091 = vsub.f32 1.5, %v3090
    %v3092 = vmul.f32 %v3087, %v3091
    %vm3093 = vweird.f32 %v3052
    %vm3094 = vweird.f32 %v3087
    %vm3095 = vmor %vm3093, %vm3094
    %v3096 = vsel %vm3095, %v3087, %v3092
    %v3097 = vrsqrt.pop %v3053
    %v3098 = vmul.f32 %v3097, %v3053
    %v3099 = vmul.f32 %v3098, %v3097
    %v3100 = vmul.f32 0.5, %v3099
    %v3101 = vsub.f32 1.5, %v3100
    %v3102 = vmul.f32 %v3097, %v3101
    %vm3103 = vweird.f32 %v3053
    %vm3104 = vweird.f32 %v3097
    %vm3105 = vmor %vm3103, %vm3104
    %v3106 = vsel %vm3105, %v3097, %v3102
    %v3107 = vrsqrt.pop %v3054
    %v3108 = vmul.f32 %v3107, %v3054
    %v3109 = vmul.f32 %v3108, %v3107
    %v3110 = vmul.f32 0.5, %v3109
    %v3111 = vsub.f32 1.5, %v3110
    %v3112 = vmul.f32 %v3107, %v3111
    %vm3113 = vweird.f32 %v3054
    %vm3114 = vweird.f32 %v3107
    %vm3115 = vmor %vm3113, %vm3114
    %v3116 = vsel %vm3115, %v3107, %v3112
    %v3117 = vrsqrt.pop %v3055
    %v3118 = vmul.f32 %v3117, %v3055
    %v3119 = vmul.f32 %v3118, %v3117
    %v3120 = vmul.f32 0.5, %v3119
    %v3121 = vsub.f32 1.5, %v3120
    %v3122 = vmul.f32 %v3117, %v3121
    %vm3123 = vweird.f32 %v3055
    %vm3124 = vweird.f32 %v3117
    %vm3125 = vmor %vm3123, %vm3124
    %v3126 = vsel %vm3125, %v3117, %v3122
    %v3127 = vrsqrt.pop %v3056
    %v3128 = vmul.f32 %v3127, %v3056
    %v3129 = vmul.f32 %v3128, %v3127
    %v3130 = vmul.f32 0.5, %v3129
    %v3131 = vsub.f32 1.5, %v3130
    %v3132 = vmul.f32 %v3127, %v3131
    %vm3133 = vweird.f32 %v3056
    %vm3134 = vweird.f32 %v3127
    %vm3135 = vmor %vm3133, %vm3134
    %v3136 = vsel %vm3135, %v3127, %v3132
    %v3137 = vmul.f32 %v3009, %v3066
    %v3138 = vmul.f32 %v3010, %v3076
    %v3139 = vmul.f32 %v3011, %v3086
    %v3140 = vmul.f32 %v3012, %v3096
    %v3141 = vmul.f32 %v3013, %v3106
    %v3142 = vmul.f32 %v3014, %v3116
    %v3143 = vmul.f32 %v3015, %v3126
    %v3144 = vmul.f32 %v3016, %v3136
    %v3146 = vperm.slane %v2983, 0
    %v3148 = vmul.f32 %v3137, %v3146
    %v3149 = vmul.f32 %v3138, %v3146
    %v3150 = vmul.f32 %v3139, %v3146
    %v3151 = vmul.f32 %v3140, %v3146
    %v3152 = vmul.f32 %v3141, %v3146
    %v3153 = vmul.f32 %v3142, %v3146
    %v3154 = vmul.f32 %v3143, %v3146
    %v3155 = vmul.f32 %v3144, %v3146
    %v3157 = vperm.slane %v2984, 0
    %v3159 = vadd.f32 %v3148, %v3157
    %v3160 = vadd.f32 %v3149, %v3157
    %v3161 = vadd.f32 %v3150, %v3157
    %v3162 = vadd.f32 %v3151, %v3157
    %v3163 = vadd.f32 %v3152, %v3157
    %v3164 = vadd.f32 %v3153, %v3157
    %v3165 = vadd.f32 %v3154, %v3157
    %v3166 = vadd.f32 %v3155, %v3157
    %v3167 = vpack.c.bf16 %v3160, %v3159
    %v3168 = vpack.c.bf16 %v3162, %v3161
    %v3169 = vpack.c.bf16 %v3164, %v3163
    %v3170 = vpack.c.bf16 %v3166, %v3165
    %v3171 = vld [vmem:[%s15] sm:$0xff]
    %v3172 = vld [vmem:[%s15 + $0x8] sm:$0xff]
    %v3173 = vld [vmem:[%s15 + $0x10] sm:$0xff]
    %v3174 = vld [vmem:[%s15 + $0x18] sm:$0xff]
    %v3175 = vld [vmem:[%s15 + $0x20] sm:$0xff]
    %v3176 = vld [vmem:[%s15 + $0x28] sm:$0xff]
    %v3177 = vld [vmem:[%s15 + $0x30] sm:$0xff]
    %v3178 = vld [vmem:[%s15 + $0x38] sm:$0xff]
    %v3179 = vld [vmem:[%s15 + $0x40] sm:$0xff]
    %v3180 = vld [vmem:[%s15 + $0x48] sm:$0xff]
    %v3181 = vld [vmem:[%s15 + $0x50] sm:$0xff]
    %v3182 = vld [vmem:[%s15 + $0x58] sm:$0xff]
    %v3183 = vld [vmem:[%s15 + $0x60] sm:$0xff]
    %v3184 = vld [vmem:[%s15 + $0x68] sm:$0xff]
    %v3185 = vld [vmem:[%s15 + $0x70] sm:$0xff]
    %v3186 = vld [vmem:[%s15 + $0x78] sm:$0xff]
    %v3187 = vld [vmem:[%s16] sm:$0x3]
    %v3189 = vperm.slane %v3187, 0
    %v3190 = vperm.slane %v3187, 1
    %v3209 = vunpack.c.l.b16 %v3171
    %v3210 = vunpack.c.h.b16 %v3171
    %v3211 = vunpack.c.l.b16 %v3172
    %v3212 = vunpack.c.h.b16 %v3172
    %v3213 = vunpack.c.l.b16 %v3173
    %v3214 = vunpack.c.h.b16 %v3173
    %v3215 = vunpack.c.l.b16 %v3174
    %v3216 = vunpack.c.h.b16 %v3174
    %v3217 = vunpack.c.l.b16 %v3175
    %v3218 = vunpack.c.h.b16 %v3175
    %v3219 = vunpack.c.l.b16 %v3176
    %v3220 = vunpack.c.h.b16 %v3176
    %v3221 = vunpack.c.l.b16 %v3177
    %v3222 = vunpack.c.h.b16 %v3177
    %v3223 = vunpack.c.l.b16 %v3178
    %v3224 = vunpack.c.h.b16 %v3178
    %v3225 = vunpack.c.l.b16 %v3179
    %v3226 = vunpack.c.h.b16 %v3179
    %v3227 = vunpack.c.l.b16 %v3180
    %v3228 = vunpack.c.h.b16 %v3180
    %v3229 = vunpack.c.l.b16 %v3181
    %v3230 = vunpack.c.h.b16 %v3181
    %v3231 = vunpack.c.l.b16 %v3182
    %v3232 = vunpack.c.h.b16 %v3182
    %v3233 = vunpack.c.l.b16 %v3183
    %v3234 = vunpack.c.h.b16 %v3183
    %v3235 = vunpack.c.l.b16 %v3184
    %v3236 = vunpack.c.h.b16 %v3184
    %v3237 = vunpack.c.l.b16 %v3185
    %v3238 = vunpack.c.h.b16 %v3185
    %v3239 = vunpack.c.l.b16 %v3186
    %v3240 = vunpack.c.h.b16 %v3186
    %v3241 = vpack.c.b16 %v3211, %v3209
    %v3242 = vpack.c.b16 %v3212, %v3210
    %v3243 = vpack.c.b16 %v3215, %v3213
    %v3244 = vpack.c.b16 %v3216, %v3214
    %v3245 = vpack.c.b16 %v3219, %v3217
    %v3246 = vpack.c.b16 %v3220, %v3218
    %v3247 = vpack.c.b16 %v3223, %v3221
    %v3248 = vpack.c.b16 %v3224, %v3222
    %v3249 = vpack.c.b16 %v3227, %v3225
    %v3250 = vpack.c.b16 %v3228, %v3226
    %v3251 = vpack.c.b16 %v3231, %v3229
    %v3252 = vpack.c.b16 %v3232, %v3230
    %v3253 = vpack.c.b16 %v3235, %v3233
    %v3254 = vpack.c.b16 %v3236, %v3234
    %v3255 = vpack.c.b16 %v3239, %v3237
    %v3256 = vpack.c.b16 %v3240, %v3238
    %3273 = vmatpush.bf16.msra.mxu0 %v3255
    %3274 = vmatpush.bf16.msra.mxu0 %v3253
    %3275 = vmatpush.bf16.msra.mxu0 %v3251
    %3276 = vmatpush.bf16.msra.mxu0 %v3249
    %3277 = vmatpush.bf16.msra.mxu0 %v3247
    %3278 = vmatpush.bf16.msra.mxu0 %v3245
    %3279 = vmatpush.bf16.msra.mxu0 %v3243
    %3280 = vmatpush.bf16.msra.mxu0 %v3241
    %3281 = vmatmul.bf16.gmra.mxu0 %v3167
    %v3282 = vpop.f32.mrf.mxu0
    %v3283 = vadd.f32 %v3189, %v3282
    %v3284 = vpop.f32.mrf.mxu0
    %v3285 = vadd.f32 %v3189, %v3284
    %3286 = vmatmul.bf16.gmra.mxu0 %v3168
    %v3287 = vpop.f32.mrf.mxu0
    %v3288 = vadd.f32 %v3189, %v3287
    %v3289 = vpop.f32.mrf.mxu0
    %v3290 = vadd.f32 %v3189, %v3289
    %3291 = vmatmul.bf16.gmra.mxu0 %v3169
    %v3292 = vpop.f32.mrf.mxu0
    %v3293 = vadd.f32 %v3189, %v3292
    %v3294 = vpop.f32.mrf.mxu0
    %v3295 = vadd.f32 %v3189, %v3294
    %3296 = vmatmul.bf16.gmra.mxu0 %v3170
    %v3297 = vpop.f32.mrf.mxu0
    %v3298 = vadd.f32 %v3189, %v3297
    %v3299 = vpop.f32.mrf.mxu0
    %v3300 = vadd.f32 %v3189, %v3299
    %3301 = vdwg.mxu0
    %3302 = vmatpush.bf16.msra.mxu0 %v3256
    %3303 = vmatpush.bf16.msra.mxu0 %v3254
    %3304 = vmatpush.bf16.msra.mxu0 %v3252
    %3305 = vmatpush.bf16.msra.mxu0 %v3250
    %3306 = vmatpush.bf16.msra.mxu0 %v3248
    %3307 = vmatpush.bf16.msra.mxu0 %v3246
    %3308 = vmatpush.bf16.msra.mxu0 %v3244
    %3309 = vmatpush.bf16.msra.mxu0 %v3242
    %3310 = vmatmul.bf16.gmra.mxu0 %v3167
    %v3311 = vpop.f32.mrf.mxu0
    %v3312 = vadd.f32 %v3190, %v3311
    %v3313 = vpop.f32.mrf.mxu0
    %v3314 = vadd.f32 %v3190, %v3313
    %3315 = vmatmul.bf16.gmra.mxu0 %v3168
    %v3316 = vpop.f32.mrf.mxu0
    %v3317 = vadd.f32 %v3190, %v3316
    %v3318 = vpop.f32.mrf.mxu0
    %v3319 = vadd.f32 %v3190, %v3318
    %3320 = vmatmul.bf16.gmra.mxu0 %v3169
    %v3321 = vpop.f32.mrf.mxu0
    %v3322 = vadd.f32 %v3190, %v3321
    %v3323 = vpop.f32.mrf.mxu0
    %v3324 = vadd.f32 %v3190, %v3323
    %3325 = vmatmul.bf16.gmra.mxu0 %v3170
    %v3326 = vpop.f32.mrf.mxu0
    %v3327 = vadd.f32 %v3190, %v3326
    %v3328 = vpop.f32.mrf.mxu0
    %v3329 = vadd.f32 %v3190, %v3328
    %3330 = vdwg.mxu0
    %3331 = vst [vmem:[#allocation2] sm:$0xff] %v3283
    %3332 = vst [vmem:[#allocation2 + $0x8] sm:$0xff] %v3312
    %3333 = vst [vmem:[#allocation2 + $0x10] sm:$0xff] %v3285
    %3334 = vst [vmem:[#allocation2 + $0x18] sm:$0xff] %v3314
    %3335 = vst [vmem:[#allocation2 + $0x20] sm:$0xff] %v3288
    %3336 = vst [vmem:[#allocation2 + $0x28] sm:$0xff] %v3317
    %3337 = vst [vmem:[#allocation2 + $0x30] sm:$0xff] %v3290
    %3338 = vst [vmem:[#allocation2 + $0x38] sm:$0xff] %v3319
    %3339 = vst [vmem:[#allocation2 + $0x40] sm:$0xff] %v3293
    %3340 = vst [vmem:[#allocation2 + $0x48] sm:$0xff] %v3322
    %3341 = vst [vmem:[#allocation2 + $0x50] sm:$0xff] %v3295
    %3342 = vst [vmem:[#allocation2 + $0x58] sm:$0xff] %v3324
    %3343 = vst [vmem:[#allocation2 + $0x60] sm:$0xff] %v3298
    %3344 = vst [vmem:[#allocation2 + $0x68] sm:$0xff] %v3327
    %3345 = vst [vmem:[#allocation2 + $0x70] sm:$0xff] %v3300
    %3346 = vst [vmem:[#allocation2 + $0x78] sm:$0xff] %v3329
    // Predicated region
    $region70: #{tiny_transformer.1} parent=1 // pred_check
      _
    $region71: #{tiny_transformer.1} parent=1 // pred_check_branch
      %3348 = sbr.rel (0) target = $region73
    $region72: #{tiny_transformer.1} parent=1 // pred_region
      %3350 = vsyncadd [#allocation3], 0
      %s3351 = sshll.u32 [#allocation2], 4
      %s3352 = int_to_ptr.vmem [resolvable:$true] %s3351
      %s3353 = sshll.u32 %s17, 4
      %s3354 = int_to_ptr.hbm [resolvable:$true] %s3353
      %3359 = dma.vmem_to_hbm [thread:$0]  %s3352, 2048, %s3354, [#allocation3], 256, 256, 16
    $region73: #{tiny_transformer.1} parent=1 // pred_fallthru
      _
    // Predicated region
    $region74: #{tiny_transformer.1} parent=1 // pred_check
      _
    $region75: #{tiny_transformer.1} parent=1 // pred_check_branch
      %3361 = sbr.rel (0) target = $region77
    $region76: #{tiny_transformer.1} parent=1 // pred_region
      %3363 = dma.done [#allocation3], 2048
    $region77: #{tiny_transformer.1} parent=1 // pred_fallthru
      _
    %3364 = vsyncpa [#allocation3], 1

</llo_original>
